<compile_context>
chip_gen: v7x
topology: tpu7x:2x2x1
jax: 0.10.0
libtpu: 0.0.40
codegen_flags: <defaults>
</compile_context>

<pallas_src>
import math
import functools

import jax
import jax.numpy as jnp
from jax.experimental import pallas as pl
from jax.experimental.pallas import tpu as pltpu

VMEM = pltpu.MemorySpace.VMEM


# --------------------------- shared kernel body -----------------------------

def _encode(x_ref, emb_w_ref, emb_b_ref, layer_refs, *, B, L, n_head, n_layer):
    """Embedding + n_layer post-norm TransformerEncoderLayers (eval mode).

    Operates on Refs already resident in VMEM; returns qs as a (B*L, D) value.
    All intermediates (including the (B*L, dim_ff) FFN activation) stay
    on-chip — no HBM round trips between layers.
    """
    h = (jnp.dot(x_ref[...], emb_w_ref[...], preferred_element_type=jnp.float32)
         + emb_b_ref[...])                                   # (B*L, D)
    D = h.shape[1]
    hd = D // n_head
    scale = 1.0 / math.sqrt(hd)

    for l in range(n_layer):
        (wqkv, bqkv, wo, bo, ln1g, ln1b,
         w1, b1, w2, b2, ln2g, ln2b) = layer_refs[12 * l: 12 * (l + 1)]

        qkv = (jnp.dot(h, wqkv[...], preferred_element_type=jnp.float32)
               + bqkv[...])                                  # (B*L, 3D)

        # per-batch, per-head attention (B and n_head are small & static)
        per_batch = []
        for b in range(B):
            qkv_b = qkv[b * L:(b + 1) * L, :]                # sublane-aligned rows
            heads = []
            for hh in range(n_head):
                q = qkv_b[:, hh * hd:(hh + 1) * hd]
                k = qkv_b[:, D + hh * hd:D + (hh + 1) * hd]
                v = qkv_b[:, 2 * D + hh * hd:2 * D + (hh + 1) * hd]
                s = jnp.dot(q, k.T, preferred_element_type=jnp.float32) * scale
                s = s - jnp.max(s, axis=-1, keepdims=True)
                e = jnp.exp(s)
                p = e / jnp.sum(e, axis=-1, keepdims=True)
                heads.append(jnp.dot(p, v, preferred_element_type=jnp.float32))
            per_batch.append(jnp.concatenate(heads, axis=-1))
        a = jnp.concatenate(per_batch, axis=0)               # (B*L, D)
        a = jnp.dot(a, wo[...], preferred_element_type=jnp.float32) + bo[...]

        # residual + LayerNorm 1 (eps = 1e-5, PyTorch default)
        x1 = h + a
        m1 = jnp.mean(x1, axis=-1, keepdims=True)
        c1 = x1 - m1
        v1 = jnp.mean(c1 * c1, axis=-1, keepdims=True)
        h1 = c1 * jax.lax.rsqrt(v1 + 1e-5) * ln1g[...] + ln1b[...]

        # FFN (ReLU); the (B*L, dim_ff) intermediate never leaves VMEM
        ff = jnp.dot(h1, w1[...], preferred_element_type=jnp.float32) + b1[...]
        ff = jnp.maximum(ff, 0.0)
        ff = jnp.dot(ff, w2[...], preferred_element_type=jnp.float32) + b2[...]

        # residual + LayerNorm 2
        x2 = h1 + ff
        m2 = jnp.mean(x2, axis=-1, keepdims=True)
        c2 = x2 - m2
        v2 = jnp.mean(c2 * c2, axis=-1, keepdims=True)
        h = c2 * jax.lax.rsqrt(v2 + 1e-5) * ln2g[...] + ln2b[...]

    return h                                                 # qs, (B*L, D)


# ------------------------------ Pallas kernels -------------------------------

def _encoder_kernel(*refs, B, L, n_head, n_layer):
    # Used once for memory initialization only.
    x_ref, emb_w_ref, emb_b_ref = refs[0:3]
    layer_refs = refs[3:3 + 12 * n_layer]
    qs_ref = refs[-1]
    qs_ref[...] = _encode(x_ref, emb_w_ref, emb_b_ref, layer_refs,
                          B=B, L=L, n_head=n_head, n_layer=n_layer)


def _memto_kernel(*refs, B, L, n_head, n_layer):
    # Fully fused forward: embed + encoder layers + memory gate + retrieve +
    # decoder.  Single grid point; everything after the input DMA stays in
    # VMEM until the final recon store.
    x_ref, emb_w_ref, emb_b_ref = refs[0:3]
    off = 3
    layer_refs = refs[off: off + 12 * n_layer]
    off += 12 * n_layer
    (mem_ref, uw_ref, ww_ref,
     d1w_ref, d1b_ref, d2w_ref, d2b_ref) = refs[off: off + 7]
    recon_ref = refs[off + 7]

    qs = _encode(x_ref, emb_w_ref, emb_b_ref, layer_refs,
                 B=B, L=L, n_head=n_head, n_layer=n_layer)   # (B*L, D)
    D = qs.shape[1]

    # ---- memory gate: per-batch softmax over L, mean over batch ----
    mem = mem_ref[...]                                       # (M, D)
    r_sum = jnp.zeros_like(mem)
    for b in range(B):                                       # B is small & static
        qs_b = qs[b * L:(b + 1) * L, :]                      # (L, D) aligned rows
        s_b = jnp.dot(mem, qs_b.T, preferred_element_type=jnp.float32)  # (M, L)
        s_b = s_b - jnp.max(s_b, axis=-1, keepdims=True)
        e = jnp.exp(s_b)
        v = e / jnp.sum(e, axis=-1, keepdims=True)           # softmax over L
        r_sum = r_sum + jnp.dot(v, qs_b, preferred_element_type=jnp.float32)
    r_mean = r_sum * (1.0 / B)                               # (M, D)
    psi = (jnp.dot(mem, uw_ref[...], preferred_element_type=jnp.float32)
           + jnp.dot(r_mean, ww_ref[...], preferred_element_type=jnp.float32))
    new_mem = (1.0 - psi) * mem + psi * r_mean               # (M, D)

    # ---- retrieve: softmax over memory slots ----
    rr = jnp.dot(qs, new_mem.T, preferred_element_type=jnp.float32)  # (B*L, M)
    rr = rr - jnp.max(rr, axis=-1, keepdims=True)
    e = jnp.exp(rr)
    rr = e / jnp.sum(e, axis=-1, keepdims=True)
    q_t = jnp.dot(rr, new_mem, preferred_element_type=jnp.float32)   # (B*L, D)

    # ---- decoder: q_hat @ W1 == qs @ W1[:D] + q~ @ W1[D:] (no concat) ----
    w_top = d1w_ref[:D, :]
    w_bot = d1w_ref[D:, :]
    hdec = (jnp.dot(qs, w_top, preferred_element_type=jnp.float32)
            + jnp.dot(q_t, w_bot, preferred_element_type=jnp.float32)
            + d1b_ref[...])
    recon_ref[...] = (jnp.dot(hdec, d2w_ref[...],
                              preferred_element_type=jnp.float32)
                      + d2b_ref[...])


# ------------------------------- model glue ---------------------------------

def _layer_args(lp, D, F):
    return [lp["in_proj_w"], lp["in_proj_b"].reshape(1, 3 * D),
            lp["out_proj_w"], lp["out_proj_b"].reshape(1, D),
            lp["ln1_g"].reshape(1, D), lp["ln1_b"].reshape(1, D),
            lp["ff1_w"], lp["ff1_b"].reshape(1, F),
            lp["ff2_w"], lp["ff2_b"].reshape(1, D),
            lp["ln2_g"].reshape(1, D), lp["ln2_b"].reshape(1, D)]


def encoder_forward(x, params, n_head):
    """Encoder only (one pallas_call) — used for memory initialization."""
    B, L, n_series = x.shape
    assert x.shape[1:] == (L, n_series)  # Shape_Check
    D = params["emb_w"].shape[1]
    F = params["layers"][0]["ff1_w"].shape[1]
    n_layer = len(params["layers"])

    args = [x.reshape(B * L, n_series),
            params["emb_w"], params["emb_b"].reshape(1, D)]
    for lp in params["layers"]:
        args += _layer_args(lp, D, F)

    qs = pl.pallas_call(
        functools.partial(_encoder_kernel, B=B, L=L,
                          n_head=n_head, n_layer=n_layer),
        out_shape=jax.ShapeDtypeStruct((B * L, D), jnp.float32),
        in_specs=[pl.BlockSpec(memory_space=VMEM)] * len(args),
        out_specs=pl.BlockSpec(memory_space=VMEM),
    )(*args)
    return qs.reshape(B, L, D)


def memto_forward(x, params, memory, n_head):
    """Full MEMTO forward — a single fused pallas_call."""
    B, L, n_series = x.shape
    assert x.shape[1:] == (L, n_series)  # Shape_Check
    D = params["emb_w"].shape[1]
    F = params["layers"][0]["ff1_w"].shape[1]
    n_layer = len(params["layers"])

    args = [x.reshape(B * L, n_series),
            params["emb_w"], params["emb_b"].reshape(1, D)]
    for lp in params["layers"]:
        args += _layer_args(lp, D, F)
    args += [memory,
             params["u_psi_w"], params["w_psi_w"],
             params["dec1_w"], params["dec1_b"].reshape(1, D),
             params["dec2_w"], params["dec2_b"].reshape(1, n_series)]

    recon = pl.pallas_call(
        functools.partial(_memto_kernel, B=B, L=L,
                          n_head=n_head, n_layer=n_layer),
        out_shape=jax.ShapeDtypeStruct((B * L, n_series), jnp.float32),
        in_specs=[pl.BlockSpec(memory_space=VMEM)] * len(args),
        out_specs=pl.BlockSpec(memory_space=VMEM),
    )(*args)
    return recon.reshape(B, L, n_series)


# ------------------------------- param init ---------------------------------

def init_params(key, n_series, d_model, n_layer, dim_ff):
    counter = [0]

    def rnd(shape, scale=0.05):
        counter[0] += 1
        k = jax.random.fold_in(key, counter[0])
        return (scale * jax.random.normal(k, shape)).astype(jnp.float32)

    params = {
        "emb_w": rnd((n_series, d_model)),
        "emb_b": rnd((d_model,)),
        "u_psi_w": rnd((d_model, d_model)),
        "w_psi_w": rnd((d_model, d_model)),
        "dec1_w": rnd((2 * d_model, d_model)),
        "dec1_b": rnd((d_model,)),
        "dec2_w": rnd((d_model, n_series)),
        "dec2_b": rnd((n_series,)),
        "layers": [],
    }
    for _ in range(n_layer):
        params["layers"].append({
            "in_proj_w": rnd((d_model, 3 * d_model)),
            "in_proj_b": rnd((3 * d_model,)),
            "out_proj_w": rnd((d_model, d_model)),
            "out_proj_b": rnd((d_model,)),
            "ln1_g": jnp.ones((d_model,), jnp.float32),
            "ln1_b": jnp.zeros((d_model,), jnp.float32),
            "ff1_w": rnd((d_model, dim_ff)),
            "ff1_b": rnd((dim_ff,)),
            "ff2_w": rnd((dim_ff, d_model)),
            "ff2_b": rnd((d_model,)),
            "ln2_g": jnp.ones((d_model,), jnp.float32),
            "ln2_b": jnp.zeros((d_model,), jnp.float32),
        })
    return params


# ---------------------------------- main -------------------------------------

if __name__ == "__main__":
    B, L, n_series = 2, 8, 4
    d_model, n_head, n_layer, n_memory = 32, 4, 1, 8
    dim_ff = 2048  # nn.TransformerEncoderLayer default dim_feedforward

    key = jax.random.PRNGKey(0)
    kx, kp = jax.random.split(key)
    x = jax.random.normal(kx, (B, L, n_series), dtype=jnp.float32)

    params = init_params(kp, n_series, d_model, n_layer, dim_ff)

    # Memory initialization: the PyTorch module runs sklearn KMeans on the
    # encoder outputs of the init batch.
    # TODO(synk): KMeans cluster centers replaced by a deterministic surrogate
    # (strided group means of the encoder outputs) — no clean Pallas/JAX KMeans.
    qs0 = encoder_forward(x, params, n_head)
    memory = (qs0.reshape(-1, d_model)
              .reshape(n_memory, -1, d_model).mean(axis=1))        # (n_memory, D)

    fwd = jax.jit(functools.partial(memto_forward, n_head=n_head))
    recon = fwd(x, params, memory)
    recon = jax.block_until_ready(recon)
    assert recon.shape == (B, L, n_series)
    assert bool(jnp.all(jnp.isfinite(recon)))
    print("KERNEL_OK")
</pallas_src>

<mosaic_0001>
module attributes {stable_mosaic.version = 11 : i64} {
  func.func @_encoder_kernel(%arg0: memref<16x4xf32, #tpu.memory_space<vmem>>, %arg1: memref<4x32xf32, #tpu.memory_space<vmem>>, %arg2: memref<1x32xf32, #tpu.memory_space<vmem>>, %arg3: memref<32x96xf32, #tpu.memory_space<vmem>>, %arg4: memref<1x96xf32, #tpu.memory_space<vmem>>, %arg5: memref<32x32xf32, #tpu.memory_space<vmem>>, %arg6: memref<1x32xf32, #tpu.memory_space<vmem>>, %arg7: memref<1x32xf32, #tpu.memory_space<vmem>>, %arg8: memref<1x32xf32, #tpu.memory_space<vmem>>, %arg9: memref<32x2048xf32, #tpu.memory_space<vmem>>, %arg10: memref<1x2048xf32, #tpu.memory_space<vmem>>, %arg11: memref<2048x32xf32, #tpu.memory_space<vmem>>, %arg12: memref<1x32xf32, #tpu.memory_space<vmem>>, %arg13: memref<1x32xf32, #tpu.memory_space<vmem>>, %arg14: memref<1x32xf32, #tpu.memory_space<vmem>>, %arg15: memref<16x32xf32, #tpu.memory_space<vmem>>) attributes {dimension_semantics = [], scalar_prefetch = 0 : i64, scratch_operands = 0 : i64, tpu.core_type = #tpu.core_type<tc>} {
    %c0 = arith.constant 0 : index
    %c0_0 = arith.constant 0 : index
    %0 = vector.load %arg0[%c0, %c0_0] : memref<16x4xf32, #tpu.memory_space<vmem>>, vector<16x4xf32>
    %c0_1 = arith.constant 0 : index
    %c0_2 = arith.constant 0 : index
    %1 = vector.load %arg1[%c0_1, %c0_2] : memref<4x32xf32, #tpu.memory_space<vmem>>, vector<4x32xf32>
    %cst = arith.constant dense<0.000000e+00> : vector<16x32xf32>
    %2 = tpu.matmul %0, %1, %cst {dimension_numbers = #tpu.dot_dimension_numbers<[1], [0], [0], [1], [0, 0, 1, 1], [], []>} : vector<16x4xf32>, vector<4x32xf32>, vector<16x32xf32> -> vector<16x32xf32>
    %c0_3 = arith.constant 0 : index
    %c0_4 = arith.constant 0 : index
    %3 = vector.load %arg2[%c0_3, %c0_4] : memref<1x32xf32, #tpu.memory_space<vmem>>, vector<1x32xf32>
    %4 = vector.broadcast %3 : vector<1x32xf32> to vector<16x32xf32>
    %5 = arith.addf %2, %4 : vector<16x32xf32>
    %c0_5 = arith.constant 0 : index
    %c0_6 = arith.constant 0 : index
    %6 = vector.load %arg3[%c0_5, %c0_6] : memref<32x96xf32, #tpu.memory_space<vmem>>, vector<32x96xf32>
    %cst_7 = arith.constant dense<0.000000e+00> : vector<16x96xf32>
    %7 = tpu.matmul %5, %6, %cst_7 {dimension_numbers = #tpu.dot_dimension_numbers<[1], [0], [0], [1], [0, 0, 1, 1], [], []>} : vector<16x32xf32>, vector<32x96xf32>, vector<16x96xf32> -> vector<16x96xf32>
    %c0_8 = arith.constant 0 : index
    %c0_9 = arith.constant 0 : index
    %8 = vector.load %arg4[%c0_8, %c0_9] : memref<1x96xf32, #tpu.memory_space<vmem>>, vector<1x96xf32>
    %9 = vector.broadcast %8 : vector<1x96xf32> to vector<16x96xf32>
    %10 = arith.addf %7, %9 : vector<16x96xf32>
    %11 = vector.extract_strided_slice %10 {offsets = [0, 0], sizes = [8, 96], strides = [1, 1]} : vector<16x96xf32> to vector<8x96xf32>
    %12 = vector.extract_strided_slice %11 {offsets = [0, 0], sizes = [8, 8], strides = [1, 1]} : vector<8x96xf32> to vector<8x8xf32>
    %13 = vector.extract_strided_slice %11 {offsets = [0, 32], sizes = [8, 8], strides = [1, 1]} : vector<8x96xf32> to vector<8x8xf32>
    %14 = vector.extract_strided_slice %11 {offsets = [0, 64], sizes = [8, 8], strides = [1, 1]} : vector<8x96xf32> to vector<8x8xf32>
    %15 = tpu.transpose %13, [1, 0] : vector<8x8xf32> -> vector<8x8xf32>
    %cst_10 = arith.constant dense<0.000000e+00> : vector<8x8xf32>
    %16 = tpu.matmul %12, %15, %cst_10 {dimension_numbers = #tpu.dot_dimension_numbers<[1], [0], [0], [1], [0, 0, 1, 1], [], []>} : vector<8x8xf32>, vector<8x8xf32>, vector<8x8xf32> -> vector<8x8xf32>
    %cst_11 = arith.constant 0.353553385 : f32
    %17 = vector.broadcast %cst_11 : f32 to vector<8x8xf32>
    %18 = arith.mulf %16, %17 : vector<8x8xf32>
    %cst_12 = arith.constant dense<0xFF800000> : vector<8xf32>
    %19 = vector.multi_reduction <maximumf>, %18, %cst_12 [1] : vector<8x8xf32> to vector<8xf32>
    %20 = vector.shape_cast %19 : vector<8xf32> to vector<8x1xf32>
    %21 = vector.broadcast %20 : vector<8x1xf32> to vector<8x8xf32>
    %22 = arith.subf %18, %21 : vector<8x8xf32>
    %23 = math.exp %22 : vector<8x8xf32>
    %cst_13 = arith.constant dense<0.000000e+00> : vector<8xf32>
    %24 = vector.multi_reduction <add>, %23, %cst_13 [1] : vector<8x8xf32> to vector<8xf32>
    %25 = vector.shape_cast %24 : vector<8xf32> to vector<8x1xf32>
    %26 = vector.broadcast %25 : vector<8x1xf32> to vector<8x8xf32>
    %27 = arith.divf %23, %26 : vector<8x8xf32>
    %cst_14 = arith.constant dense<0.000000e+00> : vector<8x8xf32>
    %28 = tpu.matmul %27, %14, %cst_14 {dimension_numbers = #tpu.dot_dimension_numbers<[1], [0], [0], [1], [0, 0, 1, 1], [], []>} : vector<8x8xf32>, vector<8x8xf32>, vector<8x8xf32> -> vector<8x8xf32>
    %29 = vector.extract_strided_slice %11 {offsets = [0, 8], sizes = [8, 8], strides = [1, 1]} : vector<8x96xf32> to vector<8x8xf32>
    %30 = vector.extract_strided_slice %11 {offsets = [0, 40], sizes = [8, 8], strides = [1, 1]} : vector<8x96xf32> to vector<8x8xf32>
    %31 = vector.extract_strided_slice %11 {offsets = [0, 72], sizes = [8, 8], strides = [1, 1]} : vector<8x96xf32> to vector<8x8xf32>
    %32 = tpu.transpose %30, [1, 0] : vector<8x8xf32> -> vector<8x8xf32>
    %cst_15 = arith.constant dense<0.000000e+00> : vector<8x8xf32>
    %33 = tpu.matmul %29, %32, %cst_15 {dimension_numbers = #tpu.dot_dimension_numbers<[1], [0], [0], [1], [0, 0, 1, 1], [], []>} : vector<8x8xf32>, vector<8x8xf32>, vector<8x8xf32> -> vector<8x8xf32>
    %cst_16 = arith.constant 0.353553385 : f32
    %34 = vector.broadcast %cst_16 : f32 to vector<8x8xf32>
    %35 = arith.mulf %33, %34 : vector<8x8xf32>
    %cst_17 = arith.constant dense<0xFF800000> : vector<8xf32>
    %36 = vector.multi_reduction <maximumf>, %35, %cst_17 [1] : vector<8x8xf32> to vector<8xf32>
    %37 = vector.shape_cast %36 : vector<8xf32> to vector<8x1xf32>
    %38 = vector.broadcast %37 : vector<8x1xf32> to vector<8x8xf32>
    %39 = arith.subf %35, %38 : vector<8x8xf32>
    %40 = math.exp %39 : vector<8x8xf32>
    %cst_18 = arith.constant dense<0.000000e+00> : vector<8xf32>
    %41 = vector.multi_reduction <add>, %40, %cst_18 [1] : vector<8x8xf32> to vector<8xf32>
    %42 = vector.shape_cast %41 : vector<8xf32> to vector<8x1xf32>
    %43 = vector.broadcast %42 : vector<8x1xf32> to vector<8x8xf32>
    %44 = arith.divf %40, %43 : vector<8x8xf32>
    %cst_19 = arith.constant dense<0.000000e+00> : vector<8x8xf32>
    %45 = tpu.matmul %44, %31, %cst_19 {dimension_numbers = #tpu.dot_dimension_numbers<[1], [0], [0], [1], [0, 0, 1, 1], [], []>} : vector<8x8xf32>, vector<8x8xf32>, vector<8x8xf32> -> vector<8x8xf32>
    %46 = vector.extract_strided_slice %11 {offsets = [0, 16], sizes = [8, 8], strides = [1, 1]} : vector<8x96xf32> to vector<8x8xf32>
    %47 = vector.extract_strided_slice %11 {offsets = [0, 48], sizes = [8, 8], strides = [1, 1]} : vector<8x96xf32> to vector<8x8xf32>
    %48 = vector.extract_strided_slice %11 {offsets = [0, 80], sizes = [8, 8], strides = [1, 1]} : vector<8x96xf32> to vector<8x8xf32>
    %49 = tpu.transpose %47, [1, 0] : vector<8x8xf32> -> vector<8x8xf32>
    %cst_20 = arith.constant dense<0.000000e+00> : vector<8x8xf32>
    %50 = tpu.matmul %46, %49, %cst_20 {dimension_numbers = #tpu.dot_dimension_numbers<[1], [0], [0], [1], [0, 0, 1, 1], [], []>} : vector<8x8xf32>, vector<8x8xf32>, vector<8x8xf32> -> vector<8x8xf32>
    %cst_21 = arith.constant 0.353553385 : f32
    %51 = vector.broadcast %cst_21 : f32 to vector<8x8xf32>
    %52 = arith.mulf %50, %51 : vector<8x8xf32>
    %cst_22 = arith.constant dense<0xFF800000> : vector<8xf32>
    %53 = vector.multi_reduction <maximumf>, %52, %cst_22 [1] : vector<8x8xf32> to vector<8xf32>
    %54 = vector.shape_cast %53 : vector<8xf32> to vector<8x1xf32>
    %55 = vector.broadcast %54 : vector<8x1xf32> to vector<8x8xf32>
    %56 = arith.subf %52, %55 : vector<8x8xf32>
    %57 = math.exp %56 : vector<8x8xf32>
    %cst_23 = arith.constant dense<0.000000e+00> : vector<8xf32>
    %58 = vector.multi_reduction <add>, %57, %cst_23 [1] : vector<8x8xf32> to vector<8xf32>
    %59 = vector.shape_cast %58 : vector<8xf32> to vector<8x1xf32>
    %60 = vector.broadcast %59 : vector<8x1xf32> to vector<8x8xf32>
    %61 = arith.divf %57, %60 : vector<8x8xf32>
    %cst_24 = arith.constant dense<0.000000e+00> : vector<8x8xf32>
    %62 = tpu.matmul %61, %48, %cst_24 {dimension_numbers = #tpu.dot_dimension_numbers<[1], [0], [0], [1], [0, 0, 1, 1], [], []>} : vector<8x8xf32>, vector<8x8xf32>, vector<8x8xf32> -> vector<8x8xf32>
    %63 = vector.extract_strided_slice %11 {offsets = [0, 24], sizes = [8, 8], strides = [1, 1]} : vector<8x96xf32> to vector<8x8xf32>
    %64 = vector.extract_strided_slice %11 {offsets = [0, 56], sizes = [8, 8], strides = [1, 1]} : vector<8x96xf32> to vector<8x8xf32>
    %65 = vector.extract_strided_slice %11 {offsets = [0, 88], sizes = [8, 8], strides = [1, 1]} : vector<8x96xf32> to vector<8x8xf32>
    %66 = tpu.transpose %64, [1, 0] : vector<8x8xf32> -> vector<8x8xf32>
    %cst_25 = arith.constant dense<0.000000e+00> : vector<8x8xf32>
    %67 = tpu.matmul %63, %66, %cst_25 {dimension_numbers = #tpu.dot_dimension_numbers<[1], [0], [0], [1], [0, 0, 1, 1], [], []>} : vector<8x8xf32>, vector<8x8xf32>, vector<8x8xf32> -> vector<8x8xf32>
    %cst_26 = arith.constant 0.353553385 : f32
    %68 = vector.broadcast %cst_26 : f32 to vector<8x8xf32>
    %69 = arith.mulf %67, %68 : vector<8x8xf32>
    %cst_27 = arith.constant dense<0xFF800000> : vector<8xf32>
    %70 = vector.multi_reduction <maximumf>, %69, %cst_27 [1] : vector<8x8xf32> to vector<8xf32>
    %71 = vector.shape_cast %70 : vector<8xf32> to vector<8x1xf32>
    %72 = vector.broadcast %71 : vector<8x1xf32> to vector<8x8xf32>
    %73 = arith.subf %69, %72 : vector<8x8xf32>
    %74 = math.exp %73 : vector<8x8xf32>
    %cst_28 = arith.constant dense<0.000000e+00> : vector<8xf32>
    %75 = vector.multi_reduction <add>, %74, %cst_28 [1] : vector<8x8xf32> to vector<8xf32>
    %76 = vector.shape_cast %75 : vector<8xf32> to vector<8x1xf32>
    %77 = vector.broadcast %76 : vector<8x1xf32> to vector<8x8xf32>
    %78 = arith.divf %74, %77 : vector<8x8xf32>
    %cst_29 = arith.constant dense<0.000000e+00> : vector<8x8xf32>
    %79 = tpu.matmul %78, %65, %cst_29 {dimension_numbers = #tpu.dot_dimension_numbers<[1], [0], [0], [1], [0, 0, 1, 1], [], []>} : vector<8x8xf32>, vector<8x8xf32>, vector<8x8xf32> -> vector<8x8xf32>
    %80 = tpu.concatenate %28, %45, %62, %79 in 1 : vector<8x8xf32>, vector<8x8xf32>, vector<8x8xf32>, vector<8x8xf32> -> vector<8x32xf32>
    %81 = vector.extract_strided_slice %10 {offsets = [8, 0], sizes = [8, 96], strides = [1, 1]} : vector<16x96xf32> to vector<8x96xf32>
    %82 = vector.extract_strided_slice %81 {offsets = [0, 0], sizes = [8, 8], strides = [1, 1]} : vector<8x96xf32> to vector<8x8xf32>
    %83 = vector.extract_strided_slice %81 {offsets = [0, 32], sizes = [8, 8], strides = [1, 1]} : vector<8x96xf32> to vector<8x8xf32>
    %84 = vector.extract_strided_slice %81 {offsets = [0, 64], sizes = [8, 8], strides = [1, 1]} : vector<8x96xf32> to vector<8x8xf32>
    %85 = tpu.transpose %83, [1, 0] : vector<8x8xf32> -> vector<8x8xf32>
    %cst_30 = arith.constant dense<0.000000e+00> : vector<8x8xf32>
    %86 = tpu.matmul %82, %85, %cst_30 {dimension_numbers = #tpu.dot_dimension_numbers<[1], [0], [0], [1], [0, 0, 1, 1], [], []>} : vector<8x8xf32>, vector<8x8xf32>, vector<8x8xf32> -> vector<8x8xf32>
    %cst_31 = arith.constant 0.353553385 : f32
    %87 = vector.broadcast %cst_31 : f32 to vector<8x8xf32>
    %88 = arith.mulf %86, %87 : vector<8x8xf32>
    %cst_32 = arith.constant dense<0xFF800000> : vector<8xf32>
    %89 = vector.multi_reduction <maximumf>, %88, %cst_32 [1] : vector<8x8xf32> to vector<8xf32>
    %90 = vector.shape_cast %89 : vector<8xf32> to vector<8x1xf32>
    %91 = vector.broadcast %90 : vector<8x1xf32> to vector<8x8xf32>
    %92 = arith.subf %88, %91 : vector<8x8xf32>
    %93 = math.exp %92 : vector<8x8xf32>
    %cst_33 = arith.constant dense<0.000000e+00> : vector<8xf32>
    %94 = vector.multi_reduction <add>, %93, %cst_33 [1] : vector<8x8xf32> to vector<8xf32>
    %95 = vector.shape_cast %94 : vector<8xf32> to vector<8x1xf32>
    %96 = vector.broadcast %95 : vector<8x1xf32> to vector<8x8xf32>
    %97 = arith.divf %93, %96 : vector<8x8xf32>
    %cst_34 = arith.constant dense<0.000000e+00> : vector<8x8xf32>
    %98 = tpu.matmul %97, %84, %cst_34 {dimension_numbers = #tpu.dot_dimension_numbers<[1], [0], [0], [1], [0, 0, 1, 1], [], []>} : vector<8x8xf32>, vector<8x8xf32>, vector<8x8xf32> -> vector<8x8xf32>
    %99 = vector.extract_strided_slice %81 {offsets = [0, 8], sizes = [8, 8], strides = [1, 1]} : vector<8x96xf32> to vector<8x8xf32>
    %100 = vector.extract_strided_slice %81 {offsets = [0, 40], sizes = [8, 8], strides = [1, 1]} : vector<8x96xf32> to vector<8x8xf32>
    %101 = vector.extract_strided_slice %81 {offsets = [0, 72], sizes = [8, 8], strides = [1, 1]} : vector<8x96xf32> to vector<8x8xf32>
    %102 = tpu.transpose %100, [1, 0] : vector<8x8xf32> -> vector<8x8xf32>
    %cst_35 = arith.constant dense<0.000000e+00> : vector<8x8xf32>
    %103 = tpu.matmul %99, %102, %cst_35 {dimension_numbers = #tpu.dot_dimension_numbers<[1], [0], [0], [1], [0, 0, 1, 1], [], []>} : vector<8x8xf32>, vector<8x8xf32>, vector<8x8xf32> -> vector<8x8xf32>
    %cst_36 = arith.constant 0.353553385 : f32
    %104 = vector.broadcast %cst_36 : f32 to vector<8x8xf32>
    %105 = arith.mulf %103, %104 : vector<8x8xf32>
    %cst_37 = arith.constant dense<0xFF800000> : vector<8xf32>
    %106 = vector.multi_reduction <maximumf>, %105, %cst_37 [1] : vector<8x8xf32> to vector<8xf32>
    %107 = vector.shape_cast %106 : vector<8xf32> to vector<8x1xf32>
    %108 = vector.broadcast %107 : vector<8x1xf32> to vector<8x8xf32>
    %109 = arith.subf %105, %108 : vector<8x8xf32>
    %110 = math.exp %109 : vector<8x8xf32>
    %cst_38 = arith.constant dense<0.000000e+00> : vector<8xf32>
    %111 = vector.multi_reduction <add>, %110, %cst_38 [1] : vector<8x8xf32> to vector<8xf32>
    %112 = vector.shape_cast %111 : vector<8xf32> to vector<8x1xf32>
    %113 = vector.broadcast %112 : vector<8x1xf32> to vector<8x8xf32>
    %114 = arith.divf %110, %113 : vector<8x8xf32>
    %cst_39 = arith.constant dense<0.000000e+00> : vector<8x8xf32>
    %115 = tpu.matmul %114, %101, %cst_39 {dimension_numbers = #tpu.dot_dimension_numbers<[1], [0], [0], [1], [0, 0, 1, 1], [], []>} : vector<8x8xf32>, vector<8x8xf32>, vector<8x8xf32> -> vector<8x8xf32>
    %116 = vector.extract_strided_slice %81 {offsets = [0, 16], sizes = [8, 8], strides = [1, 1]} : vector<8x96xf32> to vector<8x8xf32>
    %117 = vector.extract_strided_slice %81 {offsets = [0, 48], sizes = [8, 8], strides = [1, 1]} : vector<8x96xf32> to vector<8x8xf32>
    %118 = vector.extract_strided_slice %81 {offsets = [0, 80], sizes = [8, 8], strides = [1, 1]} : vector<8x96xf32> to vector<8x8xf32>
    %119 = tpu.transpose %117, [1, 0] : vector<8x8xf32> -> vector<8x8xf32>
    %cst_40 = arith.constant dense<0.000000e+00> : vector<8x8xf32>
    %120 = tpu.matmul %116, %119, %cst_40 {dimension_numbers = #tpu.dot_dimension_numbers<[1], [0], [0], [1], [0, 0, 1, 1], [], []>} : vector<8x8xf32>, vector<8x8xf32>, vector<8x8xf32> -> vector<8x8xf32>
    %cst_41 = arith.constant 0.353553385 : f32
    %121 = vector.broadcast %cst_41 : f32 to vector<8x8xf32>
    %122 = arith.mulf %120, %121 : vector<8x8xf32>
    %cst_42 = arith.constant dense<0xFF800000> : vector<8xf32>
    %123 = vector.multi_reduction <maximumf>, %122, %cst_42 [1] : vector<8x8xf32> to vector<8xf32>
    %124 = vector.shape_cast %123 : vector<8xf32> to vector<8x1xf32>
    %125 = vector.broadcast %124 : vector<8x1xf32> to vector<8x8xf32>
    %126 = arith.subf %122, %125 : vector<8x8xf32>
    %127 = math.exp %126 : vector<8x8xf32>
    %cst_43 = arith.constant dense<0.000000e+00> : vector<8xf32>
    %128 = vector.multi_reduction <add>, %127, %cst_43 [1] : vector<8x8xf32> to vector<8xf32>
    %129 = vector.shape_cast %128 : vector<8xf32> to vector<8x1xf32>
    %130 = vector.broadcast %129 : vector<8x1xf32> to vector<8x8xf32>
    %131 = arith.divf %127, %130 : vector<8x8xf32>
    %cst_44 = arith.constant dense<0.000000e+00> : vector<8x8xf32>
    %132 = tpu.matmul %131, %118, %cst_44 {dimension_numbers = #tpu.dot_dimension_numbers<[1], [0], [0], [1], [0, 0, 1, 1], [], []>} : vector<8x8xf32>, vector<8x8xf32>, vector<8x8xf32> -> vector<8x8xf32>
    %133 = vector.extract_strided_slice %81 {offsets = [0, 24], sizes = [8, 8], strides = [1, 1]} : vector<8x96xf32> to vector<8x8xf32>
    %134 = vector.extract_strided_slice %81 {offsets = [0, 56], sizes = [8, 8], strides = [1, 1]} : vector<8x96xf32> to vector<8x8xf32>
    %135 = vector.extract_strided_slice %81 {offsets = [0, 88], sizes = [8, 8], strides = [1, 1]} : vector<8x96xf32> to vector<8x8xf32>
    %136 = tpu.transpose %134, [1, 0] : vector<8x8xf32> -> vector<8x8xf32>
    %cst_45 = arith.constant dense<0.000000e+00> : vector<8x8xf32>
    %137 = tpu.matmul %133, %136, %cst_45 {dimension_numbers = #tpu.dot_dimension_numbers<[1], [0], [0], [1], [0, 0, 1, 1], [], []>} : vector<8x8xf32>, vector<8x8xf32>, vector<8x8xf32> -> vector<8x8xf32>
    %cst_46 = arith.constant 0.353553385 : f32
    %138 = vector.broadcast %cst_46 : f32 to vector<8x8xf32>
    %139 = arith.mulf %137, %138 : vector<8x8xf32>
    %cst_47 = arith.constant dense<0xFF800000> : vector<8xf32>
    %140 = vector.multi_reduction <maximumf>, %139, %cst_47 [1] : vector<8x8xf32> to vector<8xf32>
    %141 = vector.shape_cast %140 : vector<8xf32> to vector<8x1xf32>
    %142 = vector.broadcast %141 : vector<8x1xf32> to vector<8x8xf32>
    %143 = arith.subf %139, %142 : vector<8x8xf32>
    %144 = math.exp %143 : vector<8x8xf32>
    %cst_48 = arith.constant dense<0.000000e+00> : vector<8xf32>
    %145 = vector.multi_reduction <add>, %144, %cst_48 [1] : vector<8x8xf32> to vector<8xf32>
    %146 = vector.shape_cast %145 : vector<8xf32> to vector<8x1xf32>
    %147 = vector.broadcast %146 : vector<8x1xf32> to vector<8x8xf32>
    %148 = arith.divf %144, %147 : vector<8x8xf32>
    %cst_49 = arith.constant dense<0.000000e+00> : vector<8x8xf32>
    %149 = tpu.matmul %148, %135, %cst_49 {dimension_numbers = #tpu.dot_dimension_numbers<[1], [0], [0], [1], [0, 0, 1, 1], [], []>} : vector<8x8xf32>, vector<8x8xf32>, vector<8x8xf32> -> vector<8x8xf32>
    %150 = tpu.concatenate %98, %115, %132, %149 in 1 : vector<8x8xf32>, vector<8x8xf32>, vector<8x8xf32>, vector<8x8xf32> -> vector<8x32xf32>
    %151 = tpu.concatenate %80, %150 in 0 : vector<8x32xf32>, vector<8x32xf32> -> vector<16x32xf32>
    %c0_50 = arith.constant 0 : index
    %c0_51 = arith.constant 0 : index
    %152 = vector.load %arg5[%c0_50, %c0_51] : memref<32x32xf32, #tpu.memory_space<vmem>>, vector<32x32xf32>
    %cst_52 = arith.constant dense<0.000000e+00> : vector<16x32xf32>
    %153 = tpu.matmul %151, %152, %cst_52 {dimension_numbers = #tpu.dot_dimension_numbers<[1], [0], [0], [1], [0, 0, 1, 1], [], []>} : vector<16x32xf32>, vector<32x32xf32>, vector<16x32xf32> -> vector<16x32xf32>
    %c0_53 = arith.constant 0 : index
    %c0_54 = arith.constant 0 : index
    %154 = vector.load %arg6[%c0_53, %c0_54] : memref<1x32xf32, #tpu.memory_space<vmem>>, vector<1x32xf32>
    %155 = vector.broadcast %154 : vector<1x32xf32> to vector<16x32xf32>
    %156 = arith.addf %153, %155 : vector<16x32xf32>
    %157 = arith.addf %5, %156 : vector<16x32xf32>
    %cst_55 = arith.constant dense<0.000000e+00> : vector<16xf32>
    %158 = vector.multi_reduction <add>, %157, %cst_55 [1] : vector<16x32xf32> to vector<16xf32>
    %159 = vector.shape_cast %158 : vector<16xf32> to vector<16x1xf32>
    %cst_56 = arith.constant 3.200000e+01 : f32
    %160 = vector.broadcast %cst_56 : f32 to vector<16x1xf32>
    %161 = arith.divf %159, %160 : vector<16x1xf32>
    %162 = vector.broadcast %161 : vector<16x1xf32> to vector<16x32xf32>
    %163 = arith.subf %157, %162 : vector<16x32xf32>
    %164 = arith.mulf %163, %163 : vector<16x32xf32>
    %cst_57 = arith.constant dense<0.000000e+00> : vector<16xf32>
    %165 = vector.multi_reduction <add>, %164, %cst_57 [1] : vector<16x32xf32> to vector<16xf32>
    %166 = vector.shape_cast %165 : vector<16xf32> to vector<16x1xf32>
    %cst_58 = arith.constant 3.200000e+01 : f32
    %167 = vector.broadcast %cst_58 : f32 to vector<16x1xf32>
    %168 = arith.divf %166, %167 : vector<16x1xf32>
    %cst_59 = arith.constant 9.99999974E-6 : f32
    %169 = vector.broadcast %cst_59 : f32 to vector<16x1xf32>
    %170 = arith.addf %168, %169 : vector<16x1xf32>
    %171 = math.rsqrt %170 : vector<16x1xf32>
    %172 = vector.broadcast %171 : vector<16x1xf32> to vector<16x32xf32>
    %173 = arith.mulf %163, %172 : vector<16x32xf32>
    %c0_60 = arith.constant 0 : index
    %c0_61 = arith.constant 0 : index
    %174 = vector.load %arg7[%c0_60, %c0_61] : memref<1x32xf32, #tpu.memory_space<vmem>>, vector<1x32xf32>
    %175 = vector.broadcast %174 : vector<1x32xf32> to vector<16x32xf32>
    %176 = arith.mulf %173, %175 : vector<16x32xf32>
    %c0_62 = arith.constant 0 : index
    %c0_63 = arith.constant 0 : index
    %177 = vector.load %arg8[%c0_62, %c0_63] : memref<1x32xf32, #tpu.memory_space<vmem>>, vector<1x32xf32>
    %178 = vector.broadcast %177 : vector<1x32xf32> to vector<16x32xf32>
    %179 = arith.addf %176, %178 : vector<16x32xf32>
    %c0_64 = arith.constant 0 : index
    %c0_65 = arith.constant 0 : index
    %180 = vector.load %arg9[%c0_64, %c0_65] : memref<32x2048xf32, #tpu.memory_space<vmem>>, vector<32x2048xf32>
    %cst_66 = arith.constant dense<0.000000e+00> : vector<16x2048xf32>
    %181 = tpu.matmul %179, %180, %cst_66 {dimension_numbers = #tpu.dot_dimension_numbers<[1], [0], [0], [1], [0, 0, 1, 1], [], []>} : vector<16x32xf32>, vector<32x2048xf32>, vector<16x2048xf32> -> vector<16x2048xf32>
    %c0_67 = arith.constant 0 : index
    %c0_68 = arith.constant 0 : index
    %182 = vector.load %arg10[%c0_67, %c0_68] : memref<1x2048xf32, #tpu.memory_space<vmem>>, vector<1x2048xf32>
    %183 = vector.broadcast %182 : vector<1x2048xf32> to vector<16x2048xf32>
    %184 = arith.addf %181, %183 : vector<16x2048xf32>
    %cst_69 = arith.constant 0.000000e+00 : f32
    %185 = vector.broadcast %cst_69 : f32 to vector<16x2048xf32>
    %186 = arith.maximumf %184, %185 : vector<16x2048xf32>
    %c0_70 = arith.constant 0 : index
    %c0_71 = arith.constant 0 : index
    %187 = vector.load %arg11[%c0_70, %c0_71] : memref<2048x32xf32, #tpu.memory_space<vmem>>, vector<2048x32xf32>
    %cst_72 = arith.constant dense<0.000000e+00> : vector<16x32xf32>
    %188 = tpu.matmul %186, %187, %cst_72 {dimension_numbers = #tpu.dot_dimension_numbers<[1], [0], [0], [1], [0, 0, 1, 1], [], []>} : vector<16x2048xf32>, vector<2048x32xf32>, vector<16x32xf32> -> vector<16x32xf32>
    %c0_73 = arith.constant 0 : index
    %c0_74 = arith.constant 0 : index
    %189 = vector.load %arg12[%c0_73, %c0_74] : memref<1x32xf32, #tpu.memory_space<vmem>>, vector<1x32xf32>
    %190 = vector.broadcast %189 : vector<1x32xf32> to vector<16x32xf32>
    %191 = arith.addf %188, %190 : vector<16x32xf32>
    %192 = arith.addf %179, %191 : vector<16x32xf32>
    %cst_75 = arith.constant dense<0.000000e+00> : vector<16xf32>
    %193 = vector.multi_reduction <add>, %192, %cst_75 [1] : vector<16x32xf32> to vector<16xf32>
    %194 = vector.shape_cast %193 : vector<16xf32> to vector<16x1xf32>
    %cst_76 = arith.constant 3.200000e+01 : f32
    %195 = vector.broadcast %cst_76 : f32 to vector<16x1xf32>
    %196 = arith.divf %194, %195 : vector<16x1xf32>
    %197 = vector.broadcast %196 : vector<16x1xf32> to vector<16x32xf32>
    %198 = arith.subf %192, %197 : vector<16x32xf32>
    %199 = arith.mulf %198, %198 : vector<16x32xf32>
    %cst_77 = arith.constant dense<0.000000e+00> : vector<16xf32>
    %200 = vector.multi_reduction <add>, %199, %cst_77 [1] : vector<16x32xf32> to vector<16xf32>
    %201 = vector.shape_cast %200 : vector<16xf32> to vector<16x1xf32>
    %cst_78 = arith.constant 3.200000e+01 : f32
    %202 = vector.broadcast %cst_78 : f32 to vector<16x1xf32>
    %203 = arith.divf %201, %202 : vector<16x1xf32>
    %cst_79 = arith.constant 9.99999974E-6 : f32
    %204 = vector.broadcast %cst_79 : f32 to vector<16x1xf32>
    %205 = arith.addf %203, %204 : vector<16x1xf32>
    %206 = math.rsqrt %205 : vector<16x1xf32>
    %207 = vector.broadcast %206 : vector<16x1xf32> to vector<16x32xf32>
    %208 = arith.mulf %198, %207 : vector<16x32xf32>
    %c0_80 = arith.constant 0 : index
    %c0_81 = arith.constant 0 : index
    %209 = vector.load %arg13[%c0_80, %c0_81] : memref<1x32xf32, #tpu.memory_space<vmem>>, vector<1x32xf32>
    %210 = vector.broadcast %209 : vector<1x32xf32> to vector<16x32xf32>
    %211 = arith.mulf %208, %210 : vector<16x32xf32>
    %c0_82 = arith.constant 0 : index
    %c0_83 = arith.constant 0 : index
    %212 = vector.load %arg14[%c0_82, %c0_83] : memref<1x32xf32, #tpu.memory_space<vmem>>, vector<1x32xf32>
    %213 = vector.broadcast %212 : vector<1x32xf32> to vector<16x32xf32>
    %214 = arith.addf %211, %213 : vector<16x32xf32>
    %c0_84 = arith.constant 0 : index
    %c0_85 = arith.constant 0 : index
    %215 = vector.load %arg15[%c0_84, %c0_85] : memref<16x32xf32, #tpu.memory_space<vmem>>, vector<16x32xf32>
    tpu.vector_store %arg15[%c0_84, %c0_85], %214 {strides = array<i32>} : memref<16x32xf32, #tpu.memory_space<vmem>>, vector<16x32xf32>,
    return
  }
}

</mosaic_0001>

<llo_original>
// kernel: tpu_custom_call.1
$region0: #{tpu_custom_call.1}
  #allocation0 [shape = 'u32[]', space=smem, size = 0x4, offset = 0x4, fixed_abs, tag = 'smem constant byte address 0x4 - core index']
  #allocation1 [shape = 'u32[144,128]{1,0:T(1,128)}', space=vmem, size = 0x12000, scoped, tag = 'internal scratch']
  %s0 = inlined_call_operand.vmem [shape: f32[16,4], index: 0, kind: input, shape index: {}]
  %s1 = inlined_call_operand.vmem [shape: f32[4,32], index: 1, kind: input, shape index: {}]
  %s2 = inlined_call_operand.vmem [shape: f32[1,32], index: 2, kind: input, shape index: {}]
  %s3 = inlined_call_operand.vmem [shape: f32[32,96], index: 3, kind: input, shape index: {}]
  %s4 = inlined_call_operand.vmem [shape: f32[1,96], index: 4, kind: input, shape index: {}]
  %s5 = inlined_call_operand.vmem [shape: f32[32,32], index: 5, kind: input, shape index: {}]
  %s6 = inlined_call_operand.vmem [shape: f32[1,32], index: 6, kind: input, shape index: {}]
  %s7 = inlined_call_operand.vmem [shape: f32[1,32], index: 7, kind: input, shape index: {}]
  %s8 = inlined_call_operand.vmem [shape: f32[1,32], index: 8, kind: input, shape index: {}]
  %s9 = inlined_call_operand.vmem [shape: f32[32,2048], index: 9, kind: input, shape index: {}]
  %s10 = inlined_call_operand.vmem [shape: f32[1,2048], index: 10, kind: input, shape index: {}]
  %s11 = inlined_call_operand.vmem [shape: f32[2048,32], index: 11, kind: input, shape index: {}]
  %s12 = inlined_call_operand.vmem [shape: f32[1,32], index: 12, kind: input, shape index: {}]
  %s13 = inlined_call_operand.vmem [shape: f32[1,32], index: 13, kind: input, shape index: {}]
  %s14 = inlined_call_operand.vmem [shape: f32[1,32], index: 14, kind: input, shape index: {}]
  %s15 = inlined_call_operand.hbm [shape: f32[16,32], index: 15, kind: output, shape index: {}]
  %s16 = sld [smem:[#allocation0]]
  $region70: #{tpu_custom_call.1} parent=0
    _
  %s18 = ssub.s32 1, %s16
  %s19 = scalar_select 0, %s18, %s16
  $region1: #{tpu_custom_call.1} parent=0
    #allocation2 [shape = 'u8[8192]{0}', space=vmem, size = 0x2000, scoped, tag = 'output window, operand 0, single buffered']
    #allocation3 [shape = 's32[1]{0}', space=sflag, size = 0x4, scoped, tag = 'scoped memory for tpu_custom_call.1']
    %20 = vsyncpa [#allocation3], 0
    // Predicated region
    $region2: #{tpu_custom_call.1} parent=1 // pred_check
      _
    $region3: #{tpu_custom_call.1} parent=1 // pred_check_branch
      %22 = sbr.rel (0) target = $region5
    $region4: #{tpu_custom_call.1} parent=1 // pred_region
      _
    $region5: #{tpu_custom_call.1} parent=1 // pred_fallthru
      _
    // Predicated region
    $region6: #{tpu_custom_call.1} parent=1 // pred_check
      _
    $region7: #{tpu_custom_call.1} parent=1 // pred_check_branch
      %24 = sbr.rel (0) target = $region9
    $region8: #{tpu_custom_call.1} parent=1 // pred_region
      _
    $region9: #{tpu_custom_call.1} parent=1 // pred_fallthru
      _
    // Predicated region
    $region10: #{tpu_custom_call.1} parent=1 // pred_check
      _
    $region11: #{tpu_custom_call.1} parent=1 // pred_check_branch
      %26 = sbr.rel (0) target = $region13
    $region12: #{tpu_custom_call.1} parent=1 // pred_region
      _
    $region13: #{tpu_custom_call.1} parent=1 // pred_fallthru
      _
    // Predicated region
    $region14: #{tpu_custom_call.1} parent=1 // pred_check
      _
    $region15: #{tpu_custom_call.1} parent=1 // pred_check_branch
      %28 = sbr.rel (0) target = $region17
    $region16: #{tpu_custom_call.1} parent=1 // pred_region
      _
    $region17: #{tpu_custom_call.1} parent=1 // pred_fallthru
      _
    // Predicated region
    $region18: #{tpu_custom_call.1} parent=1 // pred_check
      _
    $region19: #{tpu_custom_call.1} parent=1 // pred_check_branch
      %30 = sbr.rel (0) target = $region21
    $region20: #{tpu_custom_call.1} parent=1 // pred_region
      _
    $region21: #{tpu_custom_call.1} parent=1 // pred_fallthru
      _
    // Predicated region
    $region22: #{tpu_custom_call.1} parent=1 // pred_check
      _
    $region23: #{tpu_custom_call.1} parent=1 // pred_check_branch
      %32 = sbr.rel (0) target = $region25
    $region24: #{tpu_custom_call.1} parent=1 // pred_region
      _
    $region25: #{tpu_custom_call.1} parent=1 // pred_fallthru
      _
    // Predicated region
    $region26: #{tpu_custom_call.1} parent=1 // pred_check
      _
    $region27: #{tpu_custom_call.1} parent=1 // pred_check_branch
      %34 = sbr.rel (0) target = $region29
    $region28: #{tpu_custom_call.1} parent=1 // pred_region
      _
    $region29: #{tpu_custom_call.1} parent=1 // pred_fallthru
      _
    // Predicated region
    $region30: #{tpu_custom_call.1} parent=1 // pred_check
      _
    $region31: #{tpu_custom_call.1} parent=1 // pred_check_branch
      %36 = sbr.rel (0) target = $region33
    $region32: #{tpu_custom_call.1} parent=1 // pred_region
      _
    $region33: #{tpu_custom_call.1} parent=1 // pred_fallthru
      _
    // Predicated region
    $region34: #{tpu_custom_call.1} parent=1 // pred_check
      _
    $region35: #{tpu_custom_call.1} parent=1 // pred_check_branch
      %38 = sbr.rel (0) target = $region37
    $region36: #{tpu_custom_call.1} parent=1 // pred_region
      _
    $region37: #{tpu_custom_call.1} parent=1 // pred_fallthru
      _
    // Predicated region
    $region38: #{tpu_custom_call.1} parent=1 // pred_check
      _
    $region39: #{tpu_custom_call.1} parent=1 // pred_check_branch
      %40 = sbr.rel (0) target = $region41
    $region40: #{tpu_custom_call.1} parent=1 // pred_region
      _
    $region41: #{tpu_custom_call.1} parent=1 // pred_fallthru
      _
    // Predicated region
    $region42: #{tpu_custom_call.1} parent=1 // pred_check
      _
    $region43: #{tpu_custom_call.1} parent=1 // pred_check_branch
      %42 = sbr.rel (0) target = $region45
    $region44: #{tpu_custom_call.1} parent=1 // pred_region
      _
    $region45: #{tpu_custom_call.1} parent=1 // pred_fallthru
      _
    // Predicated region
    $region46: #{tpu_custom_call.1} parent=1 // pred_check
      _
    $region47: #{tpu_custom_call.1} parent=1 // pred_check_branch
      %44 = sbr.rel (0) target = $region49
    $region48: #{tpu_custom_call.1} parent=1 // pred_region
      _
    $region49: #{tpu_custom_call.1} parent=1 // pred_fallthru
      _
    // Predicated region
    $region50: #{tpu_custom_call.1} parent=1 // pred_check
      _
    $region51: #{tpu_custom_call.1} parent=1 // pred_check_branch
      %46 = sbr.rel (0) target = $region53
    $region52: #{tpu_custom_call.1} parent=1 // pred_region
      _
    $region53: #{tpu_custom_call.1} parent=1 // pred_fallthru
      _
    // Predicated region
    $region54: #{tpu_custom_call.1} parent=1 // pred_check
      _
    $region55: #{tpu_custom_call.1} parent=1 // pred_check_branch
      %48 = sbr.rel (0) target = $region57
    $region56: #{tpu_custom_call.1} parent=1 // pred_region
      _
    $region57: #{tpu_custom_call.1} parent=1 // pred_fallthru
      _
    // Predicated region
    $region58: #{tpu_custom_call.1} parent=1 // pred_check
      _
    $region59: #{tpu_custom_call.1} parent=1 // pred_check_branch
      %50 = sbr.rel (0) target = $region61
    $region60: #{tpu_custom_call.1} parent=1 // pred_region
      _
    $region61: #{tpu_custom_call.1} parent=1 // pred_fallthru
      _
    %v51 = vld [vmem:[%s0] sm:$0xff]
    %v52 = vld [vmem:[%s0 + $0x8] sm:$0xff]
    %v53 = vld [vmem:[%s1] sm:$0xf]
    %v54 = vld [vmem:[%s2] sm:$0x1]
    %v56 = vlaneseq
    %v57 = vshrl.u32 %v56, 7
    %v58 = vsub.s32 0, %v57
    %v59 = vrot.slane %v54, %v58
    %vm61 = vcmask 31744
    %v63 = vsel %vm61, %v51, 0
    %v66 = vsel %vm61, %v52, 0
    %vm68 = vcmask 1043456
    %v70 = vsel %vm68, %v53, 0
    %72 = vmatprep.subr.mxu0 0.0
    %73 = vmatpush1.msra.mxu0 %v70
    %74 = vmatprep.subr.mxu0 0.0
    %75 = vmatpush1.msra.mxu0 0.0
    %76 = vmatprep.subr.mxu0 0.0
    %77 = vmatpush1.msra.mxu0 0.0
    %78 = vmatprep.subr.mxu0 0.0
    %79 = vmatpush1.msra.mxu0 0.0
    %80 = vmatprep.subr.mxu0 0.0
    %81 = vmatpush1.msra.mxu0 0.0
    %82 = vmatprep.subr.mxu0 0.0
    %83 = vmatpush1.msra.mxu0 0.0
    %84 = vmatprep.subr.mxu0 0.0
    %85 = vmatpush1.msra.mxu0 0.0
    %86 = vmatprep.subr.mxu0 0.0
    %87 = vmatpush1.msra.mxu0 0.0
    %88 = vmatprep.subr.mxu0 0.0
    %89 = vmatpush1.msra.mxu0 0.0
    %90 = vmatprep.subr.mxu0 0.0
    %91 = vmatpush1.msra.mxu0 0.0
    %92 = vmatprep.subr.mxu0 0.0
    %93 = vmatpush1.msra.mxu0 0.0
    %94 = vmatprep.subr.mxu0 0.0
    %95 = vmatpush1.msra.mxu0 0.0
    %96 = vmatprep.subr.mxu0 0.0
    %97 = vmatpush1.msra.mxu0 0.0
    %98 = vmatprep.subr.mxu0 0.0
    %99 = vmatpush1.msra.mxu0 0.0
    %100 = vmatprep.subr.mxu0 0.0
    %101 = vmatpush1.msra.mxu0 0.0
    %102 = vmatprep.subr.mxu0 0.0
    %103 = vmatpush1.msra.mxu0 0.0
    %104 = vmatprep.subr.mxu0 0.0
    %105 = vmatpush1.msra.mxu0 0.0
    %106 = vmatprep.subr.mxu0 0.0
    %107 = vmatpush1.msra.mxu0 0.0
    %108 = vmatprep.subr.mxu0 0.0
    %109 = vmatpush1.msra.mxu0 0.0
    %110 = vmatprep.subr.mxu0 0.0
    %111 = vmatpush1.msra.mxu0 0.0
    %112 = vmatprep.subr.mxu0 0.0
    %113 = vmatpush1.msra.mxu0 0.0
    %114 = vmatprep.subr.mxu0 0.0
    %115 = vmatpush1.msra.mxu0 0.0
    %116 = vmatprep.subr.mxu0 0.0
    %117 = vmatpush1.msra.mxu0 0.0
    %118 = vmatprep.subr.mxu0 0.0
    %119 = vmatpush1.msra.mxu0 0.0
    %120 = vmatprep.subr.mxu0 0.0
    %121 = vmatpush1.msra.mxu0 0.0
    %122 = vmatprep.subr.mxu0 0.0
    %123 = vmatpush1.msra.mxu0 0.0
    %124 = vmatprep.subr.mxu0 0.0
    %125 = vmatpush1.msra.mxu0 0.0
    %126 = vmatprep.subr.mxu0 0.0
    %127 = vmatpush1.msra.mxu0 0.0
    %128 = vmatprep.subr.mxu0 0.0
    %129 = vmatpush1.msra.mxu0 0.0
    %130 = vmatprep.subr.mxu0 0.0
    %131 = vmatpush1.msra.mxu0 0.0
    %132 = vmatprep.subr.mxu0 0.0
    %133 = vmatpush1.msra.mxu0 0.0
    %134 = vmatprep.subr.mxu0 0.0
    %135 = vmatpush1.msra.mxu0 0.0
    %136 = vmatprep.mubr.f32.mxu0 0.0
    %137 = vmatmul.mubr.f32.gmra.mrb[0].mxu0 %v63
    %v138 = vpop.f32.mrb[0].mxu0
    %v139 = vadd.f32 %v59, %v138
    %v140 = vpop.f32.mrb[0].mxu0
    %141 = vmatprep.mubr.f32.mxu0 0.0
    %142 = vmatmul.mubr.f32.gmra.mrb[0].mxu0 %v66
    %v143 = vpop.f32.mrb[0].mxu0
    %v144 = vadd.f32 %v59, %v143
    %v145 = vpop.f32.mrb[0].mxu0
    %146 = vdwg.mxu0
    %v147 = vld [vmem:[%s3] sm:$0xff]
    %v148 = vld [vmem:[%s3 + $0x8] sm:$0xff]
    %v149 = vld [vmem:[%s3 + $0x10] sm:$0xff]
    %v150 = vld [vmem:[%s3 + $0x18] sm:$0xff]
    %v151 = vld [vmem:[%s4] sm:$0x1]
    %v153 = vlaneseq
    %v154 = vshrl.u32 %v153, 7
    %v155 = vsub.s32 0, %v154
    %v156 = vrot.slane %v151, %v155
    %vm158 = vcmask 261120
    %v160 = vsel %vm158, %v139, 0
    %v163 = vsel %vm158, %v144, 0
    %165 = vmatprep.subr.mxu0 0.0
    %166 = vmatpush1.msra.mxu0 %v147
    %167 = vmatprep.subr.mxu0 0.0
    %168 = vmatpush1.msra.mxu0 %v148
    %169 = vmatprep.subr.mxu0 0.0
    %170 = vmatpush1.msra.mxu0 %v149
    %171 = vmatprep.subr.mxu0 0.0
    %172 = vmatpush1.msra.mxu0 %v150
    %173 = vmatprep.subr.mxu0 0.0
    %174 = vmatpush1.msra.mxu0 0.0
    %175 = vmatprep.subr.mxu0 0.0
    %176 = vmatpush1.msra.mxu0 0.0
    %177 = vmatprep.subr.mxu0 0.0
    %178 = vmatpush1.msra.mxu0 0.0
    %179 = vmatprep.subr.mxu0 0.0
    %180 = vmatpush1.msra.mxu0 0.0
    %181 = vmatprep.subr.mxu0 0.0
    %182 = vmatpush1.msra.mxu0 0.0
    %183 = vmatprep.subr.mxu0 0.0
    %184 = vmatpush1.msra.mxu0 0.0
    %185 = vmatprep.subr.mxu0 0.0
    %186 = vmatpush1.msra.mxu0 0.0
    %187 = vmatprep.subr.mxu0 0.0
    %188 = vmatpush1.msra.mxu0 0.0
    %189 = vmatprep.subr.mxu0 0.0
    %190 = vmatpush1.msra.mxu0 0.0
    %191 = vmatprep.subr.mxu0 0.0
    %192 = vmatpush1.msra.mxu0 0.0
    %193 = vmatprep.subr.mxu0 0.0
    %194 = vmatpush1.msra.mxu0 0.0
    %195 = vmatprep.subr.mxu0 0.0
    %196 = vmatpush1.msra.mxu0 0.0
    %197 = vmatprep.subr.mxu0 0.0
    %198 = vmatpush1.msra.mxu0 0.0
    %199 = vmatprep.subr.mxu0 0.0
    %200 = vmatpush1.msra.mxu0 0.0
    %201 = vmatprep.subr.mxu0 0.0
    %202 = vmatpush1.msra.mxu0 0.0
    %203 = vmatprep.subr.mxu0 0.0
    %204 = vmatpush1.msra.mxu0 0.0
    %205 = vmatprep.subr.mxu0 0.0
    %206 = vmatpush1.msra.mxu0 0.0
    %207 = vmatprep.subr.mxu0 0.0
    %208 = vmatpush1.msra.mxu0 0.0
    %209 = vmatprep.subr.mxu0 0.0
    %210 = vmatpush1.msra.mxu0 0.0
    %211 = vmatprep.subr.mxu0 0.0
    %212 = vmatpush1.msra.mxu0 0.0
    %213 = vmatprep.subr.mxu0 0.0
    %214 = vmatpush1.msra.mxu0 0.0
    %215 = vmatprep.subr.mxu0 0.0
    %216 = vmatpush1.msra.mxu0 0.0
    %217 = vmatprep.subr.mxu0 0.0
    %218 = vmatpush1.msra.mxu0 0.0
    %219 = vmatprep.subr.mxu0 0.0
    %220 = vmatpush1.msra.mxu0 0.0
    %221 = vmatprep.subr.mxu0 0.0
    %222 = vmatpush1.msra.mxu0 0.0
    %223 = vmatprep.subr.mxu0 0.0
    %224 = vmatpush1.msra.mxu0 0.0
    %225 = vmatprep.subr.mxu0 0.0
    %226 = vmatpush1.msra.mxu0 0.0
    %227 = vmatprep.subr.mxu0 0.0
    %228 = vmatpush1.msra.mxu0 0.0
    %229 = vmatprep.mubr.f32.mxu0 0.0
    %230 = vmatmul.mubr.f32.gmra.mrb[0].mxu0 %v160
    %v231 = vpop.f32.mrb[0].mxu0
    %v232 = vadd.f32 %v156, %v231
    %v233 = vpop.f32.mrb[0].mxu0
    %234 = vmatprep.mubr.f32.mxu0 0.0
    %235 = vmatmul.mubr.f32.gmra.mrb[0].mxu0 %v163
    %v236 = vpop.f32.mrb[0].mxu0
    %v237 = vadd.f32 %v156, %v236
    %v238 = vpop.f32.mrb[0].mxu0
    %239 = vdwg.mxu0
    %241 = vrot.lane.b32.xlu0 %v232, 96
    %v242 = vpop.permute.xlu0 %241
    %vm243 = vcmask 64512
    %v244 = vsel %vm243, %v232, 0
    %v246 = vsel %vm243, %v242, 0
    %248 = vmatprep.subr.mxu0 0.0
    %249 = vmatpush1.xpose.msra.mxu0 %v246
    %250 = vmatprep.subr.mxu0 0.0
    %251 = vmatpush1.xpose.msra.mxu0 0.0
    %252 = vmatprep.subr.mxu0 0.0
    %253 = vmatpush1.xpose.msra.mxu0 0.0
    %254 = vmatprep.subr.mxu0 0.0
    %255 = vmatpush1.xpose.msra.mxu0 0.0
    %256 = vmatprep.subr.mxu0 0.0
    %257 = vmatpush1.xpose.msra.mxu0 0.0
    %258 = vmatprep.subr.mxu0 0.0
    %259 = vmatpush1.xpose.msra.mxu0 0.0
    %260 = vmatprep.subr.mxu0 0.0
    %261 = vmatpush1.xpose.msra.mxu0 0.0
    %262 = vmatprep.subr.mxu0 0.0
    %263 = vmatpush1.xpose.msra.mxu0 0.0
    %264 = vmatprep.subr.mxu0 0.0
    %265 = vmatpush1.xpose.msra.mxu0 0.0
    %266 = vmatprep.subr.mxu0 0.0
    %267 = vmatpush1.xpose.msra.mxu0 0.0
    %268 = vmatprep.subr.mxu0 0.0
    %269 = vmatpush1.xpose.msra.mxu0 0.0
    %270 = vmatprep.subr.mxu0 0.0
    %271 = vmatpush1.xpose.msra.mxu0 0.0
    %272 = vmatprep.subr.mxu0 0.0
    %273 = vmatpush1.xpose.msra.mxu0 0.0
    %274 = vmatprep.subr.mxu0 0.0
    %275 = vmatpush1.xpose.msra.mxu0 0.0
    %276 = vmatprep.subr.mxu0 0.0
    %277 = vmatpush1.xpose.msra.mxu0 0.0
    %278 = vmatprep.subr.mxu0 0.0
    %279 = vmatpush1.xpose.msra.mxu0 0.0
    %280 = vmatprep.subr.mxu0 0.0
    %281 = vmatpush1.xpose.msra.mxu0 0.0
    %282 = vmatprep.subr.mxu0 0.0
    %283 = vmatpush1.xpose.msra.mxu0 0.0
    %284 = vmatprep.subr.mxu0 0.0
    %285 = vmatpush1.xpose.msra.mxu0 0.0
    %286 = vmatprep.subr.mxu0 0.0
    %287 = vmatpush1.xpose.msra.mxu0 0.0
    %288 = vmatprep.subr.mxu0 0.0
    %289 = vmatpush1.xpose.msra.mxu0 0.0
    %290 = vmatprep.subr.mxu0 0.0
    %291 = vmatpush1.xpose.msra.mxu0 0.0
    %292 = vmatprep.subr.mxu0 0.0
    %293 = vmatpush1.xpose.msra.mxu0 0.0
    %294 = vmatprep.subr.mxu0 0.0
    %295 = vmatpush1.xpose.msra.mxu0 0.0
    %296 = vmatprep.subr.mxu0 0.0
    %297 = vmatpush1.xpose.msra.mxu0 0.0
    %298 = vmatprep.subr.mxu0 0.0
    %299 = vmatpush1.xpose.msra.mxu0 0.0
    %300 = vmatprep.subr.mxu0 0.0
    %301 = vmatpush1.xpose.msra.mxu0 0.0
    %302 = vmatprep.subr.mxu0 0.0
    %303 = vmatpush1.xpose.msra.mxu0 0.0
    %304 = vmatprep.subr.mxu0 0.0
    %305 = vmatpush1.xpose.msra.mxu0 0.0
    %306 = vmatprep.subr.mxu0 0.0
    %307 = vmatpush1.xpose.msra.mxu0 0.0
    %308 = vmatprep.subr.mxu0 0.0
    %309 = vmatpush1.xpose.msra.mxu0 0.0
    %310 = vmatprep.subr.mxu0 0.0
    %311 = vmatpush1.xpose.msra.mxu0 0.0
    %312 = vmatprep.mubr.f32.mxu0 0.0
    %313 = vmatmul.mubr.f32.gmra.mrb[0].mxu0 %v244
    %v314 = vpop.f32.mrb[0].mxu0
    %v315 = vadd.f32 0.0, %v314
    %v316 = vpop.f32.mrb[0].mxu0
    %317 = vdwg.mxu0
    %v318 = vmul.f32 %v315, 0.35355338
    %v319 = vsel %vm243, %v318, -inf
    %320 = vmax.xlane.f32.xlu0 %v319
    %v321 = vpop.xlane.xlu0 %320
    %v322 = vsub.f32 %v318, %v321
    %v323 = vmul.f32 %v322, 1.442695
    %v324 = vpow.pop %v323
    %v325 = vsel %vm243, %v324, 0.0
    %326 = vadd.xlane.f32.xlu0 %v325
    %v327 = vpop.xlane.xlu0 %326
    %v328 = vrcp.pop %v327
    %v329 = vmul.f32 %v324, %v328
    %330 = vrot.lane.b32.xlu0 %v232, 64
    %v331 = vpop.permute.xlu0 %330
    %v334 = vsel %vm243, %v329, 0
    %336 = vmatprep.subr.mxu0 0.0
    %337 = vmatpush1.msra.mxu0 %v331
    %338 = vmatprep.subr.mxu0 0.0
    %339 = vmatpush1.msra.mxu0 0.0
    %340 = vmatprep.subr.mxu0 0.0
    %341 = vmatpush1.msra.mxu0 0.0
    %342 = vmatprep.subr.mxu0 0.0
    %343 = vmatpush1.msra.mxu0 0.0
    %344 = vmatprep.subr.mxu0 0.0
    %345 = vmatpush1.msra.mxu0 0.0
    %346 = vmatprep.subr.mxu0 0.0
    %347 = vmatpush1.msra.mxu0 0.0
    %348 = vmatprep.subr.mxu0 0.0
    %349 = vmatpush1.msra.mxu0 0.0
    %350 = vmatprep.subr.mxu0 0.0
    %351 = vmatpush1.msra.mxu0 0.0
    %352 = vmatprep.subr.mxu0 0.0
    %353 = vmatpush1.msra.mxu0 0.0
    %354 = vmatprep.subr.mxu0 0.0
    %355 = vmatpush1.msra.mxu0 0.0
    %356 = vmatprep.subr.mxu0 0.0
    %357 = vmatpush1.msra.mxu0 0.0
    %358 = vmatprep.subr.mxu0 0.0
    %359 = vmatpush1.msra.mxu0 0.0
    %360 = vmatprep.subr.mxu0 0.0
    %361 = vmatpush1.msra.mxu0 0.0
    %362 = vmatprep.subr.mxu0 0.0
    %363 = vmatpush1.msra.mxu0 0.0
    %364 = vmatprep.subr.mxu0 0.0
    %365 = vmatpush1.msra.mxu0 0.0
    %366 = vmatprep.subr.mxu0 0.0
    %367 = vmatpush1.msra.mxu0 0.0
    %368 = vmatprep.subr.mxu0 0.0
    %369 = vmatpush1.msra.mxu0 0.0
    %370 = vmatprep.subr.mxu0 0.0
    %371 = vmatpush1.msra.mxu0 0.0
    %372 = vmatprep.subr.mxu0 0.0
    %373 = vmatpush1.msra.mxu0 0.0
    %374 = vmatprep.subr.mxu0 0.0
    %375 = vmatpush1.msra.mxu0 0.0
    %376 = vmatprep.subr.mxu0 0.0
    %377 = vmatpush1.msra.mxu0 0.0
    %378 = vmatprep.subr.mxu0 0.0
    %379 = vmatpush1.msra.mxu0 0.0
    %380 = vmatprep.subr.mxu0 0.0
    %381 = vmatpush1.msra.mxu0 0.0
    %382 = vmatprep.subr.mxu0 0.0
    %383 = vmatpush1.msra.mxu0 0.0
    %384 = vmatprep.subr.mxu0 0.0
    %385 = vmatpush1.msra.mxu0 0.0
    %386 = vmatprep.subr.mxu0 0.0
    %387 = vmatpush1.msra.mxu0 0.0
    %388 = vmatprep.subr.mxu0 0.0
    %389 = vmatpush1.msra.mxu0 0.0
    %390 = vmatprep.subr.mxu0 0.0
    %391 = vmatpush1.msra.mxu0 0.0
    %392 = vmatprep.subr.mxu0 0.0
    %393 = vmatpush1.msra.mxu0 0.0
    %394 = vmatprep.subr.mxu0 0.0
    %395 = vmatpush1.msra.mxu0 0.0
    %396 = vmatprep.subr.mxu0 0.0
    %397 = vmatpush1.msra.mxu0 0.0
    %398 = vmatprep.subr.mxu0 0.0
    %399 = vmatpush1.msra.mxu0 0.0
    %400 = vmatprep.mubr.f32.mxu0 0.0
    %401 = vmatmul.mubr.f32.gmra.mrb[0].mxu0 %v334
    %v402 = vpop.f32.mrb[0].mxu0
    %v403 = vadd.f32 0.0, %v402
    %v404 = vpop.f32.mrb[0].mxu0
    %405 = vdwg.mxu0
    %406 = vrot.lane.b32.xlu0 %v232, 120
    %v407 = vpop.permute.xlu0 %406
    %408 = vrot.lane.b32.xlu0 %v232, 88
    %v409 = vpop.permute.xlu0 %408
    %v410 = vsel %vm243, %v407, 0
    %v412 = vsel %vm243, %v409, 0
    %414 = vmatprep.subr.mxu0 0.0
    %415 = vmatpush1.xpose.msra.mxu0 %v412
    %416 = vmatprep.subr.mxu0 0.0
    %417 = vmatpush1.xpose.msra.mxu0 0.0
    %418 = vmatprep.subr.mxu0 0.0
    %419 = vmatpush1.xpose.msra.mxu0 0.0
    %420 = vmatprep.subr.mxu0 0.0
    %421 = vmatpush1.xpose.msra.mxu0 0.0
    %422 = vmatprep.subr.mxu0 0.0
    %423 = vmatpush1.xpose.msra.mxu0 0.0
    %424 = vmatprep.subr.mxu0 0.0
    %425 = vmatpush1.xpose.msra.mxu0 0.0
    %426 = vmatprep.subr.mxu0 0.0
    %427 = vmatpush1.xpose.msra.mxu0 0.0
    %428 = vmatprep.subr.mxu0 0.0
    %429 = vmatpush1.xpose.msra.mxu0 0.0
    %430 = vmatprep.subr.mxu0 0.0
    %431 = vmatpush1.xpose.msra.mxu0 0.0
    %432 = vmatprep.subr.mxu0 0.0
    %433 = vmatpush1.xpose.msra.mxu0 0.0
    %434 = vmatprep.subr.mxu0 0.0
    %435 = vmatpush1.xpose.msra.mxu0 0.0
    %436 = vmatprep.subr.mxu0 0.0
    %437 = vmatpush1.xpose.msra.mxu0 0.0
    %438 = vmatprep.subr.mxu0 0.0
    %439 = vmatpush1.xpose.msra.mxu0 0.0
    %440 = vmatprep.subr.mxu0 0.0
    %441 = vmatpush1.xpose.msra.mxu0 0.0
    %442 = vmatprep.subr.mxu0 0.0
    %443 = vmatpush1.xpose.msra.mxu0 0.0
    %444 = vmatprep.subr.mxu0 0.0
    %445 = vmatpush1.xpose.msra.mxu0 0.0
    %446 = vmatprep.subr.mxu0 0.0
    %447 = vmatpush1.xpose.msra.mxu0 0.0
    %448 = vmatprep.subr.mxu0 0.0
    %449 = vmatpush1.xpose.msra.mxu0 0.0
    %450 = vmatprep.subr.mxu0 0.0
    %451 = vmatpush1.xpose.msra.mxu0 0.0
    %452 = vmatprep.subr.mxu0 0.0
    %453 = vmatpush1.xpose.msra.mxu0 0.0
    %454 = vmatprep.subr.mxu0 0.0
    %455 = vmatpush1.xpose.msra.mxu0 0.0
    %456 = vmatprep.subr.mxu0 0.0
    %457 = vmatpush1.xpose.msra.mxu0 0.0
    %458 = vmatprep.subr.mxu0 0.0
    %459 = vmatpush1.xpose.msra.mxu0 0.0
    %460 = vmatprep.subr.mxu0 0.0
    %461 = vmatpush1.xpose.msra.mxu0 0.0
    %462 = vmatprep.subr.mxu0 0.0
    %463 = vmatpush1.xpose.msra.mxu0 0.0
    %464 = vmatprep.subr.mxu0 0.0
    %465 = vmatpush1.xpose.msra.mxu0 0.0
    %466 = vmatprep.subr.mxu0 0.0
    %467 = vmatpush1.xpose.msra.mxu0 0.0
    %468 = vmatprep.subr.mxu0 0.0
    %469 = vmatpush1.xpose.msra.mxu0 0.0
    %470 = vmatprep.subr.mxu0 0.0
    %471 = vmatpush1.xpose.msra.mxu0 0.0
    %472 = vmatprep.subr.mxu0 0.0
    %473 = vmatpush1.xpose.msra.mxu0 0.0
    %474 = vmatprep.subr.mxu0 0.0
    %475 = vmatpush1.xpose.msra.mxu0 0.0
    %476 = vmatprep.subr.mxu0 0.0
    %477 = vmatpush1.xpose.msra.mxu0 0.0
    %478 = vmatprep.mubr.f32.mxu0 0.0
    %479 = vmatmul.mubr.f32.gmra.mrb[0].mxu0 %v410
    %v480 = vpop.f32.mrb[0].mxu0
    %v481 = vadd.f32 0.0, %v480
    %v482 = vpop.f32.mrb[0].mxu0
    %483 = vdwg.mxu0
    %v484 = vmul.f32 %v481, 0.35355338
    %v485 = vsel %vm243, %v484, -inf
    %486 = vmax.xlane.f32.xlu0 %v485
    %v487 = vpop.xlane.xlu0 %486
    %v488 = vsub.f32 %v484, %v487
    %v489 = vmul.f32 %v488, 1.442695
    %v490 = vpow.pop %v489
    %v491 = vsel %vm243, %v490, 0.0
    %492 = vadd.xlane.f32.xlu0 %v491
    %v493 = vpop.xlane.xlu0 %492
    %v494 = vrcp.pop %v493
    %v495 = vmul.f32 %v490, %v494
    %496 = vrot.lane.b32.xlu0 %v232, 56
    %v497 = vpop.permute.xlu0 %496
    %v500 = vsel %vm243, %v495, 0
    %502 = vmatprep.subr.mxu0 0.0
    %503 = vmatpush1.msra.mxu0 %v497
    %504 = vmatprep.subr.mxu0 0.0
    %505 = vmatpush1.msra.mxu0 0.0
    %506 = vmatprep.subr.mxu0 0.0
    %507 = vmatpush1.msra.mxu0 0.0
    %508 = vmatprep.subr.mxu0 0.0
    %509 = vmatpush1.msra.mxu0 0.0
    %510 = vmatprep.subr.mxu0 0.0
    %511 = vmatpush1.msra.mxu0 0.0
    %512 = vmatprep.subr.mxu0 0.0
    %513 = vmatpush1.msra.mxu0 0.0
    %514 = vmatprep.subr.mxu0 0.0
    %515 = vmatpush1.msra.mxu0 0.0
    %516 = vmatprep.subr.mxu0 0.0
    %517 = vmatpush1.msra.mxu0 0.0
    %518 = vmatprep.subr.mxu0 0.0
    %519 = vmatpush1.msra.mxu0 0.0
    %520 = vmatprep.subr.mxu0 0.0
    %521 = vmatpush1.msra.mxu0 0.0
    %522 = vmatprep.subr.mxu0 0.0
    %523 = vmatpush1.msra.mxu0 0.0
    %524 = vmatprep.subr.mxu0 0.0
    %525 = vmatpush1.msra.mxu0 0.0
    %526 = vmatprep.subr.mxu0 0.0
    %527 = vmatpush1.msra.mxu0 0.0
    %528 = vmatprep.subr.mxu0 0.0
    %529 = vmatpush1.msra.mxu0 0.0
    %530 = vmatprep.subr.mxu0 0.0
    %531 = vmatpush1.msra.mxu0 0.0
    %532 = vmatprep.subr.mxu0 0.0
    %533 = vmatpush1.msra.mxu0 0.0
    %534 = vmatprep.subr.mxu0 0.0
    %535 = vmatpush1.msra.mxu0 0.0
    %536 = vmatprep.subr.mxu0 0.0
    %537 = vmatpush1.msra.mxu0 0.0
    %538 = vmatprep.subr.mxu0 0.0
    %539 = vmatpush1.msra.mxu0 0.0
    %540 = vmatprep.subr.mxu0 0.0
    %541 = vmatpush1.msra.mxu0 0.0
    %542 = vmatprep.subr.mxu0 0.0
    %543 = vmatpush1.msra.mxu0 0.0
    %544 = vmatprep.subr.mxu0 0.0
    %545 = vmatpush1.msra.mxu0 0.0
    %546 = vmatprep.subr.mxu0 0.0
    %547 = vmatpush1.msra.mxu0 0.0
    %548 = vmatprep.subr.mxu0 0.0
    %549 = vmatpush1.msra.mxu0 0.0
    %550 = vmatprep.subr.mxu0 0.0
    %551 = vmatpush1.msra.mxu0 0.0
    %552 = vmatprep.subr.mxu0 0.0
    %553 = vmatpush1.msra.mxu0 0.0
    %554 = vmatprep.subr.mxu0 0.0
    %555 = vmatpush1.msra.mxu0 0.0
    %556 = vmatprep.subr.mxu0 0.0
    %557 = vmatpush1.msra.mxu0 0.0
    %558 = vmatprep.subr.mxu0 0.0
    %559 = vmatpush1.msra.mxu0 0.0
    %560 = vmatprep.subr.mxu0 0.0
    %561 = vmatpush1.msra.mxu0 0.0
    %562 = vmatprep.subr.mxu0 0.0
    %563 = vmatpush1.msra.mxu0 0.0
    %564 = vmatprep.subr.mxu0 0.0
    %565 = vmatpush1.msra.mxu0 0.0
    %566 = vmatprep.mubr.f32.mxu0 0.0
    %567 = vmatmul.mubr.f32.gmra.mrb[0].mxu0 %v500
    %v568 = vpop.f32.mrb[0].mxu0
    %v569 = vadd.f32 0.0, %v568
    %v570 = vpop.f32.mrb[0].mxu0
    %571 = vdwg.mxu0
    %572 = vrot.lane.b32.xlu0 %v232, 112
    %v573 = vpop.permute.xlu0 %572
    %574 = vrot.lane.b32.xlu0 %v232, 80
    %v575 = vpop.permute.xlu0 %574
    %v576 = vsel %vm243, %v573, 0
    %v578 = vsel %vm243, %v575, 0
    %580 = vmatprep.subr.mxu0 0.0
    %581 = vmatpush1.xpose.msra.mxu0 %v578
    %582 = vmatprep.subr.mxu0 0.0
    %583 = vmatpush1.xpose.msra.mxu0 0.0
    %584 = vmatprep.subr.mxu0 0.0
    %585 = vmatpush1.xpose.msra.mxu0 0.0
    %586 = vmatprep.subr.mxu0 0.0
    %587 = vmatpush1.xpose.msra.mxu0 0.0
    %588 = vmatprep.subr.mxu0 0.0
    %589 = vmatpush1.xpose.msra.mxu0 0.0
    %590 = vmatprep.subr.mxu0 0.0
    %591 = vmatpush1.xpose.msra.mxu0 0.0
    %592 = vmatprep.subr.mxu0 0.0
    %593 = vmatpush1.xpose.msra.mxu0 0.0
    %594 = vmatprep.subr.mxu0 0.0
    %595 = vmatpush1.xpose.msra.mxu0 0.0
    %596 = vmatprep.subr.mxu0 0.0
    %597 = vmatpush1.xpose.msra.mxu0 0.0
    %598 = vmatprep.subr.mxu0 0.0
    %599 = vmatpush1.xpose.msra.mxu0 0.0
    %600 = vmatprep.subr.mxu0 0.0
    %601 = vmatpush1.xpose.msra.mxu0 0.0
    %602 = vmatprep.subr.mxu0 0.0
    %603 = vmatpush1.xpose.msra.mxu0 0.0
    %604 = vmatprep.subr.mxu0 0.0
    %605 = vmatpush1.xpose.msra.mxu0 0.0
    %606 = vmatprep.subr.mxu0 0.0
    %607 = vmatpush1.xpose.msra.mxu0 0.0
    %608 = vmatprep.subr.mxu0 0.0
    %609 = vmatpush1.xpose.msra.mxu0 0.0
    %610 = vmatprep.subr.mxu0 0.0
    %611 = vmatpush1.xpose.msra.mxu0 0.0
    %612 = vmatprep.subr.mxu0 0.0
    %613 = vmatpush1.xpose.msra.mxu0 0.0
    %614 = vmatprep.subr.mxu0 0.0
    %615 = vmatpush1.xpose.msra.mxu0 0.0
    %616 = vmatprep.subr.mxu0 0.0
    %617 = vmatpush1.xpose.msra.mxu0 0.0
    %618 = vmatprep.subr.mxu0 0.0
    %619 = vmatpush1.xpose.msra.mxu0 0.0
    %620 = vmatprep.subr.mxu0 0.0
    %621 = vmatpush1.xpose.msra.mxu0 0.0
    %622 = vmatprep.subr.mxu0 0.0
    %623 = vmatpush1.xpose.msra.mxu0 0.0
    %624 = vmatprep.subr.mxu0 0.0
    %625 = vmatpush1.xpose.msra.mxu0 0.0
    %626 = vmatprep.subr.mxu0 0.0
    %627 = vmatpush1.xpose.msra.mxu0 0.0
    %628 = vmatprep.subr.mxu0 0.0
    %629 = vmatpush1.xpose.msra.mxu0 0.0
    %630 = vmatprep.subr.mxu0 0.0
    %631 = vmatpush1.xpose.msra.mxu0 0.0
    %632 = vmatprep.subr.mxu0 0.0
    %633 = vmatpush1.xpose.msra.mxu0 0.0
    %634 = vmatprep.subr.mxu0 0.0
    %635 = vmatpush1.xpose.msra.mxu0 0.0
    %636 = vmatprep.subr.mxu0 0.0
    %637 = vmatpush1.xpose.msra.mxu0 0.0
    %638 = vmatprep.subr.mxu0 0.0
    %639 = vmatpush1.xpose.msra.mxu0 0.0
    %640 = vmatprep.subr.mxu0 0.0
    %641 = vmatpush1.xpose.msra.mxu0 0.0
    %642 = vmatprep.subr.mxu0 0.0
    %643 = vmatpush1.xpose.msra.mxu0 0.0
    %644 = vmatprep.mubr.f32.mxu0 0.0
    %645 = vmatmul.mubr.f32.gmra.mrb[0].mxu0 %v576
    %v646 = vpop.f32.mrb[0].mxu0
    %v647 = vadd.f32 0.0, %v646
    %v648 = vpop.f32.mrb[0].mxu0
    %649 = vdwg.mxu0
    %v650 = vmul.f32 %v647, 0.35355338
    %v651 = vsel %vm243, %v650, -inf
    %652 = vmax.xlane.f32.xlu0 %v651
    %v653 = vpop.xlane.xlu0 %652
    %v654 = vsub.f32 %v650, %v653
    %v655 = vmul.f32 %v654, 1.442695
    %v656 = vpow.pop %v655
    %v657 = vsel %vm243, %v656, 0.0
    %658 = vadd.xlane.f32.xlu0 %v657
    %v659 = vpop.xlane.xlu0 %658
    %v660 = vrcp.pop %v659
    %v661 = vmul.f32 %v656, %v660
    %662 = vrot.lane.b32.xlu0 %v232, 48
    %v663 = vpop.permute.xlu0 %662
    %v666 = vsel %vm243, %v661, 0
    %668 = vmatprep.subr.mxu0 0.0
    %669 = vmatpush1.msra.mxu0 %v663
    %670 = vmatprep.subr.mxu0 0.0
    %671 = vmatpush1.msra.mxu0 0.0
    %672 = vmatprep.subr.mxu0 0.0
    %673 = vmatpush1.msra.mxu0 0.0
    %674 = vmatprep.subr.mxu0 0.0
    %675 = vmatpush1.msra.mxu0 0.0
    %676 = vmatprep.subr.mxu0 0.0
    %677 = vmatpush1.msra.mxu0 0.0
    %678 = vmatprep.subr.mxu0 0.0
    %679 = vmatpush1.msra.mxu0 0.0
    %680 = vmatprep.subr.mxu0 0.0
    %681 = vmatpush1.msra.mxu0 0.0
    %682 = vmatprep.subr.mxu0 0.0
    %683 = vmatpush1.msra.mxu0 0.0
    %684 = vmatprep.subr.mxu0 0.0
    %685 = vmatpush1.msra.mxu0 0.0
    %686 = vmatprep.subr.mxu0 0.0
    %687 = vmatpush1.msra.mxu0 0.0
    %688 = vmatprep.subr.mxu0 0.0
    %689 = vmatpush1.msra.mxu0 0.0
    %690 = vmatprep.subr.mxu0 0.0
    %691 = vmatpush1.msra.mxu0 0.0
    %692 = vmatprep.subr.mxu0 0.0
    %693 = vmatpush1.msra.mxu0 0.0
    %694 = vmatprep.subr.mxu0 0.0
    %695 = vmatpush1.msra.mxu0 0.0
    %696 = vmatprep.subr.mxu0 0.0
    %697 = vmatpush1.msra.mxu0 0.0
    %698 = vmatprep.subr.mxu0 0.0
    %699 = vmatpush1.msra.mxu0 0.0
    %700 = vmatprep.subr.mxu0 0.0
    %701 = vmatpush1.msra.mxu0 0.0
    %702 = vmatprep.subr.mxu0 0.0
    %703 = vmatpush1.msra.mxu0 0.0
    %704 = vmatprep.subr.mxu0 0.0
    %705 = vmatpush1.msra.mxu0 0.0
    %706 = vmatprep.subr.mxu0 0.0
    %707 = vmatpush1.msra.mxu0 0.0
    %708 = vmatprep.subr.mxu0 0.0
    %709 = vmatpush1.msra.mxu0 0.0
    %710 = vmatprep.subr.mxu0 0.0
    %711 = vmatpush1.msra.mxu0 0.0
    %712 = vmatprep.subr.mxu0 0.0
    %713 = vmatpush1.msra.mxu0 0.0
    %714 = vmatprep.subr.mxu0 0.0
    %715 = vmatpush1.msra.mxu0 0.0
    %716 = vmatprep.subr.mxu0 0.0
    %717 = vmatpush1.msra.mxu0 0.0
    %718 = vmatprep.subr.mxu0 0.0
    %719 = vmatpush1.msra.mxu0 0.0
    %720 = vmatprep.subr.mxu0 0.0
    %721 = vmatpush1.msra.mxu0 0.0
    %722 = vmatprep.subr.mxu0 0.0
    %723 = vmatpush1.msra.mxu0 0.0
    %724 = vmatprep.subr.mxu0 0.0
    %725 = vmatpush1.msra.mxu0 0.0
    %726 = vmatprep.subr.mxu0 0.0
    %727 = vmatpush1.msra.mxu0 0.0
    %728 = vmatprep.subr.mxu0 0.0
    %729 = vmatpush1.msra.mxu0 0.0
    %730 = vmatprep.subr.mxu0 0.0
    %731 = vmatpush1.msra.mxu0 0.0
    %732 = vmatprep.mubr.f32.mxu0 0.0
    %733 = vmatmul.mubr.f32.gmra.mrb[0].mxu0 %v666
    %v734 = vpop.f32.mrb[0].mxu0
    %v735 = vadd.f32 0.0, %v734
    %v736 = vpop.f32.mrb[0].mxu0
    %737 = vdwg.mxu0
    %738 = vrot.lane.b32.xlu0 %v232, 104
    %v739 = vpop.permute.xlu0 %738
    %740 = vrot.lane.b32.xlu0 %v232, 72
    %v741 = vpop.permute.xlu0 %740
    %v742 = vsel %vm243, %v739, 0
    %v744 = vsel %vm243, %v741, 0
    %746 = vmatprep.subr.mxu0 0.0
    %747 = vmatpush1.xpose.msra.mxu0 %v744
    %748 = vmatprep.subr.mxu0 0.0
    %749 = vmatpush1.xpose.msra.mxu0 0.0
    %750 = vmatprep.subr.mxu0 0.0
    %751 = vmatpush1.xpose.msra.mxu0 0.0
    %752 = vmatprep.subr.mxu0 0.0
    %753 = vmatpush1.xpose.msra.mxu0 0.0
    %754 = vmatprep.subr.mxu0 0.0
    %755 = vmatpush1.xpose.msra.mxu0 0.0
    %756 = vmatprep.subr.mxu0 0.0
    %757 = vmatpush1.xpose.msra.mxu0 0.0
    %758 = vmatprep.subr.mxu0 0.0
    %759 = vmatpush1.xpose.msra.mxu0 0.0
    %760 = vmatprep.subr.mxu0 0.0
    %761 = vmatpush1.xpose.msra.mxu0 0.0
    %762 = vmatprep.subr.mxu0 0.0
    %763 = vmatpush1.xpose.msra.mxu0 0.0
    %764 = vmatprep.subr.mxu0 0.0
    %765 = vmatpush1.xpose.msra.mxu0 0.0
    %766 = vmatprep.subr.mxu0 0.0
    %767 = vmatpush1.xpose.msra.mxu0 0.0
    %768 = vmatprep.subr.mxu0 0.0
    %769 = vmatpush1.xpose.msra.mxu0 0.0
    %770 = vmatprep.subr.mxu0 0.0
    %771 = vmatpush1.xpose.msra.mxu0 0.0
    %772 = vmatprep.subr.mxu0 0.0
    %773 = vmatpush1.xpose.msra.mxu0 0.0
    %774 = vmatprep.subr.mxu0 0.0
    %775 = vmatpush1.xpose.msra.mxu0 0.0
    %776 = vmatprep.subr.mxu0 0.0
    %777 = vmatpush1.xpose.msra.mxu0 0.0
    %778 = vmatprep.subr.mxu0 0.0
    %779 = vmatpush1.xpose.msra.mxu0 0.0
    %780 = vmatprep.subr.mxu0 0.0
    %781 = vmatpush1.xpose.msra.mxu0 0.0
    %782 = vmatprep.subr.mxu0 0.0
    %783 = vmatpush1.xpose.msra.mxu0 0.0
    %784 = vmatprep.subr.mxu0 0.0
    %785 = vmatpush1.xpose.msra.mxu0 0.0
    %786 = vmatprep.subr.mxu0 0.0
    %787 = vmatpush1.xpose.msra.mxu0 0.0
    %788 = vmatprep.subr.mxu0 0.0
    %789 = vmatpush1.xpose.msra.mxu0 0.0
    %790 = vmatprep.subr.mxu0 0.0
    %791 = vmatpush1.xpose.msra.mxu0 0.0
    %792 = vmatprep.subr.mxu0 0.0
    %793 = vmatpush1.xpose.msra.mxu0 0.0
    %794 = vmatprep.subr.mxu0 0.0
    %795 = vmatpush1.xpose.msra.mxu0 0.0
    %796 = vmatprep.subr.mxu0 0.0
    %797 = vmatpush1.xpose.msra.mxu0 0.0
    %798 = vmatprep.subr.mxu0 0.0
    %799 = vmatpush1.xpose.msra.mxu0 0.0
    %800 = vmatprep.subr.mxu0 0.0
    %801 = vmatpush1.xpose.msra.mxu0 0.0
    %802 = vmatprep.subr.mxu0 0.0
    %803 = vmatpush1.xpose.msra.mxu0 0.0
    %804 = vmatprep.subr.mxu0 0.0
    %805 = vmatpush1.xpose.msra.mxu0 0.0
    %806 = vmatprep.subr.mxu0 0.0
    %807 = vmatpush1.xpose.msra.mxu0 0.0
    %808 = vmatprep.subr.mxu0 0.0
    %809 = vmatpush1.xpose.msra.mxu0 0.0
    %810 = vmatprep.mubr.f32.mxu0 0.0
    %811 = vmatmul.mubr.f32.gmra.mrb[0].mxu0 %v742
    %v812 = vpop.f32.mrb[0].mxu0
    %v813 = vadd.f32 0.0, %v812
    %v814 = vpop.f32.mrb[0].mxu0
    %815 = vdwg.mxu0
    %v816 = vmul.f32 %v813, 0.35355338
    %v817 = vsel %vm243, %v816, -inf
    %818 = vmax.xlane.f32.xlu0 %v817
    %v819 = vpop.xlane.xlu0 %818
    %v820 = vsub.f32 %v816, %v819
    %v821 = vmul.f32 %v820, 1.442695
    %v822 = vpow.pop %v821
    %v823 = vsel %vm243, %v822, 0.0
    %824 = vadd.xlane.f32.xlu0 %v823
    %v825 = vpop.xlane.xlu0 %824
    %v826 = vrcp.pop %v825
    %v827 = vmul.f32 %v822, %v826
    %828 = vrot.lane.b32.xlu0 %v232, 40
    %v829 = vpop.permute.xlu0 %828
    %v832 = vsel %vm243, %v827, 0
    %834 = vmatprep.subr.mxu0 0.0
    %835 = vmatpush1.msra.mxu0 %v829
    %836 = vmatprep.subr.mxu0 0.0
    %837 = vmatpush1.msra.mxu0 0.0
    %838 = vmatprep.subr.mxu0 0.0
    %839 = vmatpush1.msra.mxu0 0.0
    %840 = vmatprep.subr.mxu0 0.0
    %841 = vmatpush1.msra.mxu0 0.0
    %842 = vmatprep.subr.mxu0 0.0
    %843 = vmatpush1.msra.mxu0 0.0
    %844 = vmatprep.subr.mxu0 0.0
    %845 = vmatpush1.msra.mxu0 0.0
    %846 = vmatprep.subr.mxu0 0.0
    %847 = vmatpush1.msra.mxu0 0.0
    %848 = vmatprep.subr.mxu0 0.0
    %849 = vmatpush1.msra.mxu0 0.0
    %850 = vmatprep.subr.mxu0 0.0
    %851 = vmatpush1.msra.mxu0 0.0
    %852 = vmatprep.subr.mxu0 0.0
    %853 = vmatpush1.msra.mxu0 0.0
    %854 = vmatprep.subr.mxu0 0.0
    %855 = vmatpush1.msra.mxu0 0.0
    %856 = vmatprep.subr.mxu0 0.0
    %857 = vmatpush1.msra.mxu0 0.0
    %858 = vmatprep.subr.mxu0 0.0
    %859 = vmatpush1.msra.mxu0 0.0
    %860 = vmatprep.subr.mxu0 0.0
    %861 = vmatpush1.msra.mxu0 0.0
    %862 = vmatprep.subr.mxu0 0.0
    %863 = vmatpush1.msra.mxu0 0.0
    %864 = vmatprep.subr.mxu0 0.0
    %865 = vmatpush1.msra.mxu0 0.0
    %866 = vmatprep.subr.mxu0 0.0
    %867 = vmatpush1.msra.mxu0 0.0
    %868 = vmatprep.subr.mxu0 0.0
    %869 = vmatpush1.msra.mxu0 0.0
    %870 = vmatprep.subr.mxu0 0.0
    %871 = vmatpush1.msra.mxu0 0.0
    %872 = vmatprep.subr.mxu0 0.0
    %873 = vmatpush1.msra.mxu0 0.0
    %874 = vmatprep.subr.mxu0 0.0
    %875 = vmatpush1.msra.mxu0 0.0
    %876 = vmatprep.subr.mxu0 0.0
    %877 = vmatpush1.msra.mxu0 0.0
    %878 = vmatprep.subr.mxu0 0.0
    %879 = vmatpush1.msra.mxu0 0.0
    %880 = vmatprep.subr.mxu0 0.0
    %881 = vmatpush1.msra.mxu0 0.0
    %882 = vmatprep.subr.mxu0 0.0
    %883 = vmatpush1.msra.mxu0 0.0
    %884 = vmatprep.subr.mxu0 0.0
    %885 = vmatpush1.msra.mxu0 0.0
    %886 = vmatprep.subr.mxu0 0.0
    %887 = vmatpush1.msra.mxu0 0.0
    %888 = vmatprep.subr.mxu0 0.0
    %889 = vmatpush1.msra.mxu0 0.0
    %890 = vmatprep.subr.mxu0 0.0
    %891 = vmatpush1.msra.mxu0 0.0
    %892 = vmatprep.subr.mxu0 0.0
    %893 = vmatpush1.msra.mxu0 0.0
    %894 = vmatprep.subr.mxu0 0.0
    %895 = vmatpush1.msra.mxu0 0.0
    %896 = vmatprep.subr.mxu0 0.0
    %897 = vmatpush1.msra.mxu0 0.0
    %898 = vmatprep.mubr.f32.mxu0 0.0
    %899 = vmatmul.mubr.f32.gmra.mrb[0].mxu0 %v832
    %v900 = vpop.f32.mrb[0].mxu0
    %v901 = vadd.f32 0.0, %v900
    %v902 = vpop.f32.mrb[0].mxu0
    %903 = vdwg.mxu0
    %905 = vrot.lane.b32.xlu0 %v569, 8
    %v906 = vpop.permute.xlu0 %905
    %909 = vrot.lane.b32.xlu0 %v735, 16
    %v910 = vpop.permute.xlu0 %909
    %913 = vrot.lane.b32.xlu0 %v901, 24
    %v914 = vpop.permute.xlu0 %913
    %v916 = vsel %vm243, %v403, %v906
    %vm917 = vcmask 130048
    %v918 = vsel %vm917, %v916, %v910
    %vm919 = vcmask 195584
    %v920 = vsel %vm919, %v918, %v914
    %922 = vrot.lane.b32.xlu0 %v237, 96
    %v923 = vpop.permute.xlu0 %922
    %v924 = vsel %vm243, %v237, 0
    %v926 = vsel %vm243, %v923, 0
    %928 = vmatprep.subr.mxu0 0.0
    %929 = vmatpush1.xpose.msra.mxu0 %v926
    %930 = vmatprep.subr.mxu0 0.0
    %931 = vmatpush1.xpose.msra.mxu0 0.0
    %932 = vmatprep.subr.mxu0 0.0
    %933 = vmatpush1.xpose.msra.mxu0 0.0
    %934 = vmatprep.subr.mxu0 0.0
    %935 = vmatpush1.xpose.msra.mxu0 0.0
    %936 = vmatprep.subr.mxu0 0.0
    %937 = vmatpush1.xpose.msra.mxu0 0.0
    %938 = vmatprep.subr.mxu0 0.0
    %939 = vmatpush1.xpose.msra.mxu0 0.0
    %940 = vmatprep.subr.mxu0 0.0
    %941 = vmatpush1.xpose.msra.mxu0 0.0
    %942 = vmatprep.subr.mxu0 0.0
    %943 = vmatpush1.xpose.msra.mxu0 0.0
    %944 = vmatprep.subr.mxu0 0.0
    %945 = vmatpush1.xpose.msra.mxu0 0.0
    %946 = vmatprep.subr.mxu0 0.0
    %947 = vmatpush1.xpose.msra.mxu0 0.0
    %948 = vmatprep.subr.mxu0 0.0
    %949 = vmatpush1.xpose.msra.mxu0 0.0
    %950 = vmatprep.subr.mxu0 0.0
    %951 = vmatpush1.xpose.msra.mxu0 0.0
    %952 = vmatprep.subr.mxu0 0.0
    %953 = vmatpush1.xpose.msra.mxu0 0.0
    %954 = vmatprep.subr.mxu0 0.0
    %955 = vmatpush1.xpose.msra.mxu0 0.0
    %956 = vmatprep.subr.mxu0 0.0
    %957 = vmatpush1.xpose.msra.mxu0 0.0
    %958 = vmatprep.subr.mxu0 0.0
    %959 = vmatpush1.xpose.msra.mxu0 0.0
    %960 = vmatprep.subr.mxu0 0.0
    %961 = vmatpush1.xpose.msra.mxu0 0.0
    %962 = vmatprep.subr.mxu0 0.0
    %963 = vmatpush1.xpose.msra.mxu0 0.0
    %964 = vmatprep.subr.mxu0 0.0
    %965 = vmatpush1.xpose.msra.mxu0 0.0
    %966 = vmatprep.subr.mxu0 0.0
    %967 = vmatpush1.xpose.msra.mxu0 0.0
    %968 = vmatprep.subr.mxu0 0.0
    %969 = vmatpush1.xpose.msra.mxu0 0.0
    %970 = vmatprep.subr.mxu0 0.0
    %971 = vmatpush1.xpose.msra.mxu0 0.0
    %972 = vmatprep.subr.mxu0 0.0
    %973 = vmatpush1.xpose.msra.mxu0 0.0
    %974 = vmatprep.subr.mxu0 0.0
    %975 = vmatpush1.xpose.msra.mxu0 0.0
    %976 = vmatprep.subr.mxu0 0.0
    %977 = vmatpush1.xpose.msra.mxu0 0.0
    %978 = vmatprep.subr.mxu0 0.0
    %979 = vmatpush1.xpose.msra.mxu0 0.0
    %980 = vmatprep.subr.mxu0 0.0
    %981 = vmatpush1.xpose.msra.mxu0 0.0
    %982 = vmatprep.subr.mxu0 0.0
    %983 = vmatpush1.xpose.msra.mxu0 0.0
    %984 = vmatprep.subr.mxu0 0.0
    %985 = vmatpush1.xpose.msra.mxu0 0.0
    %986 = vmatprep.subr.mxu0 0.0
    %987 = vmatpush1.xpose.msra.mxu0 0.0
    %988 = vmatprep.subr.mxu0 0.0
    %989 = vmatpush1.xpose.msra.mxu0 0.0
    %990 = vmatprep.subr.mxu0 0.0
    %991 = vmatpush1.xpose.msra.mxu0 0.0
    %992 = vmatprep.mubr.f32.mxu0 0.0
    %993 = vmatmul.mubr.f32.gmra.mrb[0].mxu0 %v924
    %v994 = vpop.f32.mrb[0].mxu0
    %v995 = vadd.f32 0.0, %v994
    %v996 = vpop.f32.mrb[0].mxu0
    %997 = vdwg.mxu0
    %v998 = vmul.f32 %v995, 0.35355338
    %v999 = vsel %vm243, %v998, -inf
    %1000 = vmax.xlane.f32.xlu0 %v999
    %v1001 = vpop.xlane.xlu0 %1000
    %v1002 = vsub.f32 %v998, %v1001
    %v1003 = vmul.f32 %v1002, 1.442695
    %v1004 = vpow.pop %v1003
    %v1005 = vsel %vm243, %v1004, 0.0
    %1006 = vadd.xlane.f32.xlu0 %v1005
    %v1007 = vpop.xlane.xlu0 %1006
    %v1008 = vrcp.pop %v1007
    %v1009 = vmul.f32 %v1004, %v1008
    %1010 = vrot.lane.b32.xlu0 %v237, 64
    %v1011 = vpop.permute.xlu0 %1010
    %v1014 = vsel %vm243, %v1009, 0
    %1016 = vmatprep.subr.mxu0 0.0
    %1017 = vmatpush1.msra.mxu0 %v1011
    %1018 = vmatprep.subr.mxu0 0.0
    %1019 = vmatpush1.msra.mxu0 0.0
    %1020 = vmatprep.subr.mxu0 0.0
    %1021 = vmatpush1.msra.mxu0 0.0
    %1022 = vmatprep.subr.mxu0 0.0
    %1023 = vmatpush1.msra.mxu0 0.0
    %1024 = vmatprep.subr.mxu0 0.0
    %1025 = vmatpush1.msra.mxu0 0.0
    %1026 = vmatprep.subr.mxu0 0.0
    %1027 = vmatpush1.msra.mxu0 0.0
    %1028 = vmatprep.subr.mxu0 0.0
    %1029 = vmatpush1.msra.mxu0 0.0
    %1030 = vmatprep.subr.mxu0 0.0
    %1031 = vmatpush1.msra.mxu0 0.0
    %1032 = vmatprep.subr.mxu0 0.0
    %1033 = vmatpush1.msra.mxu0 0.0
    %1034 = vmatprep.subr.mxu0 0.0
    %1035 = vmatpush1.msra.mxu0 0.0
    %1036 = vmatprep.subr.mxu0 0.0
    %1037 = vmatpush1.msra.mxu0 0.0
    %1038 = vmatprep.subr.mxu0 0.0
    %1039 = vmatpush1.msra.mxu0 0.0
    %1040 = vmatprep.subr.mxu0 0.0
    %1041 = vmatpush1.msra.mxu0 0.0
    %1042 = vmatprep.subr.mxu0 0.0
    %1043 = vmatpush1.msra.mxu0 0.0
    %1044 = vmatprep.subr.mxu0 0.0
    %1045 = vmatpush1.msra.mxu0 0.0
    %1046 = vmatprep.subr.mxu0 0.0
    %1047 = vmatpush1.msra.mxu0 0.0
    %1048 = vmatprep.subr.mxu0 0.0
    %1049 = vmatpush1.msra.mxu0 0.0
    %1050 = vmatprep.subr.mxu0 0.0
    %1051 = vmatpush1.msra.mxu0 0.0
    %1052 = vmatprep.subr.mxu0 0.0
    %1053 = vmatpush1.msra.mxu0 0.0
    %1054 = vmatprep.subr.mxu0 0.0
    %1055 = vmatpush1.msra.mxu0 0.0
    %1056 = vmatprep.subr.mxu0 0.0
    %1057 = vmatpush1.msra.mxu0 0.0
    %1058 = vmatprep.subr.mxu0 0.0
    %1059 = vmatpush1.msra.mxu0 0.0
    %1060 = vmatprep.subr.mxu0 0.0
    %1061 = vmatpush1.msra.mxu0 0.0
    %1062 = vmatprep.subr.mxu0 0.0
    %1063 = vmatpush1.msra.mxu0 0.0
    %1064 = vmatprep.subr.mxu0 0.0
    %1065 = vmatpush1.msra.mxu0 0.0
    %1066 = vmatprep.subr.mxu0 0.0
    %1067 = vmatpush1.msra.mxu0 0.0
    %1068 = vmatprep.subr.mxu0 0.0
    %1069 = vmatpush1.msra.mxu0 0.0
    %1070 = vmatprep.subr.mxu0 0.0
    %1071 = vmatpush1.msra.mxu0 0.0
    %1072 = vmatprep.subr.mxu0 0.0
    %1073 = vmatpush1.msra.mxu0 0.0
    %1074 = vmatprep.subr.mxu0 0.0
    %1075 = vmatpush1.msra.mxu0 0.0
    %1076 = vmatprep.subr.mxu0 0.0
    %1077 = vmatpush1.msra.mxu0 0.0
    %1078 = vmatprep.subr.mxu0 0.0
    %1079 = vmatpush1.msra.mxu0 0.0
    %1080 = vmatprep.mubr.f32.mxu0 0.0
    %1081 = vmatmul.mubr.f32.gmra.mrb[0].mxu0 %v1014
    %v1082 = vpop.f32.mrb[0].mxu0
    %v1083 = vadd.f32 0.0, %v1082
    %v1084 = vpop.f32.mrb[0].mxu0
    %1085 = vdwg.mxu0
    %1086 = vrot.lane.b32.xlu0 %v237, 120
    %v1087 = vpop.permute.xlu0 %1086
    %1088 = vrot.lane.b32.xlu0 %v237, 88
    %v1089 = vpop.permute.xlu0 %1088
    %v1090 = vsel %vm243, %v1087, 0
    %v1092 = vsel %vm243, %v1089, 0
    %1094 = vmatprep.subr.mxu0 0.0
    %1095 = vmatpush1.xpose.msra.mxu0 %v1092
    %1096 = vmatprep.subr.mxu0 0.0
    %1097 = vmatpush1.xpose.msra.mxu0 0.0
    %1098 = vmatprep.subr.mxu0 0.0
    %1099 = vmatpush1.xpose.msra.mxu0 0.0
    %1100 = vmatprep.subr.mxu0 0.0
    %1101 = vmatpush1.xpose.msra.mxu0 0.0
    %1102 = vmatprep.subr.mxu0 0.0
    %1103 = vmatpush1.xpose.msra.mxu0 0.0
    %1104 = vmatprep.subr.mxu0 0.0
    %1105 = vmatpush1.xpose.msra.mxu0 0.0
    %1106 = vmatprep.subr.mxu0 0.0
    %1107 = vmatpush1.xpose.msra.mxu0 0.0
    %1108 = vmatprep.subr.mxu0 0.0
    %1109 = vmatpush1.xpose.msra.mxu0 0.0
    %1110 = vmatprep.subr.mxu0 0.0
    %1111 = vmatpush1.xpose.msra.mxu0 0.0
    %1112 = vmatprep.subr.mxu0 0.0
    %1113 = vmatpush1.xpose.msra.mxu0 0.0
    %1114 = vmatprep.subr.mxu0 0.0
    %1115 = vmatpush1.xpose.msra.mxu0 0.0
    %1116 = vmatprep.subr.mxu0 0.0
    %1117 = vmatpush1.xpose.msra.mxu0 0.0
    %1118 = vmatprep.subr.mxu0 0.0
    %1119 = vmatpush1.xpose.msra.mxu0 0.0
    %1120 = vmatprep.subr.mxu0 0.0
    %1121 = vmatpush1.xpose.msra.mxu0 0.0
    %1122 = vmatprep.subr.mxu0 0.0
    %1123 = vmatpush1.xpose.msra.mxu0 0.0
    %1124 = vmatprep.subr.mxu0 0.0
    %1125 = vmatpush1.xpose.msra.mxu0 0.0
    %1126 = vmatprep.subr.mxu0 0.0
    %1127 = vmatpush1.xpose.msra.mxu0 0.0
    %1128 = vmatprep.subr.mxu0 0.0
    %1129 = vmatpush1.xpose.msra.mxu0 0.0
    %1130 = vmatprep.subr.mxu0 0.0
    %1131 = vmatpush1.xpose.msra.mxu0 0.0
    %1132 = vmatprep.subr.mxu0 0.0
    %1133 = vmatpush1.xpose.msra.mxu0 0.0
    %1134 = vmatprep.subr.mxu0 0.0
    %1135 = vmatpush1.xpose.msra.mxu0 0.0
    %1136 = vmatprep.subr.mxu0 0.0
    %1137 = vmatpush1.xpose.msra.mxu0 0.0
    %1138 = vmatprep.subr.mxu0 0.0
    %1139 = vmatpush1.xpose.msra.mxu0 0.0
    %1140 = vmatprep.subr.mxu0 0.0
    %1141 = vmatpush1.xpose.msra.mxu0 0.0
    %1142 = vmatprep.subr.mxu0 0.0
    %1143 = vmatpush1.xpose.msra.mxu0 0.0
    %1144 = vmatprep.subr.mxu0 0.0
    %1145 = vmatpush1.xpose.msra.mxu0 0.0
    %1146 = vmatprep.subr.mxu0 0.0
    %1147 = vmatpush1.xpose.msra.mxu0 0.0
    %1148 = vmatprep.subr.mxu0 0.0
    %1149 = vmatpush1.xpose.msra.mxu0 0.0
    %1150 = vmatprep.subr.mxu0 0.0
    %1151 = vmatpush1.xpose.msra.mxu0 0.0
    %1152 = vmatprep.subr.mxu0 0.0
    %1153 = vmatpush1.xpose.msra.mxu0 0.0
    %1154 = vmatprep.subr.mxu0 0.0
    %1155 = vmatpush1.xpose.msra.mxu0 0.0
    %1156 = vmatprep.subr.mxu0 0.0
    %1157 = vmatpush1.xpose.msra.mxu0 0.0
    %1158 = vmatprep.mubr.f32.mxu0 0.0
    %1159 = vmatmul.mubr.f32.gmra.mrb[0].mxu0 %v1090
    %v1160 = vpop.f32.mrb[0].mxu0
    %v1161 = vadd.f32 0.0, %v1160
    %v1162 = vpop.f32.mrb[0].mxu0
    %1163 = vdwg.mxu0
    %v1164 = vmul.f32 %v1161, 0.35355338
    %v1165 = vsel %vm243, %v1164, -inf
    %1166 = vmax.xlane.f32.xlu0 %v1165
    %v1167 = vpop.xlane.xlu0 %1166
    %v1168 = vsub.f32 %v1164, %v1167
    %v1169 = vmul.f32 %v1168, 1.442695
    %v1170 = vpow.pop %v1169
    %v1171 = vsel %vm243, %v1170, 0.0
    %1172 = vadd.xlane.f32.xlu0 %v1171
    %v1173 = vpop.xlane.xlu0 %1172
    %v1174 = vrcp.pop %v1173
    %v1175 = vmul.f32 %v1170, %v1174
    %1176 = vrot.lane.b32.xlu0 %v237, 56
    %v1177 = vpop.permute.xlu0 %1176
    %v1180 = vsel %vm243, %v1175, 0
    %1182 = vmatprep.subr.mxu0 0.0
    %1183 = vmatpush1.msra.mxu0 %v1177
    %1184 = vmatprep.subr.mxu0 0.0
    %1185 = vmatpush1.msra.mxu0 0.0
    %1186 = vmatprep.subr.mxu0 0.0
    %1187 = vmatpush1.msra.mxu0 0.0
    %1188 = vmatprep.subr.mxu0 0.0
    %1189 = vmatpush1.msra.mxu0 0.0
    %1190 = vmatprep.subr.mxu0 0.0
    %1191 = vmatpush1.msra.mxu0 0.0
    %1192 = vmatprep.subr.mxu0 0.0
    %1193 = vmatpush1.msra.mxu0 0.0
    %1194 = vmatprep.subr.mxu0 0.0
    %1195 = vmatpush1.msra.mxu0 0.0
    %1196 = vmatprep.subr.mxu0 0.0
    %1197 = vmatpush1.msra.mxu0 0.0
    %1198 = vmatprep.subr.mxu0 0.0
    %1199 = vmatpush1.msra.mxu0 0.0
    %1200 = vmatprep.subr.mxu0 0.0
    %1201 = vmatpush1.msra.mxu0 0.0
    %1202 = vmatprep.subr.mxu0 0.0
    %1203 = vmatpush1.msra.mxu0 0.0
    %1204 = vmatprep.subr.mxu0 0.0
    %1205 = vmatpush1.msra.mxu0 0.0
    %1206 = vmatprep.subr.mxu0 0.0
    %1207 = vmatpush1.msra.mxu0 0.0
    %1208 = vmatprep.subr.mxu0 0.0
    %1209 = vmatpush1.msra.mxu0 0.0
    %1210 = vmatprep.subr.mxu0 0.0
    %1211 = vmatpush1.msra.mxu0 0.0
    %1212 = vmatprep.subr.mxu0 0.0
    %1213 = vmatpush1.msra.mxu0 0.0
    %1214 = vmatprep.subr.mxu0 0.0
    %1215 = vmatpush1.msra.mxu0 0.0
    %1216 = vmatprep.subr.mxu0 0.0
    %1217 = vmatpush1.msra.mxu0 0.0
    %1218 = vmatprep.subr.mxu0 0.0
    %1219 = vmatpush1.msra.mxu0 0.0
    %1220 = vmatprep.subr.mxu0 0.0
    %1221 = vmatpush1.msra.mxu0 0.0
    %1222 = vmatprep.subr.mxu0 0.0
    %1223 = vmatpush1.msra.mxu0 0.0
    %1224 = vmatprep.subr.mxu0 0.0
    %1225 = vmatpush1.msra.mxu0 0.0
    %1226 = vmatprep.subr.mxu0 0.0
    %1227 = vmatpush1.msra.mxu0 0.0
    %1228 = vmatprep.subr.mxu0 0.0
    %1229 = vmatpush1.msra.mxu0 0.0
    %1230 = vmatprep.subr.mxu0 0.0
    %1231 = vmatpush1.msra.mxu0 0.0
    %1232 = vmatprep.subr.mxu0 0.0
    %1233 = vmatpush1.msra.mxu0 0.0
    %1234 = vmatprep.subr.mxu0 0.0
    %1235 = vmatpush1.msra.mxu0 0.0
    %1236 = vmatprep.subr.mxu0 0.0
    %1237 = vmatpush1.msra.mxu0 0.0
    %1238 = vmatprep.subr.mxu0 0.0
    %1239 = vmatpush1.msra.mxu0 0.0
    %1240 = vmatprep.subr.mxu0 0.0
    %1241 = vmatpush1.msra.mxu0 0.0
    %1242 = vmatprep.subr.mxu0 0.0
    %1243 = vmatpush1.msra.mxu0 0.0
    %1244 = vmatprep.subr.mxu0 0.0
    %1245 = vmatpush1.msra.mxu0 0.0
    %1246 = vmatprep.mubr.f32.mxu0 0.0
    %1247 = vmatmul.mubr.f32.gmra.mrb[0].mxu0 %v1180
    %v1248 = vpop.f32.mrb[0].mxu0
    %v1249 = vadd.f32 0.0, %v1248
    %v1250 = vpop.f32.mrb[0].mxu0
    %1251 = vdwg.mxu0
    %1252 = vrot.lane.b32.xlu0 %v237, 112
    %v1253 = vpop.permute.xlu0 %1252
    %1254 = vrot.lane.b32.xlu0 %v237, 80
    %v1255 = vpop.permute.xlu0 %1254
    %v1256 = vsel %vm243, %v1253, 0
    %v1258 = vsel %vm243, %v1255, 0
    %1260 = vmatprep.subr.mxu0 0.0
    %1261 = vmatpush1.xpose.msra.mxu0 %v1258
    %1262 = vmatprep.subr.mxu0 0.0
    %1263 = vmatpush1.xpose.msra.mxu0 0.0
    %1264 = vmatprep.subr.mxu0 0.0
    %1265 = vmatpush1.xpose.msra.mxu0 0.0
    %1266 = vmatprep.subr.mxu0 0.0
    %1267 = vmatpush1.xpose.msra.mxu0 0.0
    %1268 = vmatprep.subr.mxu0 0.0
    %1269 = vmatpush1.xpose.msra.mxu0 0.0
    %1270 = vmatprep.subr.mxu0 0.0
    %1271 = vmatpush1.xpose.msra.mxu0 0.0
    %1272 = vmatprep.subr.mxu0 0.0
    %1273 = vmatpush1.xpose.msra.mxu0 0.0
    %1274 = vmatprep.subr.mxu0 0.0
    %1275 = vmatpush1.xpose.msra.mxu0 0.0
    %1276 = vmatprep.subr.mxu0 0.0
    %1277 = vmatpush1.xpose.msra.mxu0 0.0
    %1278 = vmatprep.subr.mxu0 0.0
    %1279 = vmatpush1.xpose.msra.mxu0 0.0
    %1280 = vmatprep.subr.mxu0 0.0
    %1281 = vmatpush1.xpose.msra.mxu0 0.0
    %1282 = vmatprep.subr.mxu0 0.0
    %1283 = vmatpush1.xpose.msra.mxu0 0.0
    %1284 = vmatprep.subr.mxu0 0.0
    %1285 = vmatpush1.xpose.msra.mxu0 0.0
    %1286 = vmatprep.subr.mxu0 0.0
    %1287 = vmatpush1.xpose.msra.mxu0 0.0
    %1288 = vmatprep.subr.mxu0 0.0
    %1289 = vmatpush1.xpose.msra.mxu0 0.0
    %1290 = vmatprep.subr.mxu0 0.0
    %1291 = vmatpush1.xpose.msra.mxu0 0.0
    %1292 = vmatprep.subr.mxu0 0.0
    %1293 = vmatpush1.xpose.msra.mxu0 0.0
    %1294 = vmatprep.subr.mxu0 0.0
    %1295 = vmatpush1.xpose.msra.mxu0 0.0
    %1296 = vmatprep.subr.mxu0 0.0
    %1297 = vmatpush1.xpose.msra.mxu0 0.0
    %1298 = vmatprep.subr.mxu0 0.0
    %1299 = vmatpush1.xpose.msra.mxu0 0.0
    %1300 = vmatprep.subr.mxu0 0.0
    %1301 = vmatpush1.xpose.msra.mxu0 0.0
    %1302 = vmatprep.subr.mxu0 0.0
    %1303 = vmatpush1.xpose.msra.mxu0 0.0
    %1304 = vmatprep.subr.mxu0 0.0
    %1305 = vmatpush1.xpose.msra.mxu0 0.0
    %1306 = vmatprep.subr.mxu0 0.0
    %1307 = vmatpush1.xpose.msra.mxu0 0.0
    %1308 = vmatprep.subr.mxu0 0.0
    %1309 = vmatpush1.xpose.msra.mxu0 0.0
    %1310 = vmatprep.subr.mxu0 0.0
    %1311 = vmatpush1.xpose.msra.mxu0 0.0
    %1312 = vmatprep.subr.mxu0 0.0
    %1313 = vmatpush1.xpose.msra.mxu0 0.0
    %1314 = vmatprep.subr.mxu0 0.0
    %1315 = vmatpush1.xpose.msra.mxu0 0.0
    %1316 = vmatprep.subr.mxu0 0.0
    %1317 = vmatpush1.xpose.msra.mxu0 0.0
    %1318 = vmatprep.subr.mxu0 0.0
    %1319 = vmatpush1.xpose.msra.mxu0 0.0
    %1320 = vmatprep.subr.mxu0 0.0
    %1321 = vmatpush1.xpose.msra.mxu0 0.0
    %1322 = vmatprep.subr.mxu0 0.0
    %1323 = vmatpush1.xpose.msra.mxu0 0.0
    %1324 = vmatprep.mubr.f32.mxu0 0.0
    %1325 = vmatmul.mubr.f32.gmra.mrb[0].mxu0 %v1256
    %v1326 = vpop.f32.mrb[0].mxu0
    %v1327 = vadd.f32 0.0, %v1326
    %v1328 = vpop.f32.mrb[0].mxu0
    %1329 = vdwg.mxu0
    %v1330 = vmul.f32 %v1327, 0.35355338
    %v1331 = vsel %vm243, %v1330, -inf
    %1332 = vmax.xlane.f32.xlu0 %v1331
    %v1333 = vpop.xlane.xlu0 %1332
    %v1334 = vsub.f32 %v1330, %v1333
    %v1335 = vmul.f32 %v1334, 1.442695
    %v1336 = vpow.pop %v1335
    %v1337 = vsel %vm243, %v1336, 0.0
    %1338 = vadd.xlane.f32.xlu0 %v1337
    %v1339 = vpop.xlane.xlu0 %1338
    %v1340 = vrcp.pop %v1339
    %v1341 = vmul.f32 %v1336, %v1340
    %1342 = vrot.lane.b32.xlu0 %v237, 48
    %v1343 = vpop.permute.xlu0 %1342
    %v1346 = vsel %vm243, %v1341, 0
    %1348 = vmatprep.subr.mxu0 0.0
    %1349 = vmatpush1.msra.mxu0 %v1343
    %1350 = vmatprep.subr.mxu0 0.0
    %1351 = vmatpush1.msra.mxu0 0.0
    %1352 = vmatprep.subr.mxu0 0.0
    %1353 = vmatpush1.msra.mxu0 0.0
    %1354 = vmatprep.subr.mxu0 0.0
    %1355 = vmatpush1.msra.mxu0 0.0
    %1356 = vmatprep.subr.mxu0 0.0
    %1357 = vmatpush1.msra.mxu0 0.0
    %1358 = vmatprep.subr.mxu0 0.0
    %1359 = vmatpush1.msra.mxu0 0.0
    %1360 = vmatprep.subr.mxu0 0.0
    %1361 = vmatpush1.msra.mxu0 0.0
    %1362 = vmatprep.subr.mxu0 0.0
    %1363 = vmatpush1.msra.mxu0 0.0
    %1364 = vmatprep.subr.mxu0 0.0
    %1365 = vmatpush1.msra.mxu0 0.0
    %1366 = vmatprep.subr.mxu0 0.0
    %1367 = vmatpush1.msra.mxu0 0.0
    %1368 = vmatprep.subr.mxu0 0.0
    %1369 = vmatpush1.msra.mxu0 0.0
    %1370 = vmatprep.subr.mxu0 0.0
    %1371 = vmatpush1.msra.mxu0 0.0
    %1372 = vmatprep.subr.mxu0 0.0
    %1373 = vmatpush1.msra.mxu0 0.0
    %1374 = vmatprep.subr.mxu0 0.0
    %1375 = vmatpush1.msra.mxu0 0.0
    %1376 = vmatprep.subr.mxu0 0.0
    %1377 = vmatpush1.msra.mxu0 0.0
    %1378 = vmatprep.subr.mxu0 0.0
    %1379 = vmatpush1.msra.mxu0 0.0
    %1380 = vmatprep.subr.mxu0 0.0
    %1381 = vmatpush1.msra.mxu0 0.0
    %1382 = vmatprep.subr.mxu0 0.0
    %1383 = vmatpush1.msra.mxu0 0.0
    %1384 = vmatprep.subr.mxu0 0.0
    %1385 = vmatpush1.msra.mxu0 0.0
    %1386 = vmatprep.subr.mxu0 0.0
    %1387 = vmatpush1.msra.mxu0 0.0
    %1388 = vmatprep.subr.mxu0 0.0
    %1389 = vmatpush1.msra.mxu0 0.0
    %1390 = vmatprep.subr.mxu0 0.0
    %1391 = vmatpush1.msra.mxu0 0.0
    %1392 = vmatprep.subr.mxu0 0.0
    %1393 = vmatpush1.msra.mxu0 0.0
    %1394 = vmatprep.subr.mxu0 0.0
    %1395 = vmatpush1.msra.mxu0 0.0
    %1396 = vmatprep.subr.mxu0 0.0
    %1397 = vmatpush1.msra.mxu0 0.0
    %1398 = vmatprep.subr.mxu0 0.0
    %1399 = vmatpush1.msra.mxu0 0.0
    %1400 = vmatprep.subr.mxu0 0.0
    %1401 = vmatpush1.msra.mxu0 0.0
    %1402 = vmatprep.subr.mxu0 0.0
    %1403 = vmatpush1.msra.mxu0 0.0
    %1404 = vmatprep.subr.mxu0 0.0
    %1405 = vmatpush1.msra.mxu0 0.0
    %1406 = vmatprep.subr.mxu0 0.0
    %1407 = vmatpush1.msra.mxu0 0.0
    %1408 = vmatprep.subr.mxu0 0.0
    %1409 = vmatpush1.msra.mxu0 0.0
    %1410 = vmatprep.subr.mxu0 0.0
    %1411 = vmatpush1.msra.mxu0 0.0
    %1412 = vmatprep.mubr.f32.mxu0 0.0
    %1413 = vmatmul.mubr.f32.gmra.mrb[0].mxu0 %v1346
    %v1414 = vpop.f32.mrb[0].mxu0
    %v1415 = vadd.f32 0.0, %v1414
    %v1416 = vpop.f32.mrb[0].mxu0
    %1417 = vdwg.mxu0
    %1418 = vrot.lane.b32.xlu0 %v237, 104
    %v1419 = vpop.permute.xlu0 %1418
    %1420 = vrot.lane.b32.xlu0 %v237, 72
    %v1421 = vpop.permute.xlu0 %1420
    %v1422 = vsel %vm243, %v1419, 0
    %v1424 = vsel %vm243, %v1421, 0
    %1426 = vmatprep.subr.mxu0 0.0
    %1427 = vmatpush1.xpose.msra.mxu0 %v1424
    %1428 = vmatprep.subr.mxu0 0.0
    %1429 = vmatpush1.xpose.msra.mxu0 0.0
    %1430 = vmatprep.subr.mxu0 0.0
    %1431 = vmatpush1.xpose.msra.mxu0 0.0
    %1432 = vmatprep.subr.mxu0 0.0
    %1433 = vmatpush1.xpose.msra.mxu0 0.0
    %1434 = vmatprep.subr.mxu0 0.0
    %1435 = vmatpush1.xpose.msra.mxu0 0.0
    %1436 = vmatprep.subr.mxu0 0.0
    %1437 = vmatpush1.xpose.msra.mxu0 0.0
    %1438 = vmatprep.subr.mxu0 0.0
    %1439 = vmatpush1.xpose.msra.mxu0 0.0
    %1440 = vmatprep.subr.mxu0 0.0
    %1441 = vmatpush1.xpose.msra.mxu0 0.0
    %1442 = vmatprep.subr.mxu0 0.0
    %1443 = vmatpush1.xpose.msra.mxu0 0.0
    %1444 = vmatprep.subr.mxu0 0.0
    %1445 = vmatpush1.xpose.msra.mxu0 0.0
    %1446 = vmatprep.subr.mxu0 0.0
    %1447 = vmatpush1.xpose.msra.mxu0 0.0
    %1448 = vmatprep.subr.mxu0 0.0
    %1449 = vmatpush1.xpose.msra.mxu0 0.0
    %1450 = vmatprep.subr.mxu0 0.0
    %1451 = vmatpush1.xpose.msra.mxu0 0.0
    %1452 = vmatprep.subr.mxu0 0.0
    %1453 = vmatpush1.xpose.msra.mxu0 0.0
    %1454 = vmatprep.subr.mxu0 0.0
    %1455 = vmatpush1.xpose.msra.mxu0 0.0
    %1456 = vmatprep.subr.mxu0 0.0
    %1457 = vmatpush1.xpose.msra.mxu0 0.0
    %1458 = vmatprep.subr.mxu0 0.0
    %1459 = vmatpush1.xpose.msra.mxu0 0.0
    %1460 = vmatprep.subr.mxu0 0.0
    %1461 = vmatpush1.xpose.msra.mxu0 0.0
    %1462 = vmatprep.subr.mxu0 0.0
    %1463 = vmatpush1.xpose.msra.mxu0 0.0
    %1464 = vmatprep.subr.mxu0 0.0
    %1465 = vmatpush1.xpose.msra.mxu0 0.0
    %1466 = vmatprep.subr.mxu0 0.0
    %1467 = vmatpush1.xpose.msra.mxu0 0.0
    %1468 = vmatprep.subr.mxu0 0.0
    %1469 = vmatpush1.xpose.msra.mxu0 0.0
    %1470 = vmatprep.subr.mxu0 0.0
    %1471 = vmatpush1.xpose.msra.mxu0 0.0
    %1472 = vmatprep.subr.mxu0 0.0
    %1473 = vmatpush1.xpose.msra.mxu0 0.0
    %1474 = vmatprep.subr.mxu0 0.0
    %1475 = vmatpush1.xpose.msra.mxu0 0.0
    %1476 = vmatprep.subr.mxu0 0.0
    %1477 = vmatpush1.xpose.msra.mxu0 0.0
    %1478 = vmatprep.subr.mxu0 0.0
    %1479 = vmatpush1.xpose.msra.mxu0 0.0
    %1480 = vmatprep.subr.mxu0 0.0
    %1481 = vmatpush1.xpose.msra.mxu0 0.0
    %1482 = vmatprep.subr.mxu0 0.0
    %1483 = vmatpush1.xpose.msra.mxu0 0.0
    %1484 = vmatprep.subr.mxu0 0.0
    %1485 = vmatpush1.xpose.msra.mxu0 0.0
    %1486 = vmatprep.subr.mxu0 0.0
    %1487 = vmatpush1.xpose.msra.mxu0 0.0
    %1488 = vmatprep.subr.mxu0 0.0
    %1489 = vmatpush1.xpose.msra.mxu0 0.0
    %1490 = vmatprep.mubr.f32.mxu0 0.0
    %1491 = vmatmul.mubr.f32.gmra.mrb[0].mxu0 %v1422
    %v1492 = vpop.f32.mrb[0].mxu0
    %v1493 = vadd.f32 0.0, %v1492
    %v1494 = vpop.f32.mrb[0].mxu0
    %1495 = vdwg.mxu0
    %v1496 = vmul.f32 %v1493, 0.35355338
    %v1497 = vsel %vm243, %v1496, -inf
    %1498 = vmax.xlane.f32.xlu0 %v1497
    %v1499 = vpop.xlane.xlu0 %1498
    %v1500 = vsub.f32 %v1496, %v1499
    %v1501 = vmul.f32 %v1500, 1.442695
    %v1502 = vpow.pop %v1501
    %v1503 = vsel %vm243, %v1502, 0.0
    %1504 = vadd.xlane.f32.xlu0 %v1503
    %v1505 = vpop.xlane.xlu0 %1504
    %v1506 = vrcp.pop %v1505
    %v1507 = vmul.f32 %v1502, %v1506
    %1508 = vrot.lane.b32.xlu0 %v237, 40
    %v1509 = vpop.permute.xlu0 %1508
    %v1512 = vsel %vm243, %v1507, 0
    %1514 = vmatprep.subr.mxu0 0.0
    %1515 = vmatpush1.msra.mxu0 %v1509
    %1516 = vmatprep.subr.mxu0 0.0
    %1517 = vmatpush1.msra.mxu0 0.0
    %1518 = vmatprep.subr.mxu0 0.0
    %1519 = vmatpush1.msra.mxu0 0.0
    %1520 = vmatprep.subr.mxu0 0.0
    %1521 = vmatpush1.msra.mxu0 0.0
    %1522 = vmatprep.subr.mxu0 0.0
    %1523 = vmatpush1.msra.mxu0 0.0
    %1524 = vmatprep.subr.mxu0 0.0
    %1525 = vmatpush1.msra.mxu0 0.0
    %1526 = vmatprep.subr.mxu0 0.0
    %1527 = vmatpush1.msra.mxu0 0.0
    %1528 = vmatprep.subr.mxu0 0.0
    %1529 = vmatpush1.msra.mxu0 0.0
    %1530 = vmatprep.subr.mxu0 0.0
    %1531 = vmatpush1.msra.mxu0 0.0
    %1532 = vmatprep.subr.mxu0 0.0
    %1533 = vmatpush1.msra.mxu0 0.0
    %1534 = vmatprep.subr.mxu0 0.0
    %1535 = vmatpush1.msra.mxu0 0.0
    %1536 = vmatprep.subr.mxu0 0.0
    %1537 = vmatpush1.msra.mxu0 0.0
    %1538 = vmatprep.subr.mxu0 0.0
    %1539 = vmatpush1.msra.mxu0 0.0
    %1540 = vmatprep.subr.mxu0 0.0
    %1541 = vmatpush1.msra.mxu0 0.0
    %1542 = vmatprep.subr.mxu0 0.0
    %1543 = vmatpush1.msra.mxu0 0.0
    %1544 = vmatprep.subr.mxu0 0.0
    %1545 = vmatpush1.msra.mxu0 0.0
    %1546 = vmatprep.subr.mxu0 0.0
    %1547 = vmatpush1.msra.mxu0 0.0
    %1548 = vmatprep.subr.mxu0 0.0
    %1549 = vmatpush1.msra.mxu0 0.0
    %1550 = vmatprep.subr.mxu0 0.0
    %1551 = vmatpush1.msra.mxu0 0.0
    %1552 = vmatprep.subr.mxu0 0.0
    %1553 = vmatpush1.msra.mxu0 0.0
    %1554 = vmatprep.subr.mxu0 0.0
    %1555 = vmatpush1.msra.mxu0 0.0
    %1556 = vmatprep.subr.mxu0 0.0
    %1557 = vmatpush1.msra.mxu0 0.0
    %1558 = vmatprep.subr.mxu0 0.0
    %1559 = vmatpush1.msra.mxu0 0.0
    %1560 = vmatprep.subr.mxu0 0.0
    %1561 = vmatpush1.msra.mxu0 0.0
    %1562 = vmatprep.subr.mxu0 0.0
    %1563 = vmatpush1.msra.mxu0 0.0
    %1564 = vmatprep.subr.mxu0 0.0
    %1565 = vmatpush1.msra.mxu0 0.0
    %1566 = vmatprep.subr.mxu0 0.0
    %1567 = vmatpush1.msra.mxu0 0.0
    %1568 = vmatprep.subr.mxu0 0.0
    %1569 = vmatpush1.msra.mxu0 0.0
    %1570 = vmatprep.subr.mxu0 0.0
    %1571 = vmatpush1.msra.mxu0 0.0
    %1572 = vmatprep.subr.mxu0 0.0
    %1573 = vmatpush1.msra.mxu0 0.0
    %1574 = vmatprep.subr.mxu0 0.0
    %1575 = vmatpush1.msra.mxu0 0.0
    %1576 = vmatprep.subr.mxu0 0.0
    %1577 = vmatpush1.msra.mxu0 0.0
    %1578 = vmatprep.mubr.f32.mxu0 0.0
    %1579 = vmatmul.mubr.f32.gmra.mrb[0].mxu0 %v1512
    %v1580 = vpop.f32.mrb[0].mxu0
    %v1581 = vadd.f32 0.0, %v1580
    %v1582 = vpop.f32.mrb[0].mxu0
    %1583 = vdwg.mxu0
    %1585 = vrot.lane.b32.xlu0 %v1249, 8
    %v1586 = vpop.permute.xlu0 %1585
    %1589 = vrot.lane.b32.xlu0 %v1415, 16
    %v1590 = vpop.permute.xlu0 %1589
    %1593 = vrot.lane.b32.xlu0 %v1581, 24
    %v1594 = vpop.permute.xlu0 %1593
    %v1596 = vsel %vm243, %v1083, %v1586
    %v1597 = vsel %vm917, %v1596, %v1590
    %v1598 = vsel %vm919, %v1597, %v1594
    %v1599 = vld [vmem:[%s5] sm:$0xff]
    %v1600 = vld [vmem:[%s5 + $0x8] sm:$0xff]
    %v1601 = vld [vmem:[%s5 + $0x10] sm:$0xff]
    %v1602 = vld [vmem:[%s5 + $0x18] sm:$0xff]
    %v1603 = vld [vmem:[%s6] sm:$0x1]
    %v1605 = vlaneseq
    %v1606 = vshrl.u32 %v1605, 7
    %v1607 = vsub.s32 0, %v1606
    %v1608 = vrot.slane %v1603, %v1607
    %v1611 = vsel %vm158, %v920, 0
    %v1614 = vsel %vm158, %v1598, 0
    %1616 = vmatprep.subr.mxu0 0.0
    %1617 = vmatpush1.msra.mxu0 %v1599
    %1618 = vmatprep.subr.mxu0 0.0
    %1619 = vmatpush1.msra.mxu0 %v1600
    %1620 = vmatprep.subr.mxu0 0.0
    %1621 = vmatpush1.msra.mxu0 %v1601
    %1622 = vmatprep.subr.mxu0 0.0
    %1623 = vmatpush1.msra.mxu0 %v1602
    %1624 = vmatprep.subr.mxu0 0.0
    %1625 = vmatpush1.msra.mxu0 0.0
    %1626 = vmatprep.subr.mxu0 0.0
    %1627 = vmatpush1.msra.mxu0 0.0
    %1628 = vmatprep.subr.mxu0 0.0
    %1629 = vmatpush1.msra.mxu0 0.0
    %1630 = vmatprep.subr.mxu0 0.0
    %1631 = vmatpush1.msra.mxu0 0.0
    %1632 = vmatprep.subr.mxu0 0.0
    %1633 = vmatpush1.msra.mxu0 0.0
    %1634 = vmatprep.subr.mxu0 0.0
    %1635 = vmatpush1.msra.mxu0 0.0
    %1636 = vmatprep.subr.mxu0 0.0
    %1637 = vmatpush1.msra.mxu0 0.0
    %1638 = vmatprep.subr.mxu0 0.0
    %1639 = vmatpush1.msra.mxu0 0.0
    %1640 = vmatprep.subr.mxu0 0.0
    %1641 = vmatpush1.msra.mxu0 0.0
    %1642 = vmatprep.subr.mxu0 0.0
    %1643 = vmatpush1.msra.mxu0 0.0
    %1644 = vmatprep.subr.mxu0 0.0
    %1645 = vmatpush1.msra.mxu0 0.0
    %1646 = vmatprep.subr.mxu0 0.0
    %1647 = vmatpush1.msra.mxu0 0.0
    %1648 = vmatprep.subr.mxu0 0.0
    %1649 = vmatpush1.msra.mxu0 0.0
    %1650 = vmatprep.subr.mxu0 0.0
    %1651 = vmatpush1.msra.mxu0 0.0
    %1652 = vmatprep.subr.mxu0 0.0
    %1653 = vmatpush1.msra.mxu0 0.0
    %1654 = vmatprep.subr.mxu0 0.0
    %1655 = vmatpush1.msra.mxu0 0.0
    %1656 = vmatprep.subr.mxu0 0.0
    %1657 = vmatpush1.msra.mxu0 0.0
    %1658 = vmatprep.subr.mxu0 0.0
    %1659 = vmatpush1.msra.mxu0 0.0
    %1660 = vmatprep.subr.mxu0 0.0
    %1661 = vmatpush1.msra.mxu0 0.0
    %1662 = vmatprep.subr.mxu0 0.0
    %1663 = vmatpush1.msra.mxu0 0.0
    %1664 = vmatprep.subr.mxu0 0.0
    %1665 = vmatpush1.msra.mxu0 0.0
    %1666 = vmatprep.subr.mxu0 0.0
    %1667 = vmatpush1.msra.mxu0 0.0
    %1668 = vmatprep.subr.mxu0 0.0
    %1669 = vmatpush1.msra.mxu0 0.0
    %1670 = vmatprep.subr.mxu0 0.0
    %1671 = vmatpush1.msra.mxu0 0.0
    %1672 = vmatprep.subr.mxu0 0.0
    %1673 = vmatpush1.msra.mxu0 0.0
    %1674 = vmatprep.subr.mxu0 0.0
    %1675 = vmatpush1.msra.mxu0 0.0
    %1676 = vmatprep.subr.mxu0 0.0
    %1677 = vmatpush1.msra.mxu0 0.0
    %1678 = vmatprep.subr.mxu0 0.0
    %1679 = vmatpush1.msra.mxu0 0.0
    %1680 = vmatprep.mubr.f32.mxu0 0.0
    %1681 = vmatmul.mubr.f32.gmra.mrb[0].mxu0 %v1611
    %v1682 = vpop.f32.mrb[0].mxu0
    %v1683 = vadd.f32 %v1608, %v1682
    %v1684 = vpop.f32.mrb[0].mxu0
    %1685 = vmatprep.mubr.f32.mxu0 0.0
    %1686 = vmatmul.mubr.f32.gmra.mrb[0].mxu0 %v1614
    %v1687 = vpop.f32.mrb[0].mxu0
    %v1688 = vadd.f32 %v1608, %v1687
    %v1689 = vpop.f32.mrb[0].mxu0
    %1690 = vdwg.mxu0
    %v1691 = vadd.f32 %v139, %v1683
    %v1692 = vadd.f32 %v144, %v1688
    %v1693 = vsel %vm158, %v1691, 0.0
    %1694 = vadd.xlane.f32.xlu0 %v1693
    %v1695 = vpop.xlane.xlu0 %1694
    %v1696 = vsel %vm158, %v1692, 0.0
    %1697 = vadd.xlane.f32.xlu0 %v1696
    %v1698 = vpop.xlane.xlu0 %1697
    %v1699 = vrcp.pop 32.0
    %v1700 = vmul.f32 %v1695, %v1699
    %v1701 = vmul.f32 %v1698, %v1699
    %v1702 = vsub.f32 %v1691, %v1700
    %v1703 = vsub.f32 %v1692, %v1701
    %v1704 = vmul.f32 %v1702, %v1702
    %v1705 = vmul.f32 %v1703, %v1703
    %v1706 = vsel %vm158, %v1704, 0.0
    %1707 = vadd.xlane.f32.xlu0 %v1706
    %v1708 = vpop.xlane.xlu0 %1707
    %v1709 = vsel %vm158, %v1705, 0.0
    %1710 = vadd.xlane.f32.xlu0 %v1709
    %v1711 = vpop.xlane.xlu0 %1710
    %v1712 = vmul.f32 %v1708, %v1699
    %v1713 = vmul.f32 %v1711, %v1699
    %v1714 = vadd.f32 %v1712, 1e-05
    %v1715 = vadd.f32 %v1713, 1e-05
    %v1716 = vrsqrt.pop %v1714
    %v1717 = vrsqrt.pop %v1715
    %v1718 = vmul.f32 %v1702, %v1716
    %v1719 = vmul.f32 %v1703, %v1717
    %v1720 = vld [vmem:[%s7] sm:$0x1]
    %v1722 = vlaneseq
    %v1723 = vshrl.u32 %v1722, 7
    %v1724 = vsub.s32 0, %v1723
    %v1725 = vrot.slane %v1720, %v1724
    %v1727 = vmul.f32 %v1718, %v1725
    %v1728 = vmul.f32 %v1719, %v1725
    %v1729 = vld [vmem:[%s8] sm:$0x1]
    %v1731 = vlaneseq
    %v1732 = vshrl.u32 %v1731, 7
    %v1733 = vsub.s32 0, %v1732
    %v1734 = vrot.slane %v1729, %v1733
    %v1736 = vadd.f32 %v1727, %v1734
    %v1737 = vadd.f32 %v1728, %v1734
    %v1738 = vld [vmem:[%s9] sm:$0xff]
    %v1739 = vld [vmem:[%s9 + $0x8] sm:$0xff]
    %v1740 = vld [vmem:[%s9 + $0x10] sm:$0xff]
    %v1741 = vld [vmem:[%s9 + $0x18] sm:$0xff]
    %v1742 = vld [vmem:[%s9 + $0x20] sm:$0xff]
    %v1743 = vld [vmem:[%s9 + $0x28] sm:$0xff]
    %v1744 = vld [vmem:[%s9 + $0x30] sm:$0xff]
    %v1745 = vld [vmem:[%s9 + $0x38] sm:$0xff]
    %v1746 = vld [vmem:[%s9 + $0x40] sm:$0xff]
    %v1747 = vld [vmem:[%s9 + $0x48] sm:$0xff]
    %v1748 = vld [vmem:[%s9 + $0x50] sm:$0xff]
    %v1749 = vld [vmem:[%s9 + $0x58] sm:$0xff]
    %v1750 = vld [vmem:[%s9 + $0x60] sm:$0xff]
    %v1751 = vld [vmem:[%s9 + $0x68] sm:$0xff]
    %v1752 = vld [vmem:[%s9 + $0x70] sm:$0xff]
    %v1753 = vld [vmem:[%s9 + $0x78] sm:$0xff]
    %v1754 = vld [vmem:[%s9 + $0x80] sm:$0xff]
    %v1755 = vld [vmem:[%s9 + $0x88] sm:$0xff]
    %v1756 = vld [vmem:[%s9 + $0x90] sm:$0xff]
    %v1757 = vld [vmem:[%s9 + $0x98] sm:$0xff]
    %v1758 = vld [vmem:[%s9 + $0xa0] sm:$0xff]
    %v1759 = vld [vmem:[%s9 + $0xa8] sm:$0xff]
    %v1760 = vld [vmem:[%s9 + $0xb0] sm:$0xff]
    %v1761 = vld [vmem:[%s9 + $0xb8] sm:$0xff]
    %v1762 = vld [vmem:[%s9 + $0xc0] sm:$0xff]
    %v1763 = vld [vmem:[%s9 + $0xc8] sm:$0xff]
    %v1764 = vld [vmem:[%s9 + $0xd0] sm:$0xff]
    %v1765 = vld [vmem:[%s9 + $0xd8] sm:$0xff]
    %v1766 = vld [vmem:[%s9 + $0xe0] sm:$0xff]
    %v1767 = vld [vmem:[%s9 + $0xe8] sm:$0xff]
    %v1768 = vld [vmem:[%s9 + $0xf0] sm:$0xff]
    %v1769 = vld [vmem:[%s9 + $0xf8] sm:$0xff]
    %v1770 = vld [vmem:[%s9 + $0x100] sm:$0xff]
    %v1771 = vld [vmem:[%s9 + $0x108] sm:$0xff]
    %v1772 = vld [vmem:[%s9 + $0x110] sm:$0xff]
    %v1773 = vld [vmem:[%s9 + $0x118] sm:$0xff]
    %v1774 = vld [vmem:[%s9 + $0x120] sm:$0xff]
    %v1775 = vld [vmem:[%s9 + $0x128] sm:$0xff]
    %v1776 = vld [vmem:[%s9 + $0x130] sm:$0xff]
    %v1777 = vld [vmem:[%s9 + $0x138] sm:$0xff]
    %v1778 = vld [vmem:[%s9 + $0x140] sm:$0xff]
    %v1779 = vld [vmem:[%s9 + $0x148] sm:$0xff]
    %v1780 = vld [vmem:[%s9 + $0x150] sm:$0xff]
    %v1781 = vld [vmem:[%s9 + $0x158] sm:$0xff]
    %v1782 = vld [vmem:[%s9 + $0x160] sm:$0xff]
    %v1783 = vld [vmem:[%s9 + $0x168] sm:$0xff]
    %v1784 = vld [vmem:[%s9 + $0x170] sm:$0xff]
    %v1785 = vld [vmem:[%s9 + $0x178] sm:$0xff]
    %v1786 = vld [vmem:[%s9 + $0x180] sm:$0xff]
    %v1787 = vld [vmem:[%s9 + $0x188] sm:$0xff]
    %v1788 = vld [vmem:[%s9 + $0x190] sm:$0xff]
    %v1789 = vld [vmem:[%s9 + $0x198] sm:$0xff]
    %v1790 = vld [vmem:[%s9 + $0x1a0] sm:$0xff]
    %v1791 = vld [vmem:[%s9 + $0x1a8] sm:$0xff]
    %v1792 = vld [vmem:[%s9 + $0x1b0] sm:$0xff]
    %v1793 = vld [vmem:[%s9 + $0x1b8] sm:$0xff]
    %v1794 = vld [vmem:[%s9 + $0x1c0] sm:$0xff]
    %v1795 = vld [vmem:[%s9 + $0x1c8] sm:$0xff]
    %v1796 = vld [vmem:[%s9 + $0x1d0] sm:$0xff]
    %v1797 = vld [vmem:[%s9 + $0x1d8] sm:$0xff]
    %v1798 = vld [vmem:[%s9 + $0x1e0] sm:$0xff]
    %v1799 = vld [vmem:[%s9 + $0x1e8] sm:$0xff]
    %v1800 = vld [vmem:[%s9 + $0x1f0] sm:$0xff]
    %v1801 = vld [vmem:[%s9 + $0x1f8] sm:$0xff]
    %v1802 = vld [vmem:[%s10] sm:$0xff]
    %v1803 = vld [vmem:[%s10 + $0x8] sm:$0xff]
    %v1806 = vlaneseq
    %v1807 = vshrl.u32 %v1806, 7
    %v1808 = vsub.s32 0, %v1807
    %v1809 = vrot.slane %v1802, %v1808
    %v1810 = vlaneseq
    %v1811 = vshrl.u32 %v1810, 7
    %v1812 = vsub.s32 1, %v1811
    %v1813 = vrot.slane %v1802, %v1812
    %v1814 = vlaneseq
    %v1815 = vshrl.u32 %v1814, 7
    %v1816 = vsub.s32 2, %v1815
    %v1817 = vrot.slane %v1802, %v1816
    %v1818 = vlaneseq
    %v1819 = vshrl.u32 %v1818, 7
    %v1820 = vsub.s32 3, %v1819
    %v1821 = vrot.slane %v1802, %v1820
    %v1822 = vlaneseq
    %v1823 = vshrl.u32 %v1822, 7
    %v1824 = vsub.s32 4, %v1823
    %v1825 = vrot.slane %v1802, %v1824
    %v1826 = vlaneseq
    %v1827 = vshrl.u32 %v1826, 7
    %v1828 = vsub.s32 5, %v1827
    %v1829 = vrot.slane %v1802, %v1828
    %v1830 = vlaneseq
    %v1831 = vshrl.u32 %v1830, 7
    %v1832 = vsub.s32 6, %v1831
    %v1833 = vrot.slane %v1802, %v1832
    %v1834 = vlaneseq
    %v1835 = vshrl.u32 %v1834, 7
    %v1836 = vsub.s32 7, %v1835
    %v1837 = vrot.slane %v1802, %v1836
    %v1838 = vlaneseq
    %v1839 = vshrl.u32 %v1838, 7
    %v1840 = vsub.s32 0, %v1839
    %v1841 = vrot.slane %v1803, %v1840
    %v1842 = vlaneseq
    %v1843 = vshrl.u32 %v1842, 7
    %v1844 = vsub.s32 1, %v1843
    %v1845 = vrot.slane %v1803, %v1844
    %v1846 = vlaneseq
    %v1847 = vshrl.u32 %v1846, 7
    %v1848 = vsub.s32 2, %v1847
    %v1849 = vrot.slane %v1803, %v1848
    %v1850 = vlaneseq
    %v1851 = vshrl.u32 %v1850, 7
    %v1852 = vsub.s32 3, %v1851
    %v1853 = vrot.slane %v1803, %v1852
    %v1854 = vlaneseq
    %v1855 = vshrl.u32 %v1854, 7
    %v1856 = vsub.s32 4, %v1855
    %v1857 = vrot.slane %v1803, %v1856
    %v1858 = vlaneseq
    %v1859 = vshrl.u32 %v1858, 7
    %v1860 = vsub.s32 5, %v1859
    %v1861 = vrot.slane %v1803, %v1860
    %v1862 = vlaneseq
    %v1863 = vshrl.u32 %v1862, 7
    %v1864 = vsub.s32 6, %v1863
    %v1865 = vrot.slane %v1803, %v1864
    %v1866 = vlaneseq
    %v1867 = vshrl.u32 %v1866, 7
    %v1868 = vsub.s32 7, %v1867
    %v1869 = vrot.slane %v1803, %v1868
    %v1887 = vsel %vm158, %v1736, 0
    %v1890 = vsel %vm158, %v1737, 0
    %1892 = vmatprep.subr.mxu0 %v1739
    %1893 = vmatpush1.msra.mxu0 %v1738
    %1894 = vmatprep.subr.mxu0 %v1755
    %1895 = vmatpush1.msra.mxu0 %v1754
    %1896 = vmatprep.subr.mxu0 %v1771
    %1897 = vmatpush1.msra.mxu0 %v1770
    %1898 = vmatprep.subr.mxu0 %v1787
    %1899 = vmatpush1.msra.mxu0 %v1786
    %1900 = vmatprep.subr.mxu0 0.0
    %1901 = vmatpush1.msra.mxu0 0.0
    %1902 = vmatprep.subr.mxu0 0.0
    %1903 = vmatpush1.msra.mxu0 0.0
    %1904 = vmatprep.subr.mxu0 0.0
    %1905 = vmatpush1.msra.mxu0 0.0
    %1906 = vmatprep.subr.mxu0 0.0
    %1907 = vmatpush1.msra.mxu0 0.0
    %1908 = vmatprep.subr.mxu0 0.0
    %1909 = vmatpush1.msra.mxu0 0.0
    %1910 = vmatprep.subr.mxu0 0.0
    %1911 = vmatpush1.msra.mxu0 0.0
    %1912 = vmatprep.subr.mxu0 0.0
    %1913 = vmatpush1.msra.mxu0 0.0
    %1914 = vmatprep.subr.mxu0 0.0
    %1915 = vmatpush1.msra.mxu0 0.0
    %1916 = vmatprep.subr.mxu0 0.0
    %1917 = vmatpush1.msra.mxu0 0.0
    %1918 = vmatprep.subr.mxu0 0.0
    %1919 = vmatpush1.msra.mxu0 0.0
    %1920 = vmatprep.subr.mxu0 0.0
    %1921 = vmatpush1.msra.mxu0 0.0
    %1922 = vmatprep.subr.mxu0 0.0
    %1923 = vmatpush1.msra.mxu0 0.0
    %1924 = vmatprep.subr.mxu0 0.0
    %1925 = vmatpush1.msra.mxu0 0.0
    %1926 = vmatprep.subr.mxu0 0.0
    %1927 = vmatpush1.msra.mxu0 0.0
    %1928 = vmatprep.subr.mxu0 0.0
    %1929 = vmatpush1.msra.mxu0 0.0
    %1930 = vmatprep.subr.mxu0 0.0
    %1931 = vmatpush1.msra.mxu0 0.0
    %1932 = vmatprep.subr.mxu0 0.0
    %1933 = vmatpush1.msra.mxu0 0.0
    %1934 = vmatprep.subr.mxu0 0.0
    %1935 = vmatpush1.msra.mxu0 0.0
    %1936 = vmatprep.subr.mxu0 0.0
    %1937 = vmatpush1.msra.mxu0 0.0
    %1938 = vmatprep.subr.mxu0 0.0
    %1939 = vmatpush1.msra.mxu0 0.0
    %1940 = vmatprep.subr.mxu0 0.0
    %1941 = vmatpush1.msra.mxu0 0.0
    %1942 = vmatprep.subr.mxu0 0.0
    %1943 = vmatpush1.msra.mxu0 0.0
    %1944 = vmatprep.subr.mxu0 0.0
    %1945 = vmatpush1.msra.mxu0 0.0
    %1946 = vmatprep.subr.mxu0 0.0
    %1947 = vmatpush1.msra.mxu0 0.0
    %1948 = vmatprep.subr.mxu0 0.0
    %1949 = vmatpush1.msra.mxu0 0.0
    %1950 = vmatprep.subr.mxu0 0.0
    %1951 = vmatpush1.msra.mxu0 0.0
    %1952 = vmatprep.subr.mxu0 0.0
    %1953 = vmatpush1.msra.mxu0 0.0
    %1954 = vmatprep.subr.mxu0 0.0
    %1955 = vmatpush1.msra.mxu0 0.0
    %1956 = vmatprep.mubr.f32.mxu0 0.0
    %1957 = vmatmul.mubr.f32.gmra.mrb[0].mxu0 %v1887
    %v1958 = vpop.f32.mrb[0].mxu0
    %v1959 = vadd.f32 %v1809, %v1958
    %v1960 = vpop.f32.mrb[0].mxu0
    %v1961 = vadd.f32 %v1813, %v1960
    %1962 = vmatprep.mubr.f32.mxu0 0.0
    %1963 = vmatmul.mubr.f32.gmra.mrb[0].mxu0 %v1890
    %v1964 = vpop.f32.mrb[0].mxu0
    %v1965 = vadd.f32 %v1809, %v1964
    %v1966 = vpop.f32.mrb[0].mxu0
    %v1967 = vadd.f32 %v1813, %v1966
    %1968 = vdwg.mxu0
    %1969 = vmatprep.subr.mxu0 %v1741
    %1970 = vmatpush1.msra.mxu0 %v1740
    %1971 = vmatprep.subr.mxu0 %v1757
    %1972 = vmatpush1.msra.mxu0 %v1756
    %1973 = vmatprep.subr.mxu0 %v1773
    %1974 = vmatpush1.msra.mxu0 %v1772
    %1975 = vmatprep.subr.mxu0 %v1789
    %1976 = vmatpush1.msra.mxu0 %v1788
    %1977 = vmatprep.subr.mxu0 0.0
    %1978 = vmatpush1.msra.mxu0 0.0
    %1979 = vmatprep.subr.mxu0 0.0
    %1980 = vmatpush1.msra.mxu0 0.0
    %1981 = vmatprep.subr.mxu0 0.0
    %1982 = vmatpush1.msra.mxu0 0.0
    %1983 = vmatprep.subr.mxu0 0.0
    %1984 = vmatpush1.msra.mxu0 0.0
    %1985 = vmatprep.subr.mxu0 0.0
    %1986 = vmatpush1.msra.mxu0 0.0
    %1987 = vmatprep.subr.mxu0 0.0
    %1988 = vmatpush1.msra.mxu0 0.0
    %1989 = vmatprep.subr.mxu0 0.0
    %1990 = vmatpush1.msra.mxu0 0.0
    %1991 = vmatprep.subr.mxu0 0.0
    %1992 = vmatpush1.msra.mxu0 0.0
    %1993 = vmatprep.subr.mxu0 0.0
    %1994 = vmatpush1.msra.mxu0 0.0
    %1995 = vmatprep.subr.mxu0 0.0
    %1996 = vmatpush1.msra.mxu0 0.0
    %1997 = vmatprep.subr.mxu0 0.0
    %1998 = vmatpush1.msra.mxu0 0.0
    %1999 = vmatprep.subr.mxu0 0.0
    %2000 = vmatpush1.msra.mxu0 0.0
    %2001 = vmatprep.subr.mxu0 0.0
    %2002 = vmatpush1.msra.mxu0 0.0
    %2003 = vmatprep.subr.mxu0 0.0
    %2004 = vmatpush1.msra.mxu0 0.0
    %2005 = vmatprep.subr.mxu0 0.0
    %2006 = vmatpush1.msra.mxu0 0.0
    %2007 = vmatprep.subr.mxu0 0.0
    %2008 = vmatpush1.msra.mxu0 0.0
    %2009 = vmatprep.subr.mxu0 0.0
    %2010 = vmatpush1.msra.mxu0 0.0
    %2011 = vmatprep.subr.mxu0 0.0
    %2012 = vmatpush1.msra.mxu0 0.0
    %2013 = vmatprep.subr.mxu0 0.0
    %2014 = vmatpush1.msra.mxu0 0.0
    %2015 = vmatprep.subr.mxu0 0.0
    %2016 = vmatpush1.msra.mxu0 0.0
    %2017 = vmatprep.subr.mxu0 0.0
    %2018 = vmatpush1.msra.mxu0 0.0
    %2019 = vmatprep.subr.mxu0 0.0
    %2020 = vmatpush1.msra.mxu0 0.0
    %2021 = vmatprep.subr.mxu0 0.0
    %2022 = vmatpush1.msra.mxu0 0.0
    %2023 = vmatprep.subr.mxu0 0.0
    %2024 = vmatpush1.msra.mxu0 0.0
    %2025 = vmatprep.subr.mxu0 0.0
    %2026 = vmatpush1.msra.mxu0 0.0
    %2027 = vmatprep.subr.mxu0 0.0
    %2028 = vmatpush1.msra.mxu0 0.0
    %2029 = vmatprep.subr.mxu0 0.0
    %2030 = vmatpush1.msra.mxu0 0.0
    %2031 = vmatprep.subr.mxu0 0.0
    %2032 = vmatpush1.msra.mxu0 0.0
    %2033 = vmatprep.mubr.f32.mxu0 0.0
    %2034 = vmatmul.mubr.f32.gmra.mrb[0].mxu0 %v1887
    %v2035 = vpop.f32.mrb[0].mxu0
    %v2036 = vadd.f32 %v1817, %v2035
    %v2037 = vpop.f32.mrb[0].mxu0
    %v2038 = vadd.f32 %v1821, %v2037
    %2039 = vmatprep.mubr.f32.mxu0 0.0
    %2040 = vmatmul.mubr.f32.gmra.mrb[0].mxu0 %v1890
    %v2041 = vpop.f32.mrb[0].mxu0
    %v2042 = vadd.f32 %v1817, %v2041
    %v2043 = vpop.f32.mrb[0].mxu0
    %v2044 = vadd.f32 %v1821, %v2043
    %2045 = vdwg.mxu0
    %2046 = vmatprep.subr.mxu0 %v1743
    %2047 = vmatpush1.msra.mxu0 %v1742
    %2048 = vmatprep.subr.mxu0 %v1759
    %2049 = vmatpush1.msra.mxu0 %v1758
    %2050 = vmatprep.subr.mxu0 %v1775
    %2051 = vmatpush1.msra.mxu0 %v1774
    %2052 = vmatprep.subr.mxu0 %v1791
    %2053 = vmatpush1.msra.mxu0 %v1790
    %2054 = vmatprep.subr.mxu0 0.0
    %2055 = vmatpush1.msra.mxu0 0.0
    %2056 = vmatprep.subr.mxu0 0.0
    %2057 = vmatpush1.msra.mxu0 0.0
    %2058 = vmatprep.subr.mxu0 0.0
    %2059 = vmatpush1.msra.mxu0 0.0
    %2060 = vmatprep.subr.mxu0 0.0
    %2061 = vmatpush1.msra.mxu0 0.0
    %2062 = vmatprep.subr.mxu0 0.0
    %2063 = vmatpush1.msra.mxu0 0.0
    %2064 = vmatprep.subr.mxu0 0.0
    %2065 = vmatpush1.msra.mxu0 0.0
    %2066 = vmatprep.subr.mxu0 0.0
    %2067 = vmatpush1.msra.mxu0 0.0
    %2068 = vmatprep.subr.mxu0 0.0
    %2069 = vmatpush1.msra.mxu0 0.0
    %2070 = vmatprep.subr.mxu0 0.0
    %2071 = vmatpush1.msra.mxu0 0.0
    %2072 = vmatprep.subr.mxu0 0.0
    %2073 = vmatpush1.msra.mxu0 0.0
    %2074 = vmatprep.subr.mxu0 0.0
    %2075 = vmatpush1.msra.mxu0 0.0
    %2076 = vmatprep.subr.mxu0 0.0
    %2077 = vmatpush1.msra.mxu0 0.0
    %2078 = vmatprep.subr.mxu0 0.0
    %2079 = vmatpush1.msra.mxu0 0.0
    %2080 = vmatprep.subr.mxu0 0.0
    %2081 = vmatpush1.msra.mxu0 0.0
    %2082 = vmatprep.subr.mxu0 0.0
    %2083 = vmatpush1.msra.mxu0 0.0
    %2084 = vmatprep.subr.mxu0 0.0
    %2085 = vmatpush1.msra.mxu0 0.0
    %2086 = vmatprep.subr.mxu0 0.0
    %2087 = vmatpush1.msra.mxu0 0.0
    %2088 = vmatprep.subr.mxu0 0.0
    %2089 = vmatpush1.msra.mxu0 0.0
    %2090 = vmatprep.subr.mxu0 0.0
    %2091 = vmatpush1.msra.mxu0 0.0
    %2092 = vmatprep.subr.mxu0 0.0
    %2093 = vmatpush1.msra.mxu0 0.0
    %2094 = vmatprep.subr.mxu0 0.0
    %2095 = vmatpush1.msra.mxu0 0.0
    %2096 = vmatprep.subr.mxu0 0.0
    %2097 = vmatpush1.msra.mxu0 0.0
    %2098 = vmatprep.subr.mxu0 0.0
    %2099 = vmatpush1.msra.mxu0 0.0
    %2100 = vmatprep.subr.mxu0 0.0
    %2101 = vmatpush1.msra.mxu0 0.0
    %2102 = vmatprep.subr.mxu0 0.0
    %2103 = vmatpush1.msra.mxu0 0.0
    %2104 = vmatprep.subr.mxu0 0.0
    %2105 = vmatpush1.msra.mxu0 0.0
    %2106 = vmatprep.subr.mxu0 0.0
    %2107 = vmatpush1.msra.mxu0 0.0
    %2108 = vmatprep.subr.mxu0 0.0
    %2109 = vmatpush1.msra.mxu0 0.0
    %2110 = vmatprep.mubr.f32.mxu0 0.0
    %2111 = vmatmul.mubr.f32.gmra.mrb[0].mxu0 %v1887
    %v2112 = vpop.f32.mrb[0].mxu0
    %v2113 = vadd.f32 %v1825, %v2112
    %v2114 = vpop.f32.mrb[0].mxu0
    %v2115 = vadd.f32 %v1829, %v2114
    %2116 = vmatprep.mubr.f32.mxu0 0.0
    %2117 = vmatmul.mubr.f32.gmra.mrb[0].mxu0 %v1890
    %v2118 = vpop.f32.mrb[0].mxu0
    %v2119 = vadd.f32 %v1825, %v2118
    %v2120 = vpop.f32.mrb[0].mxu0
    %v2121 = vadd.f32 %v1829, %v2120
    %2122 = vdwg.mxu0
    %2123 = vmatprep.subr.mxu0 %v1745
    %2124 = vmatpush1.msra.mxu0 %v1744
    %2125 = vmatprep.subr.mxu0 %v1761
    %2126 = vmatpush1.msra.mxu0 %v1760
    %2127 = vmatprep.subr.mxu0 %v1777
    %2128 = vmatpush1.msra.mxu0 %v1776
    %2129 = vmatprep.subr.mxu0 %v1793
    %2130 = vmatpush1.msra.mxu0 %v1792
    %2131 = vmatprep.subr.mxu0 0.0
    %2132 = vmatpush1.msra.mxu0 0.0
    %2133 = vmatprep.subr.mxu0 0.0
    %2134 = vmatpush1.msra.mxu0 0.0
    %2135 = vmatprep.subr.mxu0 0.0
    %2136 = vmatpush1.msra.mxu0 0.0
    %2137 = vmatprep.subr.mxu0 0.0
    %2138 = vmatpush1.msra.mxu0 0.0
    %2139 = vmatprep.subr.mxu0 0.0
    %2140 = vmatpush1.msra.mxu0 0.0
    %2141 = vmatprep.subr.mxu0 0.0
    %2142 = vmatpush1.msra.mxu0 0.0
    %2143 = vmatprep.subr.mxu0 0.0
    %2144 = vmatpush1.msra.mxu0 0.0
    %2145 = vmatprep.subr.mxu0 0.0
    %2146 = vmatpush1.msra.mxu0 0.0
    %2147 = vmatprep.subr.mxu0 0.0
    %2148 = vmatpush1.msra.mxu0 0.0
    %2149 = vmatprep.subr.mxu0 0.0
    %2150 = vmatpush1.msra.mxu0 0.0
    %2151 = vmatprep.subr.mxu0 0.0
    %2152 = vmatpush1.msra.mxu0 0.0
    %2153 = vmatprep.subr.mxu0 0.0
    %2154 = vmatpush1.msra.mxu0 0.0
    %2155 = vmatprep.subr.mxu0 0.0
    %2156 = vmatpush1.msra.mxu0 0.0
    %2157 = vmatprep.subr.mxu0 0.0
    %2158 = vmatpush1.msra.mxu0 0.0
    %2159 = vmatprep.subr.mxu0 0.0
    %2160 = vmatpush1.msra.mxu0 0.0
    %2161 = vmatprep.subr.mxu0 0.0
    %2162 = vmatpush1.msra.mxu0 0.0
    %2163 = vmatprep.subr.mxu0 0.0
    %2164 = vmatpush1.msra.mxu0 0.0
    %2165 = vmatprep.subr.mxu0 0.0
    %2166 = vmatpush1.msra.mxu0 0.0
    %2167 = vmatprep.subr.mxu0 0.0
    %2168 = vmatpush1.msra.mxu0 0.0
    %2169 = vmatprep.subr.mxu0 0.0
    %2170 = vmatpush1.msra.mxu0 0.0
    %2171 = vmatprep.subr.mxu0 0.0
    %2172 = vmatpush1.msra.mxu0 0.0
    %2173 = vmatprep.subr.mxu0 0.0
    %2174 = vmatpush1.msra.mxu0 0.0
    %2175 = vmatprep.subr.mxu0 0.0
    %2176 = vmatpush1.msra.mxu0 0.0
    %2177 = vmatprep.subr.mxu0 0.0
    %2178 = vmatpush1.msra.mxu0 0.0
    %2179 = vmatprep.subr.mxu0 0.0
    %2180 = vmatpush1.msra.mxu0 0.0
    %2181 = vmatprep.subr.mxu0 0.0
    %2182 = vmatpush1.msra.mxu0 0.0
    %2183 = vmatprep.subr.mxu0 0.0
    %2184 = vmatpush1.msra.mxu0 0.0
    %2185 = vmatprep.subr.mxu0 0.0
    %2186 = vmatpush1.msra.mxu0 0.0
    %2187 = vmatprep.mubr.f32.mxu0 0.0
    %2188 = vmatmul.mubr.f32.gmra.mrb[0].mxu0 %v1887
    %v2189 = vpop.f32.mrb[0].mxu0
    %v2190 = vadd.f32 %v1833, %v2189
    %v2191 = vpop.f32.mrb[0].mxu0
    %v2192 = vadd.f32 %v1837, %v2191
    %2193 = vmatprep.mubr.f32.mxu0 0.0
    %2194 = vmatmul.mubr.f32.gmra.mrb[0].mxu0 %v1890
    %v2195 = vpop.f32.mrb[0].mxu0
    %v2196 = vadd.f32 %v1833, %v2195
    %v2197 = vpop.f32.mrb[0].mxu0
    %v2198 = vadd.f32 %v1837, %v2197
    %2199 = vdwg.mxu0
    %2200 = vmatprep.subr.mxu0 %v1747
    %2201 = vmatpush1.msra.mxu0 %v1746
    %2202 = vmatprep.subr.mxu0 %v1763
    %2203 = vmatpush1.msra.mxu0 %v1762
    %2204 = vmatprep.subr.mxu0 %v1779
    %2205 = vmatpush1.msra.mxu0 %v1778
    %2206 = vmatprep.subr.mxu0 %v1795
    %2207 = vmatpush1.msra.mxu0 %v1794
    %2208 = vmatprep.subr.mxu0 0.0
    %2209 = vmatpush1.msra.mxu0 0.0
    %2210 = vmatprep.subr.mxu0 0.0
    %2211 = vmatpush1.msra.mxu0 0.0
    %2212 = vmatprep.subr.mxu0 0.0
    %2213 = vmatpush1.msra.mxu0 0.0
    %2214 = vmatprep.subr.mxu0 0.0
    %2215 = vmatpush1.msra.mxu0 0.0
    %2216 = vmatprep.subr.mxu0 0.0
    %2217 = vmatpush1.msra.mxu0 0.0
    %2218 = vmatprep.subr.mxu0 0.0
    %2219 = vmatpush1.msra.mxu0 0.0
    %2220 = vmatprep.subr.mxu0 0.0
    %2221 = vmatpush1.msra.mxu0 0.0
    %2222 = vmatprep.subr.mxu0 0.0
    %2223 = vmatpush1.msra.mxu0 0.0
    %2224 = vmatprep.subr.mxu0 0.0
    %2225 = vmatpush1.msra.mxu0 0.0
    %2226 = vmatprep.subr.mxu0 0.0
    %2227 = vmatpush1.msra.mxu0 0.0
    %2228 = vmatprep.subr.mxu0 0.0
    %2229 = vmatpush1.msra.mxu0 0.0
    %2230 = vmatprep.subr.mxu0 0.0
    %2231 = vmatpush1.msra.mxu0 0.0
    %2232 = vmatprep.subr.mxu0 0.0
    %2233 = vmatpush1.msra.mxu0 0.0
    %2234 = vmatprep.subr.mxu0 0.0
    %2235 = vmatpush1.msra.mxu0 0.0
    %2236 = vmatprep.subr.mxu0 0.0
    %2237 = vmatpush1.msra.mxu0 0.0
    %2238 = vmatprep.subr.mxu0 0.0
    %2239 = vmatpush1.msra.mxu0 0.0
    %2240 = vmatprep.subr.mxu0 0.0
    %2241 = vmatpush1.msra.mxu0 0.0
    %2242 = vmatprep.subr.mxu0 0.0
    %2243 = vmatpush1.msra.mxu0 0.0
    %2244 = vmatprep.subr.mxu0 0.0
    %2245 = vmatpush1.msra.mxu0 0.0
    %2246 = vmatprep.subr.mxu0 0.0
    %2247 = vmatpush1.msra.mxu0 0.0
    %2248 = vmatprep.subr.mxu0 0.0
    %2249 = vmatpush1.msra.mxu0 0.0
    %2250 = vmatprep.subr.mxu0 0.0
    %2251 = vmatpush1.msra.mxu0 0.0
    %2252 = vmatprep.subr.mxu0 0.0
    %2253 = vmatpush1.msra.mxu0 0.0
    %2254 = vmatprep.subr.mxu0 0.0
    %2255 = vmatpush1.msra.mxu0 0.0
    %2256 = vmatprep.subr.mxu0 0.0
    %2257 = vmatpush1.msra.mxu0 0.0
    %2258 = vmatprep.subr.mxu0 0.0
    %2259 = vmatpush1.msra.mxu0 0.0
    %2260 = vmatprep.subr.mxu0 0.0
    %2261 = vmatpush1.msra.mxu0 0.0
    %2262 = vmatprep.subr.mxu0 0.0
    %2263 = vmatpush1.msra.mxu0 0.0
    %2264 = vmatprep.mubr.f32.mxu0 0.0
    %2265 = vmatmul.mubr.f32.gmra.mrb[0].mxu0 %v1887
    %v2266 = vpop.f32.mrb[0].mxu0
    %v2267 = vadd.f32 %v1841, %v2266
    %v2268 = vpop.f32.mrb[0].mxu0
    %v2269 = vadd.f32 %v1845, %v2268
    %2270 = vmatprep.mubr.f32.mxu0 0.0
    %2271 = vmatmul.mubr.f32.gmra.mrb[0].mxu0 %v1890
    %v2272 = vpop.f32.mrb[0].mxu0
    %v2273 = vadd.f32 %v1841, %v2272
    %v2274 = vpop.f32.mrb[0].mxu0
    %v2275 = vadd.f32 %v1845, %v2274
    %2276 = vdwg.mxu0
    %2277 = vmatprep.subr.mxu0 %v1749
    %2278 = vmatpush1.msra.mxu0 %v1748
    %2279 = vmatprep.subr.mxu0 %v1765
    %2280 = vmatpush1.msra.mxu0 %v1764
    %2281 = vmatprep.subr.mxu0 %v1781
    %2282 = vmatpush1.msra.mxu0 %v1780
    %2283 = vmatprep.subr.mxu0 %v1797
    %2284 = vmatpush1.msra.mxu0 %v1796
    %2285 = vmatprep.subr.mxu0 0.0
    %2286 = vmatpush1.msra.mxu0 0.0
    %2287 = vmatprep.subr.mxu0 0.0
    %2288 = vmatpush1.msra.mxu0 0.0
    %2289 = vmatprep.subr.mxu0 0.0
    %2290 = vmatpush1.msra.mxu0 0.0
    %2291 = vmatprep.subr.mxu0 0.0
    %2292 = vmatpush1.msra.mxu0 0.0
    %2293 = vmatprep.subr.mxu0 0.0
    %2294 = vmatpush1.msra.mxu0 0.0
    %2295 = vmatprep.subr.mxu0 0.0
    %2296 = vmatpush1.msra.mxu0 0.0
    %2297 = vmatprep.subr.mxu0 0.0
    %2298 = vmatpush1.msra.mxu0 0.0
    %2299 = vmatprep.subr.mxu0 0.0
    %2300 = vmatpush1.msra.mxu0 0.0
    %2301 = vmatprep.subr.mxu0 0.0
    %2302 = vmatpush1.msra.mxu0 0.0
    %2303 = vmatprep.subr.mxu0 0.0
    %2304 = vmatpush1.msra.mxu0 0.0
    %2305 = vmatprep.subr.mxu0 0.0
    %2306 = vmatpush1.msra.mxu0 0.0
    %2307 = vmatprep.subr.mxu0 0.0
    %2308 = vmatpush1.msra.mxu0 0.0
    %2309 = vmatprep.subr.mxu0 0.0
    %2310 = vmatpush1.msra.mxu0 0.0
    %2311 = vmatprep.subr.mxu0 0.0
    %2312 = vmatpush1.msra.mxu0 0.0
    %2313 = vmatprep.subr.mxu0 0.0
    %2314 = vmatpush1.msra.mxu0 0.0
    %2315 = vmatprep.subr.mxu0 0.0
    %2316 = vmatpush1.msra.mxu0 0.0
    %2317 = vmatprep.subr.mxu0 0.0
    %2318 = vmatpush1.msra.mxu0 0.0
    %2319 = vmatprep.subr.mxu0 0.0
    %2320 = vmatpush1.msra.mxu0 0.0
    %2321 = vmatprep.subr.mxu0 0.0
    %2322 = vmatpush1.msra.mxu0 0.0
    %2323 = vmatprep.subr.mxu0 0.0
    %2324 = vmatpush1.msra.mxu0 0.0
    %2325 = vmatprep.subr.mxu0 0.0
    %2326 = vmatpush1.msra.mxu0 0.0
    %2327 = vmatprep.subr.mxu0 0.0
    %2328 = vmatpush1.msra.mxu0 0.0
    %2329 = vmatprep.subr.mxu0 0.0
    %2330 = vmatpush1.msra.mxu0 0.0
    %2331 = vmatprep.subr.mxu0 0.0
    %2332 = vmatpush1.msra.mxu0 0.0
    %2333 = vmatprep.subr.mxu0 0.0
    %2334 = vmatpush1.msra.mxu0 0.0
    %2335 = vmatprep.subr.mxu0 0.0
    %2336 = vmatpush1.msra.mxu0 0.0
    %2337 = vmatprep.subr.mxu0 0.0
    %2338 = vmatpush1.msra.mxu0 0.0
    %2339 = vmatprep.subr.mxu0 0.0
    %2340 = vmatpush1.msra.mxu0 0.0
    %2341 = vmatprep.mubr.f32.mxu0 0.0
    %2342 = vmatmul.mubr.f32.gmra.mrb[0].mxu0 %v1887
    %v2343 = vpop.f32.mrb[0].mxu0
    %v2344 = vadd.f32 %v1849, %v2343
    %v2345 = vpop.f32.mrb[0].mxu0
    %v2346 = vadd.f32 %v1853, %v2345
    %2347 = vmatprep.mubr.f32.mxu0 0.0
    %2348 = vmatmul.mubr.f32.gmra.mrb[0].mxu0 %v1890
    %v2349 = vpop.f32.mrb[0].mxu0
    %v2350 = vadd.f32 %v1849, %v2349
    %v2351 = vpop.f32.mrb[0].mxu0
    %v2352 = vadd.f32 %v1853, %v2351
    %2353 = vdwg.mxu0
    %2354 = vmatprep.subr.mxu0 %v1751
    %2355 = vmatpush1.msra.mxu0 %v1750
    %2356 = vmatprep.subr.mxu0 %v1767
    %2357 = vmatpush1.msra.mxu0 %v1766
    %2358 = vmatprep.subr.mxu0 %v1783
    %2359 = vmatpush1.msra.mxu0 %v1782
    %2360 = vmatprep.subr.mxu0 %v1799
    %2361 = vmatpush1.msra.mxu0 %v1798
    %2362 = vmatprep.subr.mxu0 0.0
    %2363 = vmatpush1.msra.mxu0 0.0
    %2364 = vmatprep.subr.mxu0 0.0
    %2365 = vmatpush1.msra.mxu0 0.0
    %2366 = vmatprep.subr.mxu0 0.0
    %2367 = vmatpush1.msra.mxu0 0.0
    %2368 = vmatprep.subr.mxu0 0.0
    %2369 = vmatpush1.msra.mxu0 0.0
    %2370 = vmatprep.subr.mxu0 0.0
    %2371 = vmatpush1.msra.mxu0 0.0
    %2372 = vmatprep.subr.mxu0 0.0
    %2373 = vmatpush1.msra.mxu0 0.0
    %2374 = vmatprep.subr.mxu0 0.0
    %2375 = vmatpush1.msra.mxu0 0.0
    %2376 = vmatprep.subr.mxu0 0.0
    %2377 = vmatpush1.msra.mxu0 0.0
    %2378 = vmatprep.subr.mxu0 0.0
    %2379 = vmatpush1.msra.mxu0 0.0
    %2380 = vmatprep.subr.mxu0 0.0
    %2381 = vmatpush1.msra.mxu0 0.0
    %2382 = vmatprep.subr.mxu0 0.0
    %2383 = vmatpush1.msra.mxu0 0.0
    %2384 = vmatprep.subr.mxu0 0.0
    %2385 = vmatpush1.msra.mxu0 0.0
    %2386 = vmatprep.subr.mxu0 0.0
    %2387 = vmatpush1.msra.mxu0 0.0
    %2388 = vmatprep.subr.mxu0 0.0
    %2389 = vmatpush1.msra.mxu0 0.0
    %2390 = vmatprep.subr.mxu0 0.0
    %2391 = vmatpush1.msra.mxu0 0.0
    %2392 = vmatprep.subr.mxu0 0.0
    %2393 = vmatpush1.msra.mxu0 0.0
    %2394 = vmatprep.subr.mxu0 0.0
    %2395 = vmatpush1.msra.mxu0 0.0
    %2396 = vmatprep.subr.mxu0 0.0
    %2397 = vmatpush1.msra.mxu0 0.0
    %2398 = vmatprep.subr.mxu0 0.0
    %2399 = vmatpush1.msra.mxu0 0.0
    %2400 = vmatprep.subr.mxu0 0.0
    %2401 = vmatpush1.msra.mxu0 0.0
    %2402 = vmatprep.subr.mxu0 0.0
    %2403 = vmatpush1.msra.mxu0 0.0
    %2404 = vmatprep.subr.mxu0 0.0
    %2405 = vmatpush1.msra.mxu0 0.0
    %2406 = vmatprep.subr.mxu0 0.0
    %2407 = vmatpush1.msra.mxu0 0.0
    %2408 = vmatprep.subr.mxu0 0.0
    %2409 = vmatpush1.msra.mxu0 0.0
    %2410 = vmatprep.subr.mxu0 0.0
    %2411 = vmatpush1.msra.mxu0 0.0
    %2412 = vmatprep.subr.mxu0 0.0
    %2413 = vmatpush1.msra.mxu0 0.0
    %2414 = vmatprep.subr.mxu0 0.0
    %2415 = vmatpush1.msra.mxu0 0.0
    %2416 = vmatprep.subr.mxu0 0.0
    %2417 = vmatpush1.msra.mxu0 0.0
    %2418 = vmatprep.mubr.f32.mxu0 0.0
    %2419 = vmatmul.mubr.f32.gmra.mrb[0].mxu0 %v1887
    %v2420 = vpop.f32.mrb[0].mxu0
    %v2421 = vadd.f32 %v1857, %v2420
    %v2422 = vpop.f32.mrb[0].mxu0
    %v2423 = vadd.f32 %v1861, %v2422
    %2424 = vmatprep.mubr.f32.mxu0 0.0
    %2425 = vmatmul.mubr.f32.gmra.mrb[0].mxu0 %v1890
    %v2426 = vpop.f32.mrb[0].mxu0
    %v2427 = vadd.f32 %v1857, %v2426
    %v2428 = vpop.f32.mrb[0].mxu0
    %v2429 = vadd.f32 %v1861, %v2428
    %2430 = vdwg.mxu0
    %2431 = vmatprep.subr.mxu0 %v1753
    %2432 = vmatpush1.msra.mxu0 %v1752
    %2433 = vmatprep.subr.mxu0 %v1769
    %2434 = vmatpush1.msra.mxu0 %v1768
    %2435 = vmatprep.subr.mxu0 %v1785
    %2436 = vmatpush1.msra.mxu0 %v1784
    %2437 = vmatprep.subr.mxu0 %v1801
    %2438 = vmatpush1.msra.mxu0 %v1800
    %2439 = vmatprep.subr.mxu0 0.0
    %2440 = vmatpush1.msra.mxu0 0.0
    %2441 = vmatprep.subr.mxu0 0.0
    %2442 = vmatpush1.msra.mxu0 0.0
    %2443 = vmatprep.subr.mxu0 0.0
    %2444 = vmatpush1.msra.mxu0 0.0
    %2445 = vmatprep.subr.mxu0 0.0
    %2446 = vmatpush1.msra.mxu0 0.0
    %2447 = vmatprep.subr.mxu0 0.0
    %2448 = vmatpush1.msra.mxu0 0.0
    %2449 = vmatprep.subr.mxu0 0.0
    %2450 = vmatpush1.msra.mxu0 0.0
    %2451 = vmatprep.subr.mxu0 0.0
    %2452 = vmatpush1.msra.mxu0 0.0
    %2453 = vmatprep.subr.mxu0 0.0
    %2454 = vmatpush1.msra.mxu0 0.0
    %2455 = vmatprep.subr.mxu0 0.0
    %2456 = vmatpush1.msra.mxu0 0.0
    %2457 = vmatprep.subr.mxu0 0.0
    %2458 = vmatpush1.msra.mxu0 0.0
    %2459 = vmatprep.subr.mxu0 0.0
    %2460 = vmatpush1.msra.mxu0 0.0
    %2461 = vmatprep.subr.mxu0 0.0
    %2462 = vmatpush1.msra.mxu0 0.0
    %2463 = vmatprep.subr.mxu0 0.0
    %2464 = vmatpush1.msra.mxu0 0.0
    %2465 = vmatprep.subr.mxu0 0.0
    %2466 = vmatpush1.msra.mxu0 0.0
    %2467 = vmatprep.subr.mxu0 0.0
    %2468 = vmatpush1.msra.mxu0 0.0
    %2469 = vmatprep.subr.mxu0 0.0
    %2470 = vmatpush1.msra.mxu0 0.0
    %2471 = vmatprep.subr.mxu0 0.0
    %2472 = vmatpush1.msra.mxu0 0.0
    %2473 = vmatprep.subr.mxu0 0.0
    %2474 = vmatpush1.msra.mxu0 0.0
    %2475 = vmatprep.subr.mxu0 0.0
    %2476 = vmatpush1.msra.mxu0 0.0
    %2477 = vmatprep.subr.mxu0 0.0
    %2478 = vmatpush1.msra.mxu0 0.0
    %2479 = vmatprep.subr.mxu0 0.0
    %2480 = vmatpush1.msra.mxu0 0.0
    %2481 = vmatprep.subr.mxu0 0.0
    %2482 = vmatpush1.msra.mxu0 0.0
    %2483 = vmatprep.subr.mxu0 0.0
    %2484 = vmatpush1.msra.mxu0 0.0
    %2485 = vmatprep.subr.mxu0 0.0
    %2486 = vmatpush1.msra.mxu0 0.0
    %2487 = vmatprep.subr.mxu0 0.0
    %2488 = vmatpush1.msra.mxu0 0.0
    %2489 = vmatprep.subr.mxu0 0.0
    %2490 = vmatpush1.msra.mxu0 0.0
    %2491 = vmatprep.subr.mxu0 0.0
    %2492 = vmatpush1.msra.mxu0 0.0
    %2493 = vmatprep.subr.mxu0 0.0
    %2494 = vmatpush1.msra.mxu0 0.0
    %2495 = vmatprep.mubr.f32.mxu0 0.0
    %2496 = vmatmul.mubr.f32.gmra.mrb[0].mxu0 %v1887
    %v2497 = vpop.f32.mrb[0].mxu0
    %v2498 = vadd.f32 %v1865, %v2497
    %v2499 = vpop.f32.mrb[0].mxu0
    %v2500 = vadd.f32 %v1869, %v2499
    %2501 = vmatprep.mubr.f32.mxu0 0.0
    %2502 = vmatmul.mubr.f32.gmra.mrb[0].mxu0 %v1890
    %v2503 = vpop.f32.mrb[0].mxu0
    %v2504 = vadd.f32 %v1865, %v2503
    %v2505 = vpop.f32.mrb[0].mxu0
    %v2506 = vadd.f32 %v1869, %v2505
    %2507 = vdwg.mxu0
    %v2508 = vmax.f32 %v1959, 0.0
    %v2509 = vmax.f32 %v1961, 0.0
    %v2510 = vmax.f32 %v2036, 0.0
    %v2511 = vmax.f32 %v2038, 0.0
    %v2512 = vmax.f32 %v2113, 0.0
    %v2513 = vmax.f32 %v2115, 0.0
    %v2514 = vmax.f32 %v2190, 0.0
    %v2515 = vmax.f32 %v2192, 0.0
    %v2516 = vmax.f32 %v2267, 0.0
    %v2517 = vmax.f32 %v2269, 0.0
    %v2518 = vmax.f32 %v2344, 0.0
    %v2519 = vmax.f32 %v2346, 0.0
    %v2520 = vmax.f32 %v2421, 0.0
    %v2521 = vmax.f32 %v2423, 0.0
    %v2522 = vmax.f32 %v2498, 0.0
    %v2523 = vmax.f32 %v2500, 0.0
    %v2524 = vmax.f32 %v1965, 0.0
    %v2525 = vmax.f32 %v1967, 0.0
    %v2526 = vmax.f32 %v2042, 0.0
    %v2527 = vmax.f32 %v2044, 0.0
    %v2528 = vmax.f32 %v2119, 0.0
    %v2529 = vmax.f32 %v2121, 0.0
    %v2530 = vmax.f32 %v2196, 0.0
    %v2531 = vmax.f32 %v2198, 0.0
    %v2532 = vmax.f32 %v2273, 0.0
    %v2533 = vmax.f32 %v2275, 0.0
    %v2534 = vmax.f32 %v2350, 0.0
    %v2535 = vmax.f32 %v2352, 0.0
    %v2536 = vmax.f32 %v2427, 0.0
    %v2537 = vmax.f32 %v2429, 0.0
    %v2538 = vmax.f32 %v2504, 0.0
    %v2539 = vmax.f32 %v2506, 0.0
    %v2540 = vld [vmem:[%s11] sm:$0xff]
    %v2541 = vld [vmem:[%s11 + $0x8] sm:$0xff]
    %v2542 = vld [vmem:[%s11 + $0x10] sm:$0xff]
    %v2543 = vld [vmem:[%s11 + $0x18] sm:$0xff]
    %v2544 = vld [vmem:[%s11 + $0x20] sm:$0xff]
    %v2545 = vld [vmem:[%s11 + $0x28] sm:$0xff]
    %v2546 = vld [vmem:[%s11 + $0x30] sm:$0xff]
    %v2547 = vld [vmem:[%s11 + $0x38] sm:$0xff]
    %v2548 = vld [vmem:[%s11 + $0x40] sm:$0xff]
    %v2549 = vld [vmem:[%s11 + $0x48] sm:$0xff]
    %v2550 = vld [vmem:[%s11 + $0x50] sm:$0xff]
    %v2551 = vld [vmem:[%s11 + $0x58] sm:$0xff]
    %v2552 = vld [vmem:[%s11 + $0x60] sm:$0xff]
    %v2553 = vld [vmem:[%s11 + $0x68] sm:$0xff]
    %v2554 = vld [vmem:[%s11 + $0x70] sm:$0xff]
    %v2555 = vld [vmem:[%s11 + $0x78] sm:$0xff]
    %v2556 = vld [vmem:[%s11 + $0x80] sm:$0xff]
    %v2557 = vld [vmem:[%s11 + $0x88] sm:$0xff]
    %v2558 = vld [vmem:[%s11 + $0x90] sm:$0xff]
    %v2559 = vld [vmem:[%s11 + $0x98] sm:$0xff]
    %v2560 = vld [vmem:[%s11 + $0xa0] sm:$0xff]
    %v2561 = vld [vmem:[%s11 + $0xa8] sm:$0xff]
    %v2562 = vld [vmem:[%s11 + $0xb0] sm:$0xff]
    %v2563 = vld [vmem:[%s11 + $0xb8] sm:$0xff]
    %v2564 = vld [vmem:[%s11 + $0xc0] sm:$0xff]
    %v2565 = vld [vmem:[%s11 + $0xc8] sm:$0xff]
    %v2566 = vld [vmem:[%s11 + $0xd0] sm:$0xff]
    %v2567 = vld [vmem:[%s11 + $0xd8] sm:$0xff]
    %v2568 = vld [vmem:[%s11 + $0xe0] sm:$0xff]
    %v2569 = vld [vmem:[%s11 + $0xe8] sm:$0xff]
    %v2570 = vld [vmem:[%s11 + $0xf0] sm:$0xff]
    %v2571 = vld [vmem:[%s11 + $0xf8] sm:$0xff]
    %v2572 = vld [vmem:[%s11 + $0x100] sm:$0xff]
    %v2573 = vld [vmem:[%s11 + $0x108] sm:$0xff]
    %v2574 = vld [vmem:[%s11 + $0x110] sm:$0xff]
    %v2575 = vld [vmem:[%s11 + $0x118] sm:$0xff]
    %v2576 = vld [vmem:[%s11 + $0x120] sm:$0xff]
    %v2577 = vld [vmem:[%s11 + $0x128] sm:$0xff]
    %v2578 = vld [vmem:[%s11 + $0x130] sm:$0xff]
    %v2579 = vld [vmem:[%s11 + $0x138] sm:$0xff]
    %v2580 = vld [vmem:[%s11 + $0x140] sm:$0xff]
    %v2581 = vld [vmem:[%s11 + $0x148] sm:$0xff]
    %v2582 = vld [vmem:[%s11 + $0x150] sm:$0xff]
    %v2583 = vld [vmem:[%s11 + $0x158] sm:$0xff]
    %v2584 = vld [vmem:[%s11 + $0x160] sm:$0xff]
    %v2585 = vld [vmem:[%s11 + $0x168] sm:$0xff]
    %v2586 = vld [vmem:[%s11 + $0x170] sm:$0xff]
    %v2587 = vld [vmem:[%s11 + $0x178] sm:$0xff]
    %v2588 = vld [vmem:[%s11 + $0x180] sm:$0xff]
    %v2589 = vld [vmem:[%s11 + $0x188] sm:$0xff]
    %v2590 = vld [vmem:[%s11 + $0x190] sm:$0xff]
    %v2591 = vld [vmem:[%s11 + $0x198] sm:$0xff]
    %v2592 = vld [vmem:[%s11 + $0x1a0] sm:$0xff]
    %v2593 = vld [vmem:[%s11 + $0x1a8] sm:$0xff]
    %v2594 = vld [vmem:[%s11 + $0x1b0] sm:$0xff]
    %v2595 = vld [vmem:[%s11 + $0x1b8] sm:$0xff]
    %v2596 = vld [vmem:[%s11 + $0x1c0] sm:$0xff]
    %v2597 = vld [vmem:[%s11 + $0x1c8] sm:$0xff]
    %v2598 = vld [vmem:[%s11 + $0x1d0] sm:$0xff]
    %v2599 = vld [vmem:[%s11 + $0x1d8] sm:$0xff]
    %v2600 = vld [vmem:[%s11 + $0x1e0] sm:$0xff]
    %v2601 = vld [vmem:[%s11 + $0x1e8] sm:$0xff]
    %v2602 = vld [vmem:[%s11 + $0x1f0] sm:$0xff]
    %v2603 = vld [vmem:[%s11 + $0x1f8] sm:$0xff]
    %v2604 = vld [vmem:[%s11 + $0x200] sm:$0xff]
    %v2605 = vld [vmem:[%s11 + $0x208] sm:$0xff]
    %v2606 = vld [vmem:[%s11 + $0x210] sm:$0xff]
    %v2607 = vld [vmem:[%s11 + $0x218] sm:$0xff]
    %v2608 = vld [vmem:[%s11 + $0x220] sm:$0xff]
    %v2609 = vld [vmem:[%s11 + $0x228] sm:$0xff]
    %v2610 = vld [vmem:[%s11 + $0x230] sm:$0xff]
    %v2611 = vld [vmem:[%s11 + $0x238] sm:$0xff]
    %v2612 = vld [vmem:[%s11 + $0x240] sm:$0xff]
    %v2613 = vld [vmem:[%s11 + $0x248] sm:$0xff]
    %v2614 = vld [vmem:[%s11 + $0x250] sm:$0xff]
    %v2615 = vld [vmem:[%s11 + $0x258] sm:$0xff]
    %v2616 = vld [vmem:[%s11 + $0x260] sm:$0xff]
    %v2617 = vld [vmem:[%s11 + $0x268] sm:$0xff]
    %v2618 = vld [vmem:[%s11 + $0x270] sm:$0xff]
    %v2619 = vld [vmem:[%s11 + $0x278] sm:$0xff]
    %v2620 = vld [vmem:[%s11 + $0x280] sm:$0xff]
    %v2621 = vld [vmem:[%s11 + $0x288] sm:$0xff]
    %v2622 = vld [vmem:[%s11 + $0x290] sm:$0xff]
    %v2623 = vld [vmem:[%s11 + $0x298] sm:$0xff]
    %v2624 = vld [vmem:[%s11 + $0x2a0] sm:$0xff]
    %v2625 = vld [vmem:[%s11 + $0x2a8] sm:$0xff]
    %v2626 = vld [vmem:[%s11 + $0x2b0] sm:$0xff]
    %v2627 = vld [vmem:[%s11 + $0x2b8] sm:$0xff]
    %v2628 = vld [vmem:[%s11 + $0x2c0] sm:$0xff]
    %v2629 = vld [vmem:[%s11 + $0x2c8] sm:$0xff]
    %v2630 = vld [vmem:[%s11 + $0x2d0] sm:$0xff]
    %v2631 = vld [vmem:[%s11 + $0x2d8] sm:$0xff]
    %v2632 = vld [vmem:[%s11 + $0x2e0] sm:$0xff]
    %v2633 = vld [vmem:[%s11 + $0x2e8] sm:$0xff]
    %v2634 = vld [vmem:[%s11 + $0x2f0] sm:$0xff]
    %v2635 = vld [vmem:[%s11 + $0x2f8] sm:$0xff]
    %v2636 = vld [vmem:[%s11 + $0x300] sm:$0xff]
    %v2637 = vld [vmem:[%s11 + $0x308] sm:$0xff]
    %v2638 = vld [vmem:[%s11 + $0x310] sm:$0xff]
    %v2639 = vld [vmem:[%s11 + $0x318] sm:$0xff]
    %v2640 = vld [vmem:[%s11 + $0x320] sm:$0xff]
    %v2641 = vld [vmem:[%s11 + $0x328] sm:$0xff]
    %v2642 = vld [vmem:[%s11 + $0x330] sm:$0xff]
    %v2643 = vld [vmem:[%s11 + $0x338] sm:$0xff]
    %v2644 = vld [vmem:[%s11 + $0x340] sm:$0xff]
    %v2645 = vld [vmem:[%s11 + $0x348] sm:$0xff]
    %v2646 = vld [vmem:[%s11 + $0x350] sm:$0xff]
    %v2647 = vld [vmem:[%s11 + $0x358] sm:$0xff]
    %v2648 = vld [vmem:[%s11 + $0x360] sm:$0xff]
    %v2649 = vld [vmem:[%s11 + $0x368] sm:$0xff]
    %v2650 = vld [vmem:[%s11 + $0x370] sm:$0xff]
    %v2651 = vld [vmem:[%s11 + $0x378] sm:$0xff]
    %v2652 = vld [vmem:[%s11 + $0x380] sm:$0xff]
    %v2653 = vld [vmem:[%s11 + $0x388] sm:$0xff]
    %v2654 = vld [vmem:[%s11 + $0x390] sm:$0xff]
    %v2655 = vld [vmem:[%s11 + $0x398] sm:$0xff]
    %v2656 = vld [vmem:[%s11 + $0x3a0] sm:$0xff]
    %v2657 = vld [vmem:[%s11 + $0x3a8] sm:$0xff]
    %v2658 = vld [vmem:[%s11 + $0x3b0] sm:$0xff]
    %v2659 = vld [vmem:[%s11 + $0x3b8] sm:$0xff]
    %v2660 = vld [vmem:[%s11 + $0x3c0] sm:$0xff]
    %v2661 = vld [vmem:[%s11 + $0x3c8] sm:$0xff]
    %v2662 = vld [vmem:[%s11 + $0x3d0] sm:$0xff]
    %v2663 = vld [vmem:[%s11 + $0x3d8] sm:$0xff]
    %v2664 = vld [vmem:[%s11 + $0x3e0] sm:$0xff]
    %v2665 = vld [vmem:[%s11 + $0x3e8] sm:$0xff]
    %v2666 = vld [vmem:[%s11 + $0x3f0] sm:$0xff]
    %v2667 = vld [vmem:[%s11 + $0x3f8] sm:$0xff]
    %v2668 = vld [vmem:[%s11 + $0x400] sm:$0xff]
    %v2669 = vld [vmem:[%s11 + $0x408] sm:$0xff]
    %v2670 = vld [vmem:[%s11 + $0x410] sm:$0xff]
    %v2671 = vld [vmem:[%s11 + $0x418] sm:$0xff]
    %v2672 = vld [vmem:[%s11 + $0x420] sm:$0xff]
    %v2673 = vld [vmem:[%s11 + $0x428] sm:$0xff]
    %v2674 = vld [vmem:[%s11 + $0x430] sm:$0xff]
    %v2675 = vld [vmem:[%s11 + $0x438] sm:$0xff]
    %v2676 = vld [vmem:[%s11 + $0x440] sm:$0xff]
    %v2677 = vld [vmem:[%s11 + $0x448] sm:$0xff]
    %v2678 = vld [vmem:[%s11 + $0x450] sm:$0xff]
    %v2679 = vld [vmem:[%s11 + $0x458] sm:$0xff]
    %v2680 = vld [vmem:[%s11 + $0x460] sm:$0xff]
    %v2681 = vld [vmem:[%s11 + $0x468] sm:$0xff]
    %v2682 = vld [vmem:[%s11 + $0x470] sm:$0xff]
    %v2683 = vld [vmem:[%s11 + $0x478] sm:$0xff]
    %v2684 = vld [vmem:[%s11 + $0x480] sm:$0xff]
    %v2685 = vld [vmem:[%s11 + $0x488] sm:$0xff]
    %v2686 = vld [vmem:[%s11 + $0x490] sm:$0xff]
    %v2687 = vld [vmem:[%s11 + $0x498] sm:$0xff]
    %v2688 = vld [vmem:[%s11 + $0x4a0] sm:$0xff]
    %v2689 = vld [vmem:[%s11 + $0x4a8] sm:$0xff]
    %v2690 = vld [vmem:[%s11 + $0x4b0] sm:$0xff]
    %v2691 = vld [vmem:[%s11 + $0x4b8] sm:$0xff]
    %v2692 = vld [vmem:[%s11 + $0x4c0] sm:$0xff]
    %v2693 = vld [vmem:[%s11 + $0x4c8] sm:$0xff]
    %v2694 = vld [vmem:[%s11 + $0x4d0] sm:$0xff]
    %v2695 = vld [vmem:[%s11 + $0x4d8] sm:$0xff]
    %v2696 = vld [vmem:[%s11 + $0x4e0] sm:$0xff]
    %v2697 = vld [vmem:[%s11 + $0x4e8] sm:$0xff]
    %v2698 = vld [vmem:[%s11 + $0x4f0] sm:$0xff]
    %v2699 = vld [vmem:[%s11 + $0x4f8] sm:$0xff]
    %v2700 = vld [vmem:[%s11 + $0x500] sm:$0xff]
    %v2701 = vld [vmem:[%s11 + $0x508] sm:$0xff]
    %v2702 = vld [vmem:[%s11 + $0x510] sm:$0xff]
    %v2703 = vld [vmem:[%s11 + $0x518] sm:$0xff]
    %v2704 = vld [vmem:[%s11 + $0x520] sm:$0xff]
    %v2705 = vld [vmem:[%s11 + $0x528] sm:$0xff]
    %v2706 = vld [vmem:[%s11 + $0x530] sm:$0xff]
    %v2707 = vld [vmem:[%s11 + $0x538] sm:$0xff]
    %v2708 = vld [vmem:[%s11 + $0x540] sm:$0xff]
    %v2709 = vld [vmem:[%s11 + $0x548] sm:$0xff]
    %v2710 = vld [vmem:[%s11 + $0x550] sm:$0xff]
    %v2711 = vld [vmem:[%s11 + $0x558] sm:$0xff]
    %v2712 = vld [vmem:[%s11 + $0x560] sm:$0xff]
    %v2713 = vld [vmem:[%s11 + $0x568] sm:$0xff]
    %v2714 = vld [vmem:[%s11 + $0x570] sm:$0xff]
    %v2715 = vld [vmem:[%s11 + $0x578] sm:$0xff]
    %v2716 = vld [vmem:[%s11 + $0x580] sm:$0xff]
    %v2717 = vld [vmem:[%s11 + $0x588] sm:$0xff]
    %v2718 = vld [vmem:[%s11 + $0x590] sm:$0xff]
    %v2719 = vld [vmem:[%s11 + $0x598] sm:$0xff]
    %v2720 = vld [vmem:[%s11 + $0x5a0] sm:$0xff]
    %v2721 = vld [vmem:[%s11 + $0x5a8] sm:$0xff]
    %v2722 = vld [vmem:[%s11 + $0x5b0] sm:$0xff]
    %v2723 = vld [vmem:[%s11 + $0x5b8] sm:$0xff]
    %v2724 = vld [vmem:[%s11 + $0x5c0] sm:$0xff]
    %v2725 = vld [vmem:[%s11 + $0x5c8] sm:$0xff]
    %v2726 = vld [vmem:[%s11 + $0x5d0] sm:$0xff]
    %v2727 = vld [vmem:[%s11 + $0x5d8] sm:$0xff]
    %v2728 = vld [vmem:[%s11 + $0x5e0] sm:$0xff]
    %v2729 = vld [vmem:[%s11 + $0x5e8] sm:$0xff]
    %v2730 = vld [vmem:[%s11 + $0x5f0] sm:$0xff]
    %v2731 = vld [vmem:[%s11 + $0x5f8] sm:$0xff]
    %v2732 = vld [vmem:[%s11 + $0x600] sm:$0xff]
    %v2733 = vld [vmem:[%s11 + $0x608] sm:$0xff]
    %v2734 = vld [vmem:[%s11 + $0x610] sm:$0xff]
    %v2735 = vld [vmem:[%s11 + $0x618] sm:$0xff]
    %v2736 = vld [vmem:[%s11 + $0x620] sm:$0xff]
    %v2737 = vld [vmem:[%s11 + $0x628] sm:$0xff]
    %v2738 = vld [vmem:[%s11 + $0x630] sm:$0xff]
    %v2739 = vld [vmem:[%s11 + $0x638] sm:$0xff]
    %v2740 = vld [vmem:[%s11 + $0x640] sm:$0xff]
    %v2741 = vld [vmem:[%s11 + $0x648] sm:$0xff]
    %v2742 = vld [vmem:[%s11 + $0x650] sm:$0xff]
    %v2743 = vld [vmem:[%s11 + $0x658] sm:$0xff]
    %v2744 = vld [vmem:[%s11 + $0x660] sm:$0xff]
    %v2745 = vld [vmem:[%s11 + $0x668] sm:$0xff]
    %v2746 = vld [vmem:[%s11 + $0x670] sm:$0xff]
    %v2747 = vld [vmem:[%s11 + $0x678] sm:$0xff]
    %v2748 = vld [vmem:[%s11 + $0x680] sm:$0xff]
    %v2749 = vld [vmem:[%s11 + $0x688] sm:$0xff]
    %v2750 = vld [vmem:[%s11 + $0x690] sm:$0xff]
    %v2751 = vld [vmem:[%s11 + $0x698] sm:$0xff]
    %v2752 = vld [vmem:[%s11 + $0x6a0] sm:$0xff]
    %v2753 = vld [vmem:[%s11 + $0x6a8] sm:$0xff]
    %v2754 = vld [vmem:[%s11 + $0x6b0] sm:$0xff]
    %v2755 = vld [vmem:[%s11 + $0x6b8] sm:$0xff]
    %v2756 = vld [vmem:[%s11 + $0x6c0] sm:$0xff]
    %v2757 = vld [vmem:[%s11 + $0x6c8] sm:$0xff]
    %v2758 = vld [vmem:[%s11 + $0x6d0] sm:$0xff]
    %v2759 = vld [vmem:[%s11 + $0x6d8] sm:$0xff]
    %v2760 = vld [vmem:[%s11 + $0x6e0] sm:$0xff]
    %v2761 = vld [vmem:[%s11 + $0x6e8] sm:$0xff]
    %v2762 = vld [vmem:[%s11 + $0x6f0] sm:$0xff]
    %v2763 = vld [vmem:[%s11 + $0x6f8] sm:$0xff]
    %v2764 = vld [vmem:[%s11 + $0x700] sm:$0xff]
    %v2765 = vld [vmem:[%s11 + $0x708] sm:$0xff]
    %v2766 = vld [vmem:[%s11 + $0x710] sm:$0xff]
    %v2767 = vld [vmem:[%s11 + $0x718] sm:$0xff]
    %v2768 = vld [vmem:[%s11 + $0x720] sm:$0xff]
    %v2769 = vld [vmem:[%s11 + $0x728] sm:$0xff]
    %v2770 = vld [vmem:[%s11 + $0x730] sm:$0xff]
    %v2771 = vld [vmem:[%s11 + $0x738] sm:$0xff]
    %v2772 = vld [vmem:[%s11 + $0x740] sm:$0xff]
    %v2773 = vld [vmem:[%s11 + $0x748] sm:$0xff]
    %v2774 = vld [vmem:[%s11 + $0x750] sm:$0xff]
    %v2775 = vld [vmem:[%s11 + $0x758] sm:$0xff]
    %v2776 = vld [vmem:[%s11 + $0x760] sm:$0xff]
    %v2777 = vld [vmem:[%s11 + $0x768] sm:$0xff]
    %v2778 = vld [vmem:[%s11 + $0x770] sm:$0xff]
    %v2779 = vld [vmem:[%s11 + $0x778] sm:$0xff]
    %v2780 = vld [vmem:[%s11 + $0x780] sm:$0xff]
    %v2781 = vld [vmem:[%s11 + $0x788] sm:$0xff]
    %v2782 = vld [vmem:[%s11 + $0x790] sm:$0xff]
    %v2783 = vld [vmem:[%s11 + $0x798] sm:$0xff]
    %v2784 = vld [vmem:[%s11 + $0x7a0] sm:$0xff]
    %v2785 = vld [vmem:[%s11 + $0x7a8] sm:$0xff]
    %v2786 = vld [vmem:[%s11 + $0x7b0] sm:$0xff]
    %v2787 = vld [vmem:[%s11 + $0x7b8] sm:$0xff]
    %v2788 = vld [vmem:[%s11 + $0x7c0] sm:$0xff]
    %v2789 = vld [vmem:[%s11 + $0x7c8] sm:$0xff]
    %v2790 = vld [vmem:[%s11 + $0x7d0] sm:$0xff]
    %v2791 = vld [vmem:[%s11 + $0x7d8] sm:$0xff]
    %v2792 = vld [vmem:[%s11 + $0x7e0] sm:$0xff]
    %v2793 = vld [vmem:[%s11 + $0x7e8] sm:$0xff]
    %v2794 = vld [vmem:[%s11 + $0x7f0] sm:$0xff]
    %v2795 = vld [vmem:[%s11 + $0x7f8] sm:$0xff]
    %v2796 = vld [vmem:[%s12] sm:$0x1]
    %v2798 = vlaneseq
    %v2799 = vshrl.u32 %v2798, 7
    %v2800 = vsub.s32 0, %v2799
    %v2801 = vrot.slane %v2796, %v2800
    %2803 = vmatprep.subr.mxu0 0.0
    %2804 = vmatpush1.msra.mxu0 %v2540
    %2805 = vmatprep.subr.mxu0 0.0
    %2806 = vmatpush1.msra.mxu0 %v2541
    %2807 = vmatprep.subr.mxu0 0.0
    %2808 = vmatpush1.msra.mxu0 %v2542
    %2809 = vmatprep.subr.mxu0 0.0
    %2810 = vmatpush1.msra.mxu0 %v2543
    %2811 = vmatprep.subr.mxu0 0.0
    %2812 = vmatpush1.msra.mxu0 %v2544
    %2813 = vmatprep.subr.mxu0 0.0
    %2814 = vmatpush1.msra.mxu0 %v2545
    %2815 = vmatprep.subr.mxu0 0.0
    %2816 = vmatpush1.msra.mxu0 %v2546
    %2817 = vmatprep.subr.mxu0 0.0
    %2818 = vmatpush1.msra.mxu0 %v2547
    %2819 = vmatprep.subr.mxu0 0.0
    %2820 = vmatpush1.msra.mxu0 %v2548
    %2821 = vmatprep.subr.mxu0 0.0
    %2822 = vmatpush1.msra.mxu0 %v2549
    %2823 = vmatprep.subr.mxu0 0.0
    %2824 = vmatpush1.msra.mxu0 %v2550
    %2825 = vmatprep.subr.mxu0 0.0
    %2826 = vmatpush1.msra.mxu0 %v2551
    %2827 = vmatprep.subr.mxu0 0.0
    %2828 = vmatpush1.msra.mxu0 %v2552
    %2829 = vmatprep.subr.mxu0 0.0
    %2830 = vmatpush1.msra.mxu0 %v2553
    %2831 = vmatprep.subr.mxu0 0.0
    %2832 = vmatpush1.msra.mxu0 %v2554
    %2833 = vmatprep.subr.mxu0 0.0
    %2834 = vmatpush1.msra.mxu0 %v2555
    %2835 = vmatprep.subr.mxu0 0.0
    %2836 = vmatpush1.msra.mxu0 %v2556
    %2837 = vmatprep.subr.mxu0 0.0
    %2838 = vmatpush1.msra.mxu0 %v2557
    %2839 = vmatprep.subr.mxu0 0.0
    %2840 = vmatpush1.msra.mxu0 %v2558
    %2841 = vmatprep.subr.mxu0 0.0
    %2842 = vmatpush1.msra.mxu0 %v2559
    %2843 = vmatprep.subr.mxu0 0.0
    %2844 = vmatpush1.msra.mxu0 %v2560
    %2845 = vmatprep.subr.mxu0 0.0
    %2846 = vmatpush1.msra.mxu0 %v2561
    %2847 = vmatprep.subr.mxu0 0.0
    %2848 = vmatpush1.msra.mxu0 %v2562
    %2849 = vmatprep.subr.mxu0 0.0
    %2850 = vmatpush1.msra.mxu0 %v2563
    %2851 = vmatprep.subr.mxu0 0.0
    %2852 = vmatpush1.msra.mxu0 %v2564
    %2853 = vmatprep.subr.mxu0 0.0
    %2854 = vmatpush1.msra.mxu0 %v2565
    %2855 = vmatprep.subr.mxu0 0.0
    %2856 = vmatpush1.msra.mxu0 %v2566
    %2857 = vmatprep.subr.mxu0 0.0
    %2858 = vmatpush1.msra.mxu0 %v2567
    %2859 = vmatprep.subr.mxu0 0.0
    %2860 = vmatpush1.msra.mxu0 %v2568
    %2861 = vmatprep.subr.mxu0 0.0
    %2862 = vmatpush1.msra.mxu0 %v2569
    %2863 = vmatprep.subr.mxu0 0.0
    %2864 = vmatpush1.msra.mxu0 %v2570
    %2865 = vmatprep.subr.mxu0 0.0
    %2866 = vmatpush1.msra.mxu0 %v2571
    %2867 = vmatprep.mubr.f32.mxu0 %v2509
    %2868 = vmatmul.mubr.f32.gmra.mrb[0].mxu0 %v2508
    %v2869 = vpop.f32.mrb[0].mxu0
    %v2870 = vadd.f32 %v2801, %v2869
    %v2871 = vpop.f32.mrb[0].mxu0
    %2872 = vmatprep.mubr.f32.mxu0 %v2525
    %2873 = vmatmul.mubr.f32.gmra.mrb[0].mxu0 %v2524
    %v2874 = vpop.f32.mrb[0].mxu0
    %v2875 = vadd.f32 %v2801, %v2874
    %v2876 = vpop.f32.mrb[0].mxu0
    %2877 = vdwg.mxu0
    %2878 = vmatprep.subr.mxu0 0.0
    %2879 = vmatpush1.msra.mxu0 %v2572
    %2880 = vmatprep.subr.mxu0 0.0
    %2881 = vmatpush1.msra.mxu0 %v2573
    %2882 = vmatprep.subr.mxu0 0.0
    %2883 = vmatpush1.msra.mxu0 %v2574
    %2884 = vmatprep.subr.mxu0 0.0
    %2885 = vmatpush1.msra.mxu0 %v2575
    %2886 = vmatprep.subr.mxu0 0.0
    %2887 = vmatpush1.msra.mxu0 %v2576
    %2888 = vmatprep.subr.mxu0 0.0
    %2889 = vmatpush1.msra.mxu0 %v2577
    %2890 = vmatprep.subr.mxu0 0.0
    %2891 = vmatpush1.msra.mxu0 %v2578
    %2892 = vmatprep.subr.mxu0 0.0
    %2893 = vmatpush1.msra.mxu0 %v2579
    %2894 = vmatprep.subr.mxu0 0.0
    %2895 = vmatpush1.msra.mxu0 %v2580
    %2896 = vmatprep.subr.mxu0 0.0
    %2897 = vmatpush1.msra.mxu0 %v2581
    %2898 = vmatprep.subr.mxu0 0.0
    %2899 = vmatpush1.msra.mxu0 %v2582
    %2900 = vmatprep.subr.mxu0 0.0
    %2901 = vmatpush1.msra.mxu0 %v2583
    %2902 = vmatprep.subr.mxu0 0.0
    %2903 = vmatpush1.msra.mxu0 %v2584
    %2904 = vmatprep.subr.mxu0 0.0
    %2905 = vmatpush1.msra.mxu0 %v2585
    %2906 = vmatprep.subr.mxu0 0.0
    %2907 = vmatpush1.msra.mxu0 %v2586
    %2908 = vmatprep.subr.mxu0 0.0
    %2909 = vmatpush1.msra.mxu0 %v2587
    %2910 = vmatprep.subr.mxu0 0.0
    %2911 = vmatpush1.msra.mxu0 %v2588
    %2912 = vmatprep.subr.mxu0 0.0
    %2913 = vmatpush1.msra.mxu0 %v2589
    %2914 = vmatprep.subr.mxu0 0.0
    %2915 = vmatpush1.msra.mxu0 %v2590
    %2916 = vmatprep.subr.mxu0 0.0
    %2917 = vmatpush1.msra.mxu0 %v2591
    %2918 = vmatprep.subr.mxu0 0.0
    %2919 = vmatpush1.msra.mxu0 %v2592
    %2920 = vmatprep.subr.mxu0 0.0
    %2921 = vmatpush1.msra.mxu0 %v2593
    %2922 = vmatprep.subr.mxu0 0.0
    %2923 = vmatpush1.msra.mxu0 %v2594
    %2924 = vmatprep.subr.mxu0 0.0
    %2925 = vmatpush1.msra.mxu0 %v2595
    %2926 = vmatprep.subr.mxu0 0.0
    %2927 = vmatpush1.msra.mxu0 %v2596
    %2928 = vmatprep.subr.mxu0 0.0
    %2929 = vmatpush1.msra.mxu0 %v2597
    %2930 = vmatprep.subr.mxu0 0.0
    %2931 = vmatpush1.msra.mxu0 %v2598
    %2932 = vmatprep.subr.mxu0 0.0
    %2933 = vmatpush1.msra.mxu0 %v2599
    %2934 = vmatprep.subr.mxu0 0.0
    %2935 = vmatpush1.msra.mxu0 %v2600
    %2936 = vmatprep.subr.mxu0 0.0
    %2937 = vmatpush1.msra.mxu0 %v2601
    %2938 = vmatprep.subr.mxu0 0.0
    %2939 = vmatpush1.msra.mxu0 %v2602
    %2940 = vmatprep.subr.mxu0 0.0
    %2941 = vmatpush1.msra.mxu0 %v2603
    %2942 = vmatprep.mubr.f32.mxu0 %v2511
    %2943 = vmatmul.mubr.f32.gmra.mrb[0].mxu0 %v2510
    %v2944 = vpop.f32.mrb[0].mxu0
    %v2945 = vadd.f32 %v2870, %v2944
    %v2946 = vpop.f32.mrb[0].mxu0
    %2947 = vmatprep.mubr.f32.mxu0 %v2527
    %2948 = vmatmul.mubr.f32.gmra.mrb[0].mxu0 %v2526
    %v2949 = vpop.f32.mrb[0].mxu0
    %v2950 = vadd.f32 %v2875, %v2949
    %v2951 = vpop.f32.mrb[0].mxu0
    %2952 = vdwg.mxu0
    %2953 = vmatprep.subr.mxu0 0.0
    %2954 = vmatpush1.msra.mxu0 %v2604
    %2955 = vmatprep.subr.mxu0 0.0
    %2956 = vmatpush1.msra.mxu0 %v2605
    %2957 = vmatprep.subr.mxu0 0.0
    %2958 = vmatpush1.msra.mxu0 %v2606
    %2959 = vmatprep.subr.mxu0 0.0
    %2960 = vmatpush1.msra.mxu0 %v2607
    %2961 = vmatprep.subr.mxu0 0.0
    %2962 = vmatpush1.msra.mxu0 %v2608
    %2963 = vmatprep.subr.mxu0 0.0
    %2964 = vmatpush1.msra.mxu0 %v2609
    %2965 = vmatprep.subr.mxu0 0.0
    %2966 = vmatpush1.msra.mxu0 %v2610
    %2967 = vmatprep.subr.mxu0 0.0
    %2968 = vmatpush1.msra.mxu0 %v2611
    %2969 = vmatprep.subr.mxu0 0.0
    %2970 = vmatpush1.msra.mxu0 %v2612
    %2971 = vmatprep.subr.mxu0 0.0
    %2972 = vmatpush1.msra.mxu0 %v2613
    %2973 = vmatprep.subr.mxu0 0.0
    %2974 = vmatpush1.msra.mxu0 %v2614
    %2975 = vmatprep.subr.mxu0 0.0
    %2976 = vmatpush1.msra.mxu0 %v2615
    %2977 = vmatprep.subr.mxu0 0.0
    %2978 = vmatpush1.msra.mxu0 %v2616
    %2979 = vmatprep.subr.mxu0 0.0
    %2980 = vmatpush1.msra.mxu0 %v2617
    %2981 = vmatprep.subr.mxu0 0.0
    %2982 = vmatpush1.msra.mxu0 %v2618
    %2983 = vmatprep.subr.mxu0 0.0
    %2984 = vmatpush1.msra.mxu0 %v2619
    %2985 = vmatprep.subr.mxu0 0.0
    %2986 = vmatpush1.msra.mxu0 %v2620
    %2987 = vmatprep.subr.mxu0 0.0
    %2988 = vmatpush1.msra.mxu0 %v2621
    %2989 = vmatprep.subr.mxu0 0.0
    %2990 = vmatpush1.msra.mxu0 %v2622
    %2991 = vmatprep.subr.mxu0 0.0
    %2992 = vmatpush1.msra.mxu0 %v2623
    %2993 = vmatprep.subr.mxu0 0.0
    %2994 = vmatpush1.msra.mxu0 %v2624
    %2995 = vmatprep.subr.mxu0 0.0
    %2996 = vmatpush1.msra.mxu0 %v2625
    %2997 = vmatprep.subr.mxu0 0.0
    %2998 = vmatpush1.msra.mxu0 %v2626
    %2999 = vmatprep.subr.mxu0 0.0
    %3000 = vmatpush1.msra.mxu0 %v2627
    %3001 = vmatprep.subr.mxu0 0.0
    %3002 = vmatpush1.msra.mxu0 %v2628
    %3003 = vmatprep.subr.mxu0 0.0
    %3004 = vmatpush1.msra.mxu0 %v2629
    %3005 = vmatprep.subr.mxu0 0.0
    %3006 = vmatpush1.msra.mxu0 %v2630
    %3007 = vmatprep.subr.mxu0 0.0
    %3008 = vmatpush1.msra.mxu0 %v2631
    %3009 = vmatprep.subr.mxu0 0.0
    %3010 = vmatpush1.msra.mxu0 %v2632
    %3011 = vmatprep.subr.mxu0 0.0
    %3012 = vmatpush1.msra.mxu0 %v2633
    %3013 = vmatprep.subr.mxu0 0.0
    %3014 = vmatpush1.msra.mxu0 %v2634
    %3015 = vmatprep.subr.mxu0 0.0
    %3016 = vmatpush1.msra.mxu0 %v2635
    %3017 = vmatprep.mubr.f32.mxu0 %v2513
    %3018 = vmatmul.mubr.f32.gmra.mrb[0].mxu0 %v2512
    %v3019 = vpop.f32.mrb[0].mxu0
    %v3020 = vadd.f32 %v2945, %v3019
    %v3021 = vpop.f32.mrb[0].mxu0
    %3022 = vmatprep.mubr.f32.mxu0 %v2529
    %3023 = vmatmul.mubr.f32.gmra.mrb[0].mxu0 %v2528
    %v3024 = vpop.f32.mrb[0].mxu0
    %v3025 = vadd.f32 %v2950, %v3024
    %v3026 = vpop.f32.mrb[0].mxu0
    %3027 = vdwg.mxu0
    %3028 = vmatprep.subr.mxu0 0.0
    %3029 = vmatpush1.msra.mxu0 %v2636
    %3030 = vmatprep.subr.mxu0 0.0
    %3031 = vmatpush1.msra.mxu0 %v2637
    %3032 = vmatprep.subr.mxu0 0.0
    %3033 = vmatpush1.msra.mxu0 %v2638
    %3034 = vmatprep.subr.mxu0 0.0
    %3035 = vmatpush1.msra.mxu0 %v2639
    %3036 = vmatprep.subr.mxu0 0.0
    %3037 = vmatpush1.msra.mxu0 %v2640
    %3038 = vmatprep.subr.mxu0 0.0
    %3039 = vmatpush1.msra.mxu0 %v2641
    %3040 = vmatprep.subr.mxu0 0.0
    %3041 = vmatpush1.msra.mxu0 %v2642
    %3042 = vmatprep.subr.mxu0 0.0
    %3043 = vmatpush1.msra.mxu0 %v2643
    %3044 = vmatprep.subr.mxu0 0.0
    %3045 = vmatpush1.msra.mxu0 %v2644
    %3046 = vmatprep.subr.mxu0 0.0
    %3047 = vmatpush1.msra.mxu0 %v2645
    %3048 = vmatprep.subr.mxu0 0.0
    %3049 = vmatpush1.msra.mxu0 %v2646
    %3050 = vmatprep.subr.mxu0 0.0
    %3051 = vmatpush1.msra.mxu0 %v2647
    %3052 = vmatprep.subr.mxu0 0.0
    %3053 = vmatpush1.msra.mxu0 %v2648
    %3054 = vmatprep.subr.mxu0 0.0
    %3055 = vmatpush1.msra.mxu0 %v2649
    %3056 = vmatprep.subr.mxu0 0.0
    %3057 = vmatpush1.msra.mxu0 %v2650
    %3058 = vmatprep.subr.mxu0 0.0
    %3059 = vmatpush1.msra.mxu0 %v2651
    %3060 = vmatprep.subr.mxu0 0.0
    %3061 = vmatpush1.msra.mxu0 %v2652
    %3062 = vmatprep.subr.mxu0 0.0
    %3063 = vmatpush1.msra.mxu0 %v2653
    %3064 = vmatprep.subr.mxu0 0.0
    %3065 = vmatpush1.msra.mxu0 %v2654
    %3066 = vmatprep.subr.mxu0 0.0
    %3067 = vmatpush1.msra.mxu0 %v2655
    %3068 = vmatprep.subr.mxu0 0.0
    %3069 = vmatpush1.msra.mxu0 %v2656
    %3070 = vmatprep.subr.mxu0 0.0
    %3071 = vmatpush1.msra.mxu0 %v2657
    %3072 = vmatprep.subr.mxu0 0.0
    %3073 = vmatpush1.msra.mxu0 %v2658
    %3074 = vmatprep.subr.mxu0 0.0
    %3075 = vmatpush1.msra.mxu0 %v2659
    %3076 = vmatprep.subr.mxu0 0.0
    %3077 = vmatpush1.msra.mxu0 %v2660
    %3078 = vmatprep.subr.mxu0 0.0
    %3079 = vmatpush1.msra.mxu0 %v2661
    %3080 = vmatprep.subr.mxu0 0.0
    %3081 = vmatpush1.msra.mxu0 %v2662
    %3082 = vmatprep.subr.mxu0 0.0
    %3083 = vmatpush1.msra.mxu0 %v2663
    %3084 = vmatprep.subr.mxu0 0.0
    %3085 = vmatpush1.msra.mxu0 %v2664
    %3086 = vmatprep.subr.mxu0 0.0
    %3087 = vmatpush1.msra.mxu0 %v2665
    %3088 = vmatprep.subr.mxu0 0.0
    %3089 = vmatpush1.msra.mxu0 %v2666
    %3090 = vmatprep.subr.mxu0 0.0
    %3091 = vmatpush1.msra.mxu0 %v2667
    %3092 = vmatprep.mubr.f32.mxu0 %v2515
    %3093 = vmatmul.mubr.f32.gmra.mrb[0].mxu0 %v2514
    %v3094 = vpop.f32.mrb[0].mxu0
    %v3095 = vadd.f32 %v3020, %v3094
    %v3096 = vpop.f32.mrb[0].mxu0
    %3097 = vmatprep.mubr.f32.mxu0 %v2531
    %3098 = vmatmul.mubr.f32.gmra.mrb[0].mxu0 %v2530
    %v3099 = vpop.f32.mrb[0].mxu0
    %v3100 = vadd.f32 %v3025, %v3099
    %v3101 = vpop.f32.mrb[0].mxu0
    %3102 = vdwg.mxu0
    %3103 = vmatprep.subr.mxu0 0.0
    %3104 = vmatpush1.msra.mxu0 %v2668
    %3105 = vmatprep.subr.mxu0 0.0
    %3106 = vmatpush1.msra.mxu0 %v2669
    %3107 = vmatprep.subr.mxu0 0.0
    %3108 = vmatpush1.msra.mxu0 %v2670
    %3109 = vmatprep.subr.mxu0 0.0
    %3110 = vmatpush1.msra.mxu0 %v2671
    %3111 = vmatprep.subr.mxu0 0.0
    %3112 = vmatpush1.msra.mxu0 %v2672
    %3113 = vmatprep.subr.mxu0 0.0
    %3114 = vmatpush1.msra.mxu0 %v2673
    %3115 = vmatprep.subr.mxu0 0.0
    %3116 = vmatpush1.msra.mxu0 %v2674
    %3117 = vmatprep.subr.mxu0 0.0
    %3118 = vmatpush1.msra.mxu0 %v2675
    %3119 = vmatprep.subr.mxu0 0.0
    %3120 = vmatpush1.msra.mxu0 %v2676
    %3121 = vmatprep.subr.mxu0 0.0
    %3122 = vmatpush1.msra.mxu0 %v2677
    %3123 = vmatprep.subr.mxu0 0.0
    %3124 = vmatpush1.msra.mxu0 %v2678
    %3125 = vmatprep.subr.mxu0 0.0
    %3126 = vmatpush1.msra.mxu0 %v2679
    %3127 = vmatprep.subr.mxu0 0.0
    %3128 = vmatpush1.msra.mxu0 %v2680
    %3129 = vmatprep.subr.mxu0 0.0
    %3130 = vmatpush1.msra.mxu0 %v2681
    %3131 = vmatprep.subr.mxu0 0.0
    %3132 = vmatpush1.msra.mxu0 %v2682
    %3133 = vmatprep.subr.mxu0 0.0
    %3134 = vmatpush1.msra.mxu0 %v2683
    %3135 = vmatprep.subr.mxu0 0.0
    %3136 = vmatpush1.msra.mxu0 %v2684
    %3137 = vmatprep.subr.mxu0 0.0
    %3138 = vmatpush1.msra.mxu0 %v2685
    %3139 = vmatprep.subr.mxu0 0.0
    %3140 = vmatpush1.msra.mxu0 %v2686
    %3141 = vmatprep.subr.mxu0 0.0
    %3142 = vmatpush1.msra.mxu0 %v2687
    %3143 = vmatprep.subr.mxu0 0.0
    %3144 = vmatpush1.msra.mxu0 %v2688
    %3145 = vmatprep.subr.mxu0 0.0
    %3146 = vmatpush1.msra.mxu0 %v2689
    %3147 = vmatprep.subr.mxu0 0.0
    %3148 = vmatpush1.msra.mxu0 %v2690
    %3149 = vmatprep.subr.mxu0 0.0
    %3150 = vmatpush1.msra.mxu0 %v2691
    %3151 = vmatprep.subr.mxu0 0.0
    %3152 = vmatpush1.msra.mxu0 %v2692
    %3153 = vmatprep.subr.mxu0 0.0
    %3154 = vmatpush1.msra.mxu0 %v2693
    %3155 = vmatprep.subr.mxu0 0.0
    %3156 = vmatpush1.msra.mxu0 %v2694
    %3157 = vmatprep.subr.mxu0 0.0
    %3158 = vmatpush1.msra.mxu0 %v2695
    %3159 = vmatprep.subr.mxu0 0.0
    %3160 = vmatpush1.msra.mxu0 %v2696
    %3161 = vmatprep.subr.mxu0 0.0
    %3162 = vmatpush1.msra.mxu0 %v2697
    %3163 = vmatprep.subr.mxu0 0.0
    %3164 = vmatpush1.msra.mxu0 %v2698
    %3165 = vmatprep.subr.mxu0 0.0
    %3166 = vmatpush1.msra.mxu0 %v2699
    %3167 = vmatprep.mubr.f32.mxu0 %v2517
    %3168 = vmatmul.mubr.f32.gmra.mrb[0].mxu0 %v2516
    %v3169 = vpop.f32.mrb[0].mxu0
    %v3170 = vadd.f32 %v3095, %v3169
    %v3171 = vpop.f32.mrb[0].mxu0
    %3172 = vmatprep.mubr.f32.mxu0 %v2533
    %3173 = vmatmul.mubr.f32.gmra.mrb[0].mxu0 %v2532
    %v3174 = vpop.f32.mrb[0].mxu0
    %v3175 = vadd.f32 %v3100, %v3174
    %v3176 = vpop.f32.mrb[0].mxu0
    %3177 = vdwg.mxu0
    %3178 = vmatprep.subr.mxu0 0.0
    %3179 = vmatpush1.msra.mxu0 %v2700
    %3180 = vmatprep.subr.mxu0 0.0
    %3181 = vmatpush1.msra.mxu0 %v2701
    %3182 = vmatprep.subr.mxu0 0.0
    %3183 = vmatpush1.msra.mxu0 %v2702
    %3184 = vmatprep.subr.mxu0 0.0
    %3185 = vmatpush1.msra.mxu0 %v2703
    %3186 = vmatprep.subr.mxu0 0.0
    %3187 = vmatpush1.msra.mxu0 %v2704
    %3188 = vmatprep.subr.mxu0 0.0
    %3189 = vmatpush1.msra.mxu0 %v2705
    %3190 = vmatprep.subr.mxu0 0.0
    %3191 = vmatpush1.msra.mxu0 %v2706
    %3192 = vmatprep.subr.mxu0 0.0
    %3193 = vmatpush1.msra.mxu0 %v2707
    %3194 = vmatprep.subr.mxu0 0.0
    %3195 = vmatpush1.msra.mxu0 %v2708
    %3196 = vmatprep.subr.mxu0 0.0
    %3197 = vmatpush1.msra.mxu0 %v2709
    %3198 = vmatprep.subr.mxu0 0.0
    %3199 = vmatpush1.msra.mxu0 %v2710
    %3200 = vmatprep.subr.mxu0 0.0
    %3201 = vmatpush1.msra.mxu0 %v2711
    %3202 = vmatprep.subr.mxu0 0.0
    %3203 = vmatpush1.msra.mxu0 %v2712
    %3204 = vmatprep.subr.mxu0 0.0
    %3205 = vmatpush1.msra.mxu0 %v2713
    %3206 = vmatprep.subr.mxu0 0.0
    %3207 = vmatpush1.msra.mxu0 %v2714
    %3208 = vmatprep.subr.mxu0 0.0
    %3209 = vmatpush1.msra.mxu0 %v2715
    %3210 = vmatprep.subr.mxu0 0.0
    %3211 = vmatpush1.msra.mxu0 %v2716
    %3212 = vmatprep.subr.mxu0 0.0
    %3213 = vmatpush1.msra.mxu0 %v2717
    %3214 = vmatprep.subr.mxu0 0.0
    %3215 = vmatpush1.msra.mxu0 %v2718
    %3216 = vmatprep.subr.mxu0 0.0
    %3217 = vmatpush1.msra.mxu0 %v2719
    %3218 = vmatprep.subr.mxu0 0.0
    %3219 = vmatpush1.msra.mxu0 %v2720
    %3220 = vmatprep.subr.mxu0 0.0
    %3221 = vmatpush1.msra.mxu0 %v2721
    %3222 = vmatprep.subr.mxu0 0.0
    %3223 = vmatpush1.msra.mxu0 %v2722
    %3224 = vmatprep.subr.mxu0 0.0
    %3225 = vmatpush1.msra.mxu0 %v2723
    %3226 = vmatprep.subr.mxu0 0.0
    %3227 = vmatpush1.msra.mxu0 %v2724
    %3228 = vmatprep.subr.mxu0 0.0
    %3229 = vmatpush1.msra.mxu0 %v2725
    %3230 = vmatprep.subr.mxu0 0.0
    %3231 = vmatpush1.msra.mxu0 %v2726
    %3232 = vmatprep.subr.mxu0 0.0
    %3233 = vmatpush1.msra.mxu0 %v2727
    %3234 = vmatprep.subr.mxu0 0.0
    %3235 = vmatpush1.msra.mxu0 %v2728
    %3236 = vmatprep.subr.mxu0 0.0
    %3237 = vmatpush1.msra.mxu0 %v2729
    %3238 = vmatprep.subr.mxu0 0.0
    %3239 = vmatpush1.msra.mxu0 %v2730
    %3240 = vmatprep.subr.mxu0 0.0
    %3241 = vmatpush1.msra.mxu0 %v2731
    %3242 = vmatprep.mubr.f32.mxu0 %v2519
    %3243 = vmatmul.mubr.f32.gmra.mrb[0].mxu0 %v2518
    %v3244 = vpop.f32.mrb[0].mxu0
    %v3245 = vadd.f32 %v3170, %v3244
    %v3246 = vpop.f32.mrb[0].mxu0
    %3247 = vmatprep.mubr.f32.mxu0 %v2535
    %3248 = vmatmul.mubr.f32.gmra.mrb[0].mxu0 %v2534
    %v3249 = vpop.f32.mrb[0].mxu0
    %v3250 = vadd.f32 %v3175, %v3249
    %v3251 = vpop.f32.mrb[0].mxu0
    %3252 = vdwg.mxu0
    %3253 = vmatprep.subr.mxu0 0.0
    %3254 = vmatpush1.msra.mxu0 %v2732
    %3255 = vmatprep.subr.mxu0 0.0
    %3256 = vmatpush1.msra.mxu0 %v2733
    %3257 = vmatprep.subr.mxu0 0.0
    %3258 = vmatpush1.msra.mxu0 %v2734
    %3259 = vmatprep.subr.mxu0 0.0
    %3260 = vmatpush1.msra.mxu0 %v2735
    %3261 = vmatprep.subr.mxu0 0.0
    %3262 = vmatpush1.msra.mxu0 %v2736
    %3263 = vmatprep.subr.mxu0 0.0
    %3264 = vmatpush1.msra.mxu0 %v2737
    %3265 = vmatprep.subr.mxu0 0.0
    %3266 = vmatpush1.msra.mxu0 %v2738
    %3267 = vmatprep.subr.mxu0 0.0
    %3268 = vmatpush1.msra.mxu0 %v2739
    %3269 = vmatprep.subr.mxu0 0.0
    %3270 = vmatpush1.msra.mxu0 %v2740
    %3271 = vmatprep.subr.mxu0 0.0
    %3272 = vmatpush1.msra.mxu0 %v2741
    %3273 = vmatprep.subr.mxu0 0.0
    %3274 = vmatpush1.msra.mxu0 %v2742
    %3275 = vmatprep.subr.mxu0 0.0
    %3276 = vmatpush1.msra.mxu0 %v2743
    %3277 = vmatprep.subr.mxu0 0.0
    %3278 = vmatpush1.msra.mxu0 %v2744
    %3279 = vmatprep.subr.mxu0 0.0
    %3280 = vmatpush1.msra.mxu0 %v2745
    %3281 = vmatprep.subr.mxu0 0.0
    %3282 = vmatpush1.msra.mxu0 %v2746
    %3283 = vmatprep.subr.mxu0 0.0
    %3284 = vmatpush1.msra.mxu0 %v2747
    %3285 = vmatprep.subr.mxu0 0.0
    %3286 = vmatpush1.msra.mxu0 %v2748
    %3287 = vmatprep.subr.mxu0 0.0
    %3288 = vmatpush1.msra.mxu0 %v2749
    %3289 = vmatprep.subr.mxu0 0.0
    %3290 = vmatpush1.msra.mxu0 %v2750
    %3291 = vmatprep.subr.mxu0 0.0
    %3292 = vmatpush1.msra.mxu0 %v2751
    %3293 = vmatprep.subr.mxu0 0.0
    %3294 = vmatpush1.msra.mxu0 %v2752
    %3295 = vmatprep.subr.mxu0 0.0
    %3296 = vmatpush1.msra.mxu0 %v2753
    %3297 = vmatprep.subr.mxu0 0.0
    %3298 = vmatpush1.msra.mxu0 %v2754
    %3299 = vmatprep.subr.mxu0 0.0
    %3300 = vmatpush1.msra.mxu0 %v2755
    %3301 = vmatprep.subr.mxu0 0.0
    %3302 = vmatpush1.msra.mxu0 %v2756
    %3303 = vmatprep.subr.mxu0 0.0
    %3304 = vmatpush1.msra.mxu0 %v2757
    %3305 = vmatprep.subr.mxu0 0.0
    %3306 = vmatpush1.msra.mxu0 %v2758
    %3307 = vmatprep.subr.mxu0 0.0
    %3308 = vmatpush1.msra.mxu0 %v2759
    %3309 = vmatprep.subr.mxu0 0.0
    %3310 = vmatpush1.msra.mxu0 %v2760
    %3311 = vmatprep.subr.mxu0 0.0
    %3312 = vmatpush1.msra.mxu0 %v2761
    %3313 = vmatprep.subr.mxu0 0.0
    %3314 = vmatpush1.msra.mxu0 %v2762
    %3315 = vmatprep.subr.mxu0 0.0
    %3316 = vmatpush1.msra.mxu0 %v2763
    %3317 = vmatprep.mubr.f32.mxu0 %v2521
    %3318 = vmatmul.mubr.f32.gmra.mrb[0].mxu0 %v2520
    %v3319 = vpop.f32.mrb[0].mxu0
    %v3320 = vadd.f32 %v3245, %v3319
    %v3321 = vpop.f32.mrb[0].mxu0
    %3322 = vmatprep.mubr.f32.mxu0 %v2537
    %3323 = vmatmul.mubr.f32.gmra.mrb[0].mxu0 %v2536
    %v3324 = vpop.f32.mrb[0].mxu0
    %v3325 = vadd.f32 %v3250, %v3324
    %v3326 = vpop.f32.mrb[0].mxu0
    %3327 = vdwg.mxu0
    %3328 = vmatprep.subr.mxu0 0.0
    %3329 = vmatpush1.msra.mxu0 %v2764
    %3330 = vmatprep.subr.mxu0 0.0
    %3331 = vmatpush1.msra.mxu0 %v2765
    %3332 = vmatprep.subr.mxu0 0.0
    %3333 = vmatpush1.msra.mxu0 %v2766
    %3334 = vmatprep.subr.mxu0 0.0
    %3335 = vmatpush1.msra.mxu0 %v2767
    %3336 = vmatprep.subr.mxu0 0.0
    %3337 = vmatpush1.msra.mxu0 %v2768
    %3338 = vmatprep.subr.mxu0 0.0
    %3339 = vmatpush1.msra.mxu0 %v2769
    %3340 = vmatprep.subr.mxu0 0.0
    %3341 = vmatpush1.msra.mxu0 %v2770
    %3342 = vmatprep.subr.mxu0 0.0
    %3343 = vmatpush1.msra.mxu0 %v2771
    %3344 = vmatprep.subr.mxu0 0.0
    %3345 = vmatpush1.msra.mxu0 %v2772
    %3346 = vmatprep.subr.mxu0 0.0
    %3347 = vmatpush1.msra.mxu0 %v2773
    %3348 = vmatprep.subr.mxu0 0.0
    %3349 = vmatpush1.msra.mxu0 %v2774
    %3350 = vmatprep.subr.mxu0 0.0
    %3351 = vmatpush1.msra.mxu0 %v2775
    %3352 = vmatprep.subr.mxu0 0.0
    %3353 = vmatpush1.msra.mxu0 %v2776
    %3354 = vmatprep.subr.mxu0 0.0
    %3355 = vmatpush1.msra.mxu0 %v2777
    %3356 = vmatprep.subr.mxu0 0.0
    %3357 = vmatpush1.msra.mxu0 %v2778
    %3358 = vmatprep.subr.mxu0 0.0
    %3359 = vmatpush1.msra.mxu0 %v2779
    %3360 = vmatprep.subr.mxu0 0.0
    %3361 = vmatpush1.msra.mxu0 %v2780
    %3362 = vmatprep.subr.mxu0 0.0
    %3363 = vmatpush1.msra.mxu0 %v2781
    %3364 = vmatprep.subr.mxu0 0.0
    %3365 = vmatpush1.msra.mxu0 %v2782
    %3366 = vmatprep.subr.mxu0 0.0
    %3367 = vmatpush1.msra.mxu0 %v2783
    %3368 = vmatprep.subr.mxu0 0.0
    %3369 = vmatpush1.msra.mxu0 %v2784
    %3370 = vmatprep.subr.mxu0 0.0
    %3371 = vmatpush1.msra.mxu0 %v2785
    %3372 = vmatprep.subr.mxu0 0.0
    %3373 = vmatpush1.msra.mxu0 %v2786
    %3374 = vmatprep.subr.mxu0 0.0
    %3375 = vmatpush1.msra.mxu0 %v2787
    %3376 = vmatprep.subr.mxu0 0.0
    %3377 = vmatpush1.msra.mxu0 %v2788
    %3378 = vmatprep.subr.mxu0 0.0
    %3379 = vmatpush1.msra.mxu0 %v2789
    %3380 = vmatprep.subr.mxu0 0.0
    %3381 = vmatpush1.msra.mxu0 %v2790
    %3382 = vmatprep.subr.mxu0 0.0
    %3383 = vmatpush1.msra.mxu0 %v2791
    %3384 = vmatprep.subr.mxu0 0.0
    %3385 = vmatpush1.msra.mxu0 %v2792
    %3386 = vmatprep.subr.mxu0 0.0
    %3387 = vmatpush1.msra.mxu0 %v2793
    %3388 = vmatprep.subr.mxu0 0.0
    %3389 = vmatpush1.msra.mxu0 %v2794
    %3390 = vmatprep.subr.mxu0 0.0
    %3391 = vmatpush1.msra.mxu0 %v2795
    %3392 = vmatprep.mubr.f32.mxu0 %v2523
    %3393 = vmatmul.mubr.f32.gmra.mrb[0].mxu0 %v2522
    %v3394 = vpop.f32.mrb[0].mxu0
    %v3395 = vadd.f32 %v3320, %v3394
    %v3396 = vpop.f32.mrb[0].mxu0
    %3397 = vmatprep.mubr.f32.mxu0 %v2539
    %3398 = vmatmul.mubr.f32.gmra.mrb[0].mxu0 %v2538
    %v3399 = vpop.f32.mrb[0].mxu0
    %v3400 = vadd.f32 %v3325, %v3399
    %v3401 = vpop.f32.mrb[0].mxu0
    %3402 = vdwg.mxu0
    %v3403 = vadd.f32 %v1736, %v3395
    %v3404 = vadd.f32 %v1737, %v3400
    %v3405 = vsel %vm158, %v3403, 0.0
    %3406 = vadd.xlane.f32.xlu0 %v3405
    %v3407 = vpop.xlane.xlu0 %3406
    %v3408 = vsel %vm158, %v3404, 0.0
    %3409 = vadd.xlane.f32.xlu0 %v3408
    %v3410 = vpop.xlane.xlu0 %3409
    %v3411 = vmul.f32 %v3407, %v1699
    %v3412 = vmul.f32 %v3410, %v1699
    %v3413 = vsub.f32 %v3403, %v3411
    %v3414 = vsub.f32 %v3404, %v3412
    %v3415 = vmul.f32 %v3413, %v3413
    %v3416 = vmul.f32 %v3414, %v3414
    %v3417 = vsel %vm158, %v3415, 0.0
    %3418 = vadd.xlane.f32.xlu0 %v3417
    %v3419 = vpop.xlane.xlu0 %3418
    %v3420 = vsel %vm158, %v3416, 0.0
    %3421 = vadd.xlane.f32.xlu0 %v3420
    %v3422 = vpop.xlane.xlu0 %3421
    %v3423 = vmul.f32 %v3419, %v1699
    %v3424 = vmul.f32 %v3422, %v1699
    %v3425 = vadd.f32 %v3423, 1e-05
    %v3426 = vadd.f32 %v3424, 1e-05
    %v3427 = vrsqrt.pop %v3425
    %v3428 = vrsqrt.pop %v3426
    %v3429 = vmul.f32 %v3413, %v3427
    %v3430 = vmul.f32 %v3414, %v3428
    %v3431 = vld [vmem:[%s13] sm:$0x1]
    %v3433 = vlaneseq
    %v3434 = vshrl.u32 %v3433, 7
    %v3435 = vsub.s32 0, %v3434
    %v3436 = vrot.slane %v3431, %v3435
    %v3438 = vmul.f32 %v3429, %v3436
    %v3439 = vmul.f32 %v3430, %v3436
    %v3440 = vld [vmem:[%s14] sm:$0x1]
    %v3442 = vlaneseq
    %v3443 = vshrl.u32 %v3442, 7
    %v3444 = vsub.s32 0, %v3443
    %v3445 = vrot.slane %v3440, %v3444
    %v3447 = vadd.f32 %v3438, %v3445
    %v3448 = vadd.f32 %v3439, %v3445
    %3449 = vst.msk [vmem:[#allocation2] sm:$0xff] %vm158, %v3447
    %3450 = vst.msk [vmem:[#allocation2 + $0x8] sm:$0xff] %vm158, %v3448
    // Predicated region
    $region62: #{tpu_custom_call.1} parent=1 // pred_check
      _
    $region63: #{tpu_custom_call.1} parent=1 // pred_check_branch
      %3452 = sbr.rel (0) target = $region65
    $region64: #{tpu_custom_call.1} parent=1 // pred_region
      %s3454 = ssub.s32 256, 256
      %3455 = vsyncadd [#allocation3], %s3454
      %s3456 = sshll.u32 [#allocation2], 4
      %s3457 = int_to_ptr.vmem [resolvable:$true] %s3456
      %3462 = dma.vmem_to_hbm [thread:$0]  %s3457, 256, %s15, [#allocation3], 128, 128, 8
    $region65: #{tpu_custom_call.1} parent=1 // pred_fallthru
      _
    // Predicated region
    $region66: #{tpu_custom_call.1} parent=1 // pred_check
      _
    $region67: #{tpu_custom_call.1} parent=1 // pred_check_branch
      %3464 = sbr.rel (0) target = $region69
    $region68: #{tpu_custom_call.1} parent=1 // pred_region
      %3465 = dma.done [#allocation3], 256
    $region69: #{tpu_custom_call.1} parent=1 // pred_fallthru
      _
    %3466 = vsyncpa [#allocation3], 1

</llo_original>
